<compile_context>
chip_gen: v7x
topology: tpu7x:2x2x1
jax: 0.10.0
libtpu: 0.0.40
codegen_flags: <defaults>
</compile_context>

<pallas_src>
import functools

import jax
import jax.numpy as jnp
from jax.experimental import pallas as pl
from jax.experimental.pallas import tpu as pltpu

CONV_K = 7
CONV_STRIDE = 2
CONV_PAD = 3
STEM_CH = 64

POOL1 = (3, 2, 1)   # backbone stem maxpool: (kernel, stride, pad)
POOL2 = (5, 2, 2)   # module's self.max_pool

LANE = 128


def _out_size(size, k, s, p):
    return (size + 2 * p - k) // s + 1


def _composite_pool_windows(conv_size):
    """Exact composition of maxpool(3,2,1) followed by maxpool(5,2,2) along one axis.

    Returns (n_out, ((lo, hi), ...)) where output index m takes the max over conv
    indices [lo, hi).  Derived by literally composing the two index maps, so it is
    bit-exact vs. running the two pools (incl. -inf padding / floor sizing).
    """
    k1, s1, p1 = POOL1
    k2, s2, p2 = POOL2
    n1 = _out_size(conv_size, k1, s1, p1)
    n2 = _out_size(n1, k2, s2, p2)
    wins = []
    for m in range(n2):
        idx = set()
        for a in range(s2 * m - p2, s2 * m - p2 + k2):
            if 0 <= a < n1:
                for kh in range(k1):
                    r = s1 * a - p1 + kh
                    if 0 <= r < conv_size:
                        idx.add(r)
        lo, hi = min(idx), max(idx)
        assert idx == set(range(lo, hi + 1)), "composite pool window not contiguous"
        wins.append((lo, hi + 1))
    return n2, tuple(wins)


# ------------------------------- fused kernel ------------------------------- #

def _fused_kernel(x_ref, w_ref, b_ref, o_ref, *, ho, c_out, row_windows, col_windows):
    # x_ref: (1, 2, rows_per_phase, kpad) bf16  row-phase-split padded image,
    #        lanes = (padded W, Cin) fused, zero-padded to kpad (multiple of 128)
    # w_ref: (7, kpad, Wo*Cout)  bf16  banded conv weights (resident across the grid)
    # b_ref: (1, Wo*Cout)        f32   bias tiled over the Wo output columns
    # o_ref: (1, n_h, n_w*Cout)  f32   lane-dense pooled output
    lane_w = b_ref.shape[-1]

    # --- conv7x7/s2: 7 accumulated MXU matmuls, kw shifts folded into the banded RHS ---
    acc = jnp.zeros((ho, lane_w), jnp.float32)
    for kh in range(CONV_K):
        slab = x_ref[0, kh % 2, (kh // 2):(kh // 2) + ho, :]          # (Ho, kpad) bf16
        acc = acc + jnp.dot(slab, w_ref[kh], preferred_element_type=jnp.float32)

    # --- bias + ReLU (full 1024-lane vregs) ---
    acc = jnp.maximum(acc + b_ref[...], 0.0)                          # (Ho, Wo*Cout) f32

    # --- composed 11x11/stride-4 max pool: rows (sublane ranges), then cols (lane groups);
    #     each pooled row written directly into the output ref, no stacked intermediates ---
    for m, (ilo, ihi) in enumerate(row_windows):
        rmax = jnp.max(acc[ilo:ihi, :], axis=0, keepdims=True)        # (1, Wo*Cout)
        pieces = []
        for (jlo, jhi) in col_windows:
            seg = rmax[:, jlo * c_out:(jlo + 1) * c_out]
            for j in range(jlo + 1, jhi):
                seg = jnp.maximum(seg, rmax[:, j * c_out:(j + 1) * c_out])
            pieces.append(seg)                                         # (1, Cout)
        o_ref[0, m:m + 1, :] = jnp.concatenate(pieces, axis=-1)        # (1, n_w*Cout)


# ---------------------------------- wrapper --------------------------------- #

def _prep_image(x_nchw):
    """NCHW f32 -> (N, 2, rows_per_phase, kpad) bf16 row-phase-split padded image."""
    n, cin, h, w = x_nchw.shape
    x = jnp.transpose(x_nchw, (0, 2, 3, 1)).astype(jnp.float32)       # NHWC
    ho = _out_size(h, CONV_K, CONV_STRIDE, CONV_PAD)
    wo = _out_size(w, CONV_K, CONV_STRIDE, CONV_PAD)
    rows_per_phase = ho + (CONV_K - 1) // 2                           # Ho + 3
    wp = w + 2 * CONV_PAD
    pad_bottom = 2 * rows_per_phase - h - CONV_PAD                    # >= CONV_PAD
    xp = jnp.pad(x, ((0, 0), (CONV_PAD, pad_bottom), (CONV_PAD, CONV_PAD), (0, 0)))
    kdim = wp * cin
    kpad = ((kdim + LANE - 1) // LANE) * LANE
    xp = xp.reshape(n, 2 * rows_per_phase, kdim)                      # fuse (W, Cin) lanes
    xp = jnp.pad(xp, ((0, 0), (0, 0), (0, kpad - kdim)))
    xp = xp.reshape(n, rows_per_phase, 2, kpad).transpose(0, 2, 1, 3)  # stride-2 row phases
    return xp.astype(jnp.bfloat16), ho, wo, kpad


def _build_banded_weights(w_hwio, wo, kpad):
    """(7,7,Cin,Cout) -> (7, kpad, wo*Cout) bf16 banded RHS absorbing all kw shifts."""
    k, _, cin, cout = w_hwio.shape
    w_flat = jnp.asarray(w_hwio, jnp.float32).reshape(k, k * cin, cout)  # [(kh),(kw,c),co]
    wb = jnp.zeros((k, kpad, wo * cout), jnp.float32)
    for j in range(wo):
        r0 = CONV_STRIDE * j * cin
        wb = wb.at[:, r0:r0 + k * cin, j * cout:(j + 1) * cout].set(w_flat)
    return wb.astype(jnp.bfloat16)


def _forward(x_nchw, w_banded, bias_tile):
    n = x_nchw.shape[0]
    xph, ho, wo, kpad = _prep_image(x_nchw)
    rows_per_phase = xph.shape[2]
    c_out = bias_tile.shape[-1] // wo
    n_h, row_windows = _composite_pool_windows(ho)
    n_w, col_windows = _composite_pool_windows(wo)

    kernel = functools.partial(_fused_kernel, ho=ho, c_out=c_out,
                               row_windows=row_windows, col_windows=col_windows)

    # Derive the VMEM budget from the actual block sizes (don't hard-code 32 MiB);
    # cap against physical VMEM so the same code is safe on v7x (64 MiB) and v5e/v6e.
    x_blk = 2 * rows_per_phase * kpad * 2                 # bf16
    w_bytes = CONV_K * kpad * wo * c_out * 2              # bf16, resident
    o_blk = n_h * n_w * c_out * 4
    acc_bytes = ho * wo * c_out * 4
    need = 2 * (x_blk + o_blk) + 2 * w_bytes + bias_tile.size * 4 + acc_bytes + (4 << 20)
    try:
        phys = pltpu.get_tpu_info().vmem_capacity_bytes
    except Exception:
        phys = 64 << 20
    vmem_limit = int(min(max(need, 32 << 20), phys - (16 << 20)))

    out = pl.pallas_call(
        kernel,
        out_shape=jax.ShapeDtypeStruct((n, n_h, n_w * c_out), jnp.float32),
        grid_spec=pltpu.PrefetchScalarGridSpec(
            num_scalar_prefetch=0,
            grid=(n,),                                     # one image per step; N>=2 keeps
            in_specs=[                                     # both v7x TensorCores busy
                pl.BlockSpec((1, 2, rows_per_phase, kpad), lambda b: (b, 0, 0, 0)),
                pl.BlockSpec((CONV_K, kpad, wo * c_out), lambda b: (0, 0, 0)),
                pl.BlockSpec((1, wo * c_out), lambda b: (0, 0)),
            ],
            out_specs=pl.BlockSpec((1, n_h, n_w * c_out), lambda b: (b, 0, 0)),
        ),
        compiler_params=pltpu.CompilerParams(
            dimension_semantics=("parallel",),
            vmem_limit_bytes=vmem_limit,
        ),
    )(xph, w_banded, bias_tile)

    # kernel output is (N, Hf, Wf*C); match PyTorch NCHW .contiguous().view(b, -1)
    out = out.reshape(n, n_h, n_w, c_out).transpose(0, 3, 1, 2)       # (N, C, Hf, Wf)
    return out.reshape(n, -1)


# ----------------------------------- model ---------------------------------- #

class ImageFusionModelPallas:
    """Pallas port of ImageFusionModel.forward (NCHW input, flattened output)."""

    def __init__(self, n_frames=1, n_channels=3, key=jax.random.PRNGKey(42)):
        cin = n_frames * n_channels
        kw_, kb_ = jax.random.split(key)
        fan_in = cin * CONV_K * CONV_K
        # deterministic synthetic stem weights (HWIO layout)
        self.w = (jax.random.normal(kw_, (CONV_K, CONV_K, cin, STEM_CH), jnp.float32)
                  * (2.0 / fan_in) ** 0.5)
        self.b = jax.random.normal(kb_, (STEM_CH,), jnp.float32) * 0.01
        self._param_cache = {}                 # (wo, kpad) -> (banded weights, tiled bias)
        self._fwd = jax.jit(_forward)

    def _params_for(self, w_in):
        wo = _out_size(w_in, CONV_K, CONV_STRIDE, CONV_PAD)
        kdim = (w_in + 2 * CONV_PAD) * self.w.shape[2]
        kpad = ((kdim + LANE - 1) // LANE) * LANE
        ck = (wo, kpad)
        if ck not in self._param_cache:
            wb = _build_banded_weights(self.w, wo, kpad)
            bt = jnp.tile(self.b, wo).reshape(1, wo * STEM_CH).astype(jnp.float32)
            self._param_cache[ck] = (wb, bt)
        return self._param_cache[ck]

    def __call__(self, stacked_images_nchw):
        _, _, _, w_in = stacked_images_nchw.shape
        wb, bt = self._params_for(w_in)
        return self._fwd(stacked_images_nchw, wb, bt)


# --------------------------------- reference --------------------------------- #

def _reference(x_nchw, w, b):
    x = jnp.transpose(x_nchw, (0, 2, 3, 1)).astype(jnp.float32)
    y = jax.lax.conv_general_dilated(
        x, w, window_strides=(2, 2), padding=((3, 3), (3, 3)),
        dimension_numbers=("NHWC", "HWIO", "NHWC"))
    y = jnp.maximum(y + b.reshape(1, 1, 1, -1), 0.0)

    def mp(z, k, p):
        return jax.lax.reduce_window(
            z, -jnp.inf, jax.lax.max,
            window_dimensions=(1, k, k, 1), window_strides=(1, 2, 2, 1),
            padding=((0, 0), (p, p), (p, p), (0, 0)))

    y = mp(y, 3, 1)
    y = mp(y, 5, 2)
    y = jnp.transpose(y, (0, 3, 1, 2))
    return y.reshape(y.shape[0], -1)


if __name__ == "__main__":
    key = jax.random.PRNGKey(0)
    x = jax.random.normal(key, (2, 3, 32, 32), jnp.float32)      # NCHW, like PyTorch

    model = ImageFusionModelPallas(n_frames=1, n_channels=3)
    out = model(x)
    out = jax.block_until_ready(out)

    assert out.shape == (2, STEM_CH * 4 * 4), out.shape

    ref = _reference(x, model.w, model.b)
    if not jnp.allclose(out, ref, atol=2e-2, rtol=2e-2):
        raise AssertionError(
            f"mismatch vs reference: max abs diff {float(jnp.max(jnp.abs(out - ref)))}")

    print("KERNEL_OK")
</pallas_src>

<mosaic_0001>
module attributes {stable_mosaic.version = 11 : i64} {
  func.func @_fused_kernel(%arg0: i32, %arg1: memref<1x2x19x128xbf16, #tpu.memory_space<vmem>>, %arg2: memref<7x128x1024xbf16, #tpu.memory_space<vmem>>, %arg3: memref<1x1024xf32, #tpu.memory_space<vmem>>, %arg4: memref<1x4x256xf32, #tpu.memory_space<vmem>>) attributes {dimension_semantics = [#tpu.dimension_semantics<parallel>], iteration_bounds = array<i64: 2>, scalar_prefetch = 0 : i64, scratch_operands = 0 : i64, tpu.core_type = #tpu.core_type<tc>, window_params = [{transform_indices = @transform_0, window_bounds = array<i64: 1, 2, 19, 128>}, {pipeline_mode = #tpu.pipeline_mode<synchronous>, transform_indices = @transform_1, window_bounds = array<i64: 7, 128, 1024>}, {pipeline_mode = #tpu.pipeline_mode<synchronous>, transform_indices = @transform_2, window_bounds = array<i64: 1, 1024>}, {transform_indices = @transform_3, window_bounds = array<i64: 1, 4, 256>}]} {
    %cst = arith.constant 0.000000e+00 : f32
    %0 = vector.broadcast %cst : f32 to vector<16x1024xf32>
    %c0 = arith.constant 0 : index
    %c0_0 = arith.constant 0 : index
    %c0_1 = arith.constant 0 : index
    %c0_2 = arith.constant 0 : index
    %1 = vector.load %arg1[%c0, %c0_0, %c0_1, %c0_2] : memref<1x2x19x128xbf16, #tpu.memory_space<vmem>>, vector<1x1x16x128xbf16>
    %2 = vector.shape_cast %1 : vector<1x1x16x128xbf16> to vector<16x128xbf16>
    %c0_3 = arith.constant 0 : index
    %c0_4 = arith.constant 0 : index
    %c0_5 = arith.constant 0 : index
    %3 = vector.load %arg2[%c0_3, %c0_4, %c0_5] : memref<7x128x1024xbf16, #tpu.memory_space<vmem>>, vector<1x128x1024xbf16>
    %4 = vector.shape_cast %3 : vector<1x128x1024xbf16> to vector<128x1024xbf16>
    %cst_6 = arith.constant dense<0.000000e+00> : vector<16x1024xf32>
    %5 = tpu.matmul %2, %4, %cst_6 {dimension_numbers = #tpu.dot_dimension_numbers<[1], [0], [0], [1], [0, 0, 1, 1], [], []>} : vector<16x128xbf16>, vector<128x1024xbf16>, vector<16x1024xf32> -> vector<16x1024xf32>
    %6 = arith.addf %0, %5 : vector<16x1024xf32>
    %c0_7 = arith.constant 0 : index
    %c1 = arith.constant 1 : index
    %c0_8 = arith.constant 0 : index
    %c0_9 = arith.constant 0 : index
    %7 = vector.load %arg1[%c0_7, %c1, %c0_8, %c0_9] : memref<1x2x19x128xbf16, #tpu.memory_space<vmem>>, vector<1x1x16x128xbf16>
    %8 = vector.shape_cast %7 : vector<1x1x16x128xbf16> to vector<16x128xbf16>
    %c1_10 = arith.constant 1 : index
    %c0_11 = arith.constant 0 : index
    %c0_12 = arith.constant 0 : index
    %9 = vector.load %arg2[%c1_10, %c0_11, %c0_12] : memref<7x128x1024xbf16, #tpu.memory_space<vmem>>, vector<1x128x1024xbf16>
    %10 = vector.shape_cast %9 : vector<1x128x1024xbf16> to vector<128x1024xbf16>
    %cst_13 = arith.constant dense<0.000000e+00> : vector<16x1024xf32>
    %11 = tpu.matmul %8, %10, %cst_13 {dimension_numbers = #tpu.dot_dimension_numbers<[1], [0], [0], [1], [0, 0, 1, 1], [], []>} : vector<16x128xbf16>, vector<128x1024xbf16>, vector<16x1024xf32> -> vector<16x1024xf32>
    %12 = arith.addf %6, %11 : vector<16x1024xf32>
    %c0_14 = arith.constant 0 : index
    %c0_15 = arith.constant 0 : index
    %c1_16 = arith.constant 1 : index
    %c0_17 = arith.constant 0 : index
    %13 = vector.load %arg1[%c0_14, %c0_15, %c1_16, %c0_17] : memref<1x2x19x128xbf16, #tpu.memory_space<vmem>>, vector<1x1x16x128xbf16>
    %14 = vector.shape_cast %13 : vector<1x1x16x128xbf16> to vector<16x128xbf16>
    %c2 = arith.constant 2 : index
    %c0_18 = arith.constant 0 : index
    %c0_19 = arith.constant 0 : index
    %15 = vector.load %arg2[%c2, %c0_18, %c0_19] : memref<7x128x1024xbf16, #tpu.memory_space<vmem>>, vector<1x128x1024xbf16>
    %16 = vector.shape_cast %15 : vector<1x128x1024xbf16> to vector<128x1024xbf16>
    %cst_20 = arith.constant dense<0.000000e+00> : vector<16x1024xf32>
    %17 = tpu.matmul %14, %16, %cst_20 {dimension_numbers = #tpu.dot_dimension_numbers<[1], [0], [0], [1], [0, 0, 1, 1], [], []>} : vector<16x128xbf16>, vector<128x1024xbf16>, vector<16x1024xf32> -> vector<16x1024xf32>
    %18 = arith.addf %12, %17 : vector<16x1024xf32>
    %c0_21 = arith.constant 0 : index
    %c1_22 = arith.constant 1 : index
    %c1_23 = arith.constant 1 : index
    %c0_24 = arith.constant 0 : index
    %19 = vector.load %arg1[%c0_21, %c1_22, %c1_23, %c0_24] : memref<1x2x19x128xbf16, #tpu.memory_space<vmem>>, vector<1x1x16x128xbf16>
    %20 = vector.shape_cast %19 : vector<1x1x16x128xbf16> to vector<16x128xbf16>
    %c3 = arith.constant 3 : index
    %c0_25 = arith.constant 0 : index
    %c0_26 = arith.constant 0 : index
    %21 = vector.load %arg2[%c3, %c0_25, %c0_26] : memref<7x128x1024xbf16, #tpu.memory_space<vmem>>, vector<1x128x1024xbf16>
    %22 = vector.shape_cast %21 : vector<1x128x1024xbf16> to vector<128x1024xbf16>
    %cst_27 = arith.constant dense<0.000000e+00> : vector<16x1024xf32>
    %23 = tpu.matmul %20, %22, %cst_27 {dimension_numbers = #tpu.dot_dimension_numbers<[1], [0], [0], [1], [0, 0, 1, 1], [], []>} : vector<16x128xbf16>, vector<128x1024xbf16>, vector<16x1024xf32> -> vector<16x1024xf32>
    %24 = arith.addf %18, %23 : vector<16x1024xf32>
    %c0_28 = arith.constant 0 : index
    %c0_29 = arith.constant 0 : index
    %c2_30 = arith.constant 2 : index
    %c0_31 = arith.constant 0 : index
    %25 = vector.load %arg1[%c0_28, %c0_29, %c2_30, %c0_31] : memref<1x2x19x128xbf16, #tpu.memory_space<vmem>>, vector<1x1x16x128xbf16>
    %26 = vector.shape_cast %25 : vector<1x1x16x128xbf16> to vector<16x128xbf16>
    %c4 = arith.constant 4 : index
    %c0_32 = arith.constant 0 : index
    %c0_33 = arith.constant 0 : index
    %27 = vector.load %arg2[%c4, %c0_32, %c0_33] : memref<7x128x1024xbf16, #tpu.memory_space<vmem>>, vector<1x128x1024xbf16>
    %28 = vector.shape_cast %27 : vector<1x128x1024xbf16> to vector<128x1024xbf16>
    %cst_34 = arith.constant dense<0.000000e+00> : vector<16x1024xf32>
    %29 = tpu.matmul %26, %28, %cst_34 {dimension_numbers = #tpu.dot_dimension_numbers<[1], [0], [0], [1], [0, 0, 1, 1], [], []>} : vector<16x128xbf16>, vector<128x1024xbf16>, vector<16x1024xf32> -> vector<16x1024xf32>
    %30 = arith.addf %24, %29 : vector<16x1024xf32>
    %c0_35 = arith.constant 0 : index
    %c1_36 = arith.constant 1 : index
    %c2_37 = arith.constant 2 : index
    %c0_38 = arith.constant 0 : index
    %31 = vector.load %arg1[%c0_35, %c1_36, %c2_37, %c0_38] : memref<1x2x19x128xbf16, #tpu.memory_space<vmem>>, vector<1x1x16x128xbf16>
    %32 = vector.shape_cast %31 : vector<1x1x16x128xbf16> to vector<16x128xbf16>
    %c5 = arith.constant 5 : index
    %c0_39 = arith.constant 0 : index
    %c0_40 = arith.constant 0 : index
    %33 = vector.load %arg2[%c5, %c0_39, %c0_40] : memref<7x128x1024xbf16, #tpu.memory_space<vmem>>, vector<1x128x1024xbf16>
    %34 = vector.shape_cast %33 : vector<1x128x1024xbf16> to vector<128x1024xbf16>
    %cst_41 = arith.constant dense<0.000000e+00> : vector<16x1024xf32>
    %35 = tpu.matmul %32, %34, %cst_41 {dimension_numbers = #tpu.dot_dimension_numbers<[1], [0], [0], [1], [0, 0, 1, 1], [], []>} : vector<16x128xbf16>, vector<128x1024xbf16>, vector<16x1024xf32> -> vector<16x1024xf32>
    %36 = arith.addf %30, %35 : vector<16x1024xf32>
    %c0_42 = arith.constant 0 : index
    %c0_43 = arith.constant 0 : index
    %c3_44 = arith.constant 3 : index
    %c0_45 = arith.constant 0 : index
    %37 = vector.load %arg1[%c0_42, %c0_43, %c3_44, %c0_45] : memref<1x2x19x128xbf16, #tpu.memory_space<vmem>>, vector<1x1x16x128xbf16>
    %38 = vector.shape_cast %37 : vector<1x1x16x128xbf16> to vector<16x128xbf16>
    %c6 = arith.constant 6 : index
    %c0_46 = arith.constant 0 : index
    %c0_47 = arith.constant 0 : index
    %39 = vector.load %arg2[%c6, %c0_46, %c0_47] : memref<7x128x1024xbf16, #tpu.memory_space<vmem>>, vector<1x128x1024xbf16>
    %40 = vector.shape_cast %39 : vector<1x128x1024xbf16> to vector<128x1024xbf16>
    %cst_48 = arith.constant dense<0.000000e+00> : vector<16x1024xf32>
    %41 = tpu.matmul %38, %40, %cst_48 {dimension_numbers = #tpu.dot_dimension_numbers<[1], [0], [0], [1], [0, 0, 1, 1], [], []>} : vector<16x128xbf16>, vector<128x1024xbf16>, vector<16x1024xf32> -> vector<16x1024xf32>
    %42 = arith.addf %36, %41 : vector<16x1024xf32>
    %c0_49 = arith.constant 0 : index
    %c0_50 = arith.constant 0 : index
    %43 = vector.load %arg3[%c0_49, %c0_50] : memref<1x1024xf32, #tpu.memory_space<vmem>>, vector<1x1024xf32>
    %44 = vector.broadcast %43 : vector<1x1024xf32> to vector<16x1024xf32>
    %45 = arith.addf %42, %44 : vector<16x1024xf32>
    %cst_51 = arith.constant 0.000000e+00 : f32
    %46 = vector.broadcast %cst_51 : f32 to vector<16x1024xf32>
    %47 = arith.maximumf %45, %46 : vector<16x1024xf32>
    %48 = vector.extract_strided_slice %47 {offsets = [0, 0], sizes = [6, 1024], strides = [1, 1]} : vector<16x1024xf32> to vector<6x1024xf32>
    %cst_52 = arith.constant dense<0xFF800000> : vector<1024xf32>
    %49 = vector.multi_reduction <maximumf>, %48, %cst_52 [0] : vector<6x1024xf32> to vector<1024xf32>
    %50 = vector.shape_cast %49 : vector<1024xf32> to vector<1x1024xf32>
    %51 = vector.extract_strided_slice %50 {offsets = [0, 0], sizes = [1, 64], strides = [1, 1]} : vector<1x1024xf32> to vector<1x64xf32>
    %52 = vector.extract_strided_slice %50 {offsets = [0, 64], sizes = [1, 64], strides = [1, 1]} : vector<1x1024xf32> to vector<1x64xf32>
    %53 = arith.maximumf %51, %52 : vector<1x64xf32>
    %54 = vector.extract_strided_slice %50 {offsets = [0, 128], sizes = [1, 64], strides = [1, 1]} : vector<1x1024xf32> to vector<1x64xf32>
    %55 = arith.maximumf %53, %54 : vector<1x64xf32>
    %56 = vector.extract_strided_slice %50 {offsets = [0, 192], sizes = [1, 64], strides = [1, 1]} : vector<1x1024xf32> to vector<1x64xf32>
    %57 = arith.maximumf %55, %56 : vector<1x64xf32>
    %58 = vector.extract_strided_slice %50 {offsets = [0, 256], sizes = [1, 64], strides = [1, 1]} : vector<1x1024xf32> to vector<1x64xf32>
    %59 = arith.maximumf %57, %58 : vector<1x64xf32>
    %60 = vector.extract_strided_slice %50 {offsets = [0, 320], sizes = [1, 64], strides = [1, 1]} : vector<1x1024xf32> to vector<1x64xf32>
    %61 = arith.maximumf %59, %60 : vector<1x64xf32>
    %62 = vector.extract_strided_slice %50 {offsets = [0, 0], sizes = [1, 64], strides = [1, 1]} : vector<1x1024xf32> to vector<1x64xf32>
    %63 = vector.extract_strided_slice %50 {offsets = [0, 64], sizes = [1, 64], strides = [1, 1]} : vector<1x1024xf32> to vector<1x64xf32>
    %64 = arith.maximumf %62, %63 : vector<1x64xf32>
    %65 = vector.extract_strided_slice %50 {offsets = [0, 128], sizes = [1, 64], strides = [1, 1]} : vector<1x1024xf32> to vector<1x64xf32>
    %66 = arith.maximumf %64, %65 : vector<1x64xf32>
    %67 = vector.extract_strided_slice %50 {offsets = [0, 192], sizes = [1, 64], strides = [1, 1]} : vector<1x1024xf32> to vector<1x64xf32>
    %68 = arith.maximumf %66, %67 : vector<1x64xf32>
    %69 = vector.extract_strided_slice %50 {offsets = [0, 256], sizes = [1, 64], strides = [1, 1]} : vector<1x1024xf32> to vector<1x64xf32>
    %70 = arith.maximumf %68, %69 : vector<1x64xf32>
    %71 = vector.extract_strided_slice %50 {offsets = [0, 320], sizes = [1, 64], strides = [1, 1]} : vector<1x1024xf32> to vector<1x64xf32>
    %72 = arith.maximumf %70, %71 : vector<1x64xf32>
    %73 = vector.extract_strided_slice %50 {offsets = [0, 384], sizes = [1, 64], strides = [1, 1]} : vector<1x1024xf32> to vector<1x64xf32>
    %74 = arith.maximumf %72, %73 : vector<1x64xf32>
    %75 = vector.extract_strided_slice %50 {offsets = [0, 448], sizes = [1, 64], strides = [1, 1]} : vector<1x1024xf32> to vector<1x64xf32>
    %76 = arith.maximumf %74, %75 : vector<1x64xf32>
    %77 = vector.extract_strided_slice %50 {offsets = [0, 512], sizes = [1, 64], strides = [1, 1]} : vector<1x1024xf32> to vector<1x64xf32>
    %78 = arith.maximumf %76, %77 : vector<1x64xf32>
    %79 = vector.extract_strided_slice %50 {offsets = [0, 576], sizes = [1, 64], strides = [1, 1]} : vector<1x1024xf32> to vector<1x64xf32>
    %80 = arith.maximumf %78, %79 : vector<1x64xf32>
    %81 = vector.extract_strided_slice %50 {offsets = [0, 192], sizes = [1, 64], strides = [1, 1]} : vector<1x1024xf32> to vector<1x64xf32>
    %82 = vector.extract_strided_slice %50 {offsets = [0, 256], sizes = [1, 64], strides = [1, 1]} : vector<1x1024xf32> to vector<1x64xf32>
    %83 = arith.maximumf %81, %82 : vector<1x64xf32>
    %84 = vector.extract_strided_slice %50 {offsets = [0, 320], sizes = [1, 64], strides = [1, 1]} : vector<1x1024xf32> to vector<1x64xf32>
    %85 = arith.maximumf %83, %84 : vector<1x64xf32>
    %86 = vector.extract_strided_slice %50 {offsets = [0, 384], sizes = [1, 64], strides = [1, 1]} : vector<1x1024xf32> to vector<1x64xf32>
    %87 = arith.maximumf %85, %86 : vector<1x64xf32>
    %88 = vector.extract_strided_slice %50 {offsets = [0, 448], sizes = [1, 64], strides = [1, 1]} : vector<1x1024xf32> to vector<1x64xf32>
    %89 = arith.maximumf %87, %88 : vector<1x64xf32>
    %90 = vector.extract_strided_slice %50 {offsets = [0, 512], sizes = [1, 64], strides = [1, 1]} : vector<1x1024xf32> to vector<1x64xf32>
    %91 = arith.maximumf %89, %90 : vector<1x64xf32>
    %92 = vector.extract_strided_slice %50 {offsets = [0, 576], sizes = [1, 64], strides = [1, 1]} : vector<1x1024xf32> to vector<1x64xf32>
    %93 = arith.maximumf %91, %92 : vector<1x64xf32>
    %94 = vector.extract_strided_slice %50 {offsets = [0, 640], sizes = [1, 64], strides = [1, 1]} : vector<1x1024xf32> to vector<1x64xf32>
    %95 = arith.maximumf %93, %94 : vector<1x64xf32>
    %96 = vector.extract_strided_slice %50 {offsets = [0, 704], sizes = [1, 64], strides = [1, 1]} : vector<1x1024xf32> to vector<1x64xf32>
    %97 = arith.maximumf %95, %96 : vector<1x64xf32>
    %98 = vector.extract_strided_slice %50 {offsets = [0, 768], sizes = [1, 64], strides = [1, 1]} : vector<1x1024xf32> to vector<1x64xf32>
    %99 = arith.maximumf %97, %98 : vector<1x64xf32>
    %100 = vector.extract_strided_slice %50 {offsets = [0, 832], sizes = [1, 64], strides = [1, 1]} : vector<1x1024xf32> to vector<1x64xf32>
    %101 = arith.maximumf %99, %100 : vector<1x64xf32>
    %102 = vector.extract_strided_slice %50 {offsets = [0, 448], sizes = [1, 64], strides = [1, 1]} : vector<1x1024xf32> to vector<1x64xf32>
    %103 = vector.extract_strided_slice %50 {offsets = [0, 512], sizes = [1, 64], strides = [1, 1]} : vector<1x1024xf32> to vector<1x64xf32>
    %104 = arith.maximumf %102, %103 : vector<1x64xf32>
    %105 = vector.extract_strided_slice %50 {offsets = [0, 576], sizes = [1, 64], strides = [1, 1]} : vector<1x1024xf32> to vector<1x64xf32>
    %106 = arith.maximumf %104, %105 : vector<1x64xf32>
    %107 = vector.extract_strided_slice %50 {offsets = [0, 640], sizes = [1, 64], strides = [1, 1]} : vector<1x1024xf32> to vector<1x64xf32>
    %108 = arith.maximumf %106, %107 : vector<1x64xf32>
    %109 = vector.extract_strided_slice %50 {offsets = [0, 704], sizes = [1, 64], strides = [1, 1]} : vector<1x1024xf32> to vector<1x64xf32>
    %110 = arith.maximumf %108, %109 : vector<1x64xf32>
    %111 = vector.extract_strided_slice %50 {offsets = [0, 768], sizes = [1, 64], strides = [1, 1]} : vector<1x1024xf32> to vector<1x64xf32>
    %112 = arith.maximumf %110, %111 : vector<1x64xf32>
    %113 = vector.extract_strided_slice %50 {offsets = [0, 832], sizes = [1, 64], strides = [1, 1]} : vector<1x1024xf32> to vector<1x64xf32>
    %114 = arith.maximumf %112, %113 : vector<1x64xf32>
    %115 = vector.extract_strided_slice %50 {offsets = [0, 896], sizes = [1, 64], strides = [1, 1]} : vector<1x1024xf32> to vector<1x64xf32>
    %116 = arith.maximumf %114, %115 : vector<1x64xf32>
    %117 = vector.extract_strided_slice %50 {offsets = [0, 960], sizes = [1, 64], strides = [1, 1]} : vector<1x1024xf32> to vector<1x64xf32>
    %118 = arith.maximumf %116, %117 : vector<1x64xf32>
    %119 = tpu.concatenate %61, %80, %101, %118 in 1 : vector<1x64xf32>, vector<1x64xf32>, vector<1x64xf32>, vector<1x64xf32> -> vector<1x256xf32>
    %c0_53 = arith.constant 0 : index
    %c0_54 = arith.constant 0 : index
    %c0_55 = arith.constant 0 : index
    %120 = vector.load %arg4[%c0_53, %c0_54, %c0_55] : memref<1x4x256xf32, #tpu.memory_space<vmem>>, vector<1x1x256xf32>
    %121 = vector.shape_cast %120 : vector<1x1x256xf32> to vector<1x256xf32>
    %122 = vector.shape_cast %119 : vector<1x256xf32> to vector<1x1x256xf32>
    tpu.vector_store %arg4[%c0_53, %c0_54, %c0_55], %122 {strides = array<i32>} : memref<1x4x256xf32, #tpu.memory_space<vmem>>, vector<1x1x256xf32>,
    %123 = vector.extract_strided_slice %47 {offsets = [0, 0], sizes = [10, 1024], strides = [1, 1]} : vector<16x1024xf32> to vector<10x1024xf32>
    %cst_56 = arith.constant dense<0xFF800000> : vector<1024xf32>
    %124 = vector.multi_reduction <maximumf>, %123, %cst_56 [0] : vector<10x1024xf32> to vector<1024xf32>
    %125 = vector.shape_cast %124 : vector<1024xf32> to vector<1x1024xf32>
    %126 = vector.extract_strided_slice %125 {offsets = [0, 0], sizes = [1, 64], strides = [1, 1]} : vector<1x1024xf32> to vector<1x64xf32>
    %127 = vector.extract_strided_slice %125 {offsets = [0, 64], sizes = [1, 64], strides = [1, 1]} : vector<1x1024xf32> to vector<1x64xf32>
    %128 = arith.maximumf %126, %127 : vector<1x64xf32>
    %129 = vector.extract_strided_slice %125 {offsets = [0, 128], sizes = [1, 64], strides = [1, 1]} : vector<1x1024xf32> to vector<1x64xf32>
    %130 = arith.maximumf %128, %129 : vector<1x64xf32>
    %131 = vector.extract_strided_slice %125 {offsets = [0, 192], sizes = [1, 64], strides = [1, 1]} : vector<1x1024xf32> to vector<1x64xf32>
    %132 = arith.maximumf %130, %131 : vector<1x64xf32>
    %133 = vector.extract_strided_slice %125 {offsets = [0, 256], sizes = [1, 64], strides = [1, 1]} : vector<1x1024xf32> to vector<1x64xf32>
    %134 = arith.maximumf %132, %133 : vector<1x64xf32>
    %135 = vector.extract_strided_slice %125 {offsets = [0, 320], sizes = [1, 64], strides = [1, 1]} : vector<1x1024xf32> to vector<1x64xf32>
    %136 = arith.maximumf %134, %135 : vector<1x64xf32>
    %137 = vector.extract_strided_slice %125 {offsets = [0, 0], sizes = [1, 64], strides = [1, 1]} : vector<1x1024xf32> to vector<1x64xf32>
    %138 = vector.extract_strided_slice %125 {offsets = [0, 64], sizes = [1, 64], strides = [1, 1]} : vector<1x1024xf32> to vector<1x64xf32>
    %139 = arith.maximumf %137, %138 : vector<1x64xf32>
    %140 = vector.extract_strided_slice %125 {offsets = [0, 128], sizes = [1, 64], strides = [1, 1]} : vector<1x1024xf32> to vector<1x64xf32>
    %141 = arith.maximumf %139, %140 : vector<1x64xf32>
    %142 = vector.extract_strided_slice %125 {offsets = [0, 192], sizes = [1, 64], strides = [1, 1]} : vector<1x1024xf32> to vector<1x64xf32>
    %143 = arith.maximumf %141, %142 : vector<1x64xf32>
    %144 = vector.extract_strided_slice %125 {offsets = [0, 256], sizes = [1, 64], strides = [1, 1]} : vector<1x1024xf32> to vector<1x64xf32>
    %145 = arith.maximumf %143, %144 : vector<1x64xf32>
    %146 = vector.extract_strided_slice %125 {offsets = [0, 320], sizes = [1, 64], strides = [1, 1]} : vector<1x1024xf32> to vector<1x64xf32>
    %147 = arith.maximumf %145, %146 : vector<1x64xf32>
    %148 = vector.extract_strided_slice %125 {offsets = [0, 384], sizes = [1, 64], strides = [1, 1]} : vector<1x1024xf32> to vector<1x64xf32>
    %149 = arith.maximumf %147, %148 : vector<1x64xf32>
    %150 = vector.extract_strided_slice %125 {offsets = [0, 448], sizes = [1, 64], strides = [1, 1]} : vector<1x1024xf32> to vector<1x64xf32>
    %151 = arith.maximumf %149, %150 : vector<1x64xf32>
    %152 = vector.extract_strided_slice %125 {offsets = [0, 512], sizes = [1, 64], strides = [1, 1]} : vector<1x1024xf32> to vector<1x64xf32>
    %153 = arith.maximumf %151, %152 : vector<1x64xf32>
    %154 = vector.extract_strided_slice %125 {offsets = [0, 576], sizes = [1, 64], strides = [1, 1]} : vector<1x1024xf32> to vector<1x64xf32>
    %155 = arith.maximumf %153, %154 : vector<1x64xf32>
    %156 = vector.extract_strided_slice %125 {offsets = [0, 192], sizes = [1, 64], strides = [1, 1]} : vector<1x1024xf32> to vector<1x64xf32>
    %157 = vector.extract_strided_slice %125 {offsets = [0, 256], sizes = [1, 64], strides = [1, 1]} : vector<1x1024xf32> to vector<1x64xf32>
    %158 = arith.maximumf %156, %157 : vector<1x64xf32>
    %159 = vector.extract_strided_slice %125 {offsets = [0, 320], sizes = [1, 64], strides = [1, 1]} : vector<1x1024xf32> to vector<1x64xf32>
    %160 = arith.maximumf %158, %159 : vector<1x64xf32>
    %161 = vector.extract_strided_slice %125 {offsets = [0, 384], sizes = [1, 64], strides = [1, 1]} : vector<1x1024xf32> to vector<1x64xf32>
    %162 = arith.maximumf %160, %161 : vector<1x64xf32>
    %163 = vector.extract_strided_slice %125 {offsets = [0, 448], sizes = [1, 64], strides = [1, 1]} : vector<1x1024xf32> to vector<1x64xf32>
    %164 = arith.maximumf %162, %163 : vector<1x64xf32>
    %165 = vector.extract_strided_slice %125 {offsets = [0, 512], sizes = [1, 64], strides = [1, 1]} : vector<1x1024xf32> to vector<1x64xf32>
    %166 = arith.maximumf %164, %165 : vector<1x64xf32>
    %167 = vector.extract_strided_slice %125 {offsets = [0, 576], sizes = [1, 64], strides = [1, 1]} : vector<1x1024xf32> to vector<1x64xf32>
    %168 = arith.maximumf %166, %167 : vector<1x64xf32>
    %169 = vector.extract_strided_slice %125 {offsets = [0, 640], sizes = [1, 64], strides = [1, 1]} : vector<1x1024xf32> to vector<1x64xf32>
    %170 = arith.maximumf %168, %169 : vector<1x64xf32>
    %171 = vector.extract_strided_slice %125 {offsets = [0, 704], sizes = [1, 64], strides = [1, 1]} : vector<1x1024xf32> to vector<1x64xf32>
    %172 = arith.maximumf %170, %171 : vector<1x64xf32>
    %173 = vector.extract_strided_slice %125 {offsets = [0, 768], sizes = [1, 64], strides = [1, 1]} : vector<1x1024xf32> to vector<1x64xf32>
    %174 = arith.maximumf %172, %173 : vector<1x64xf32>
    %175 = vector.extract_strided_slice %125 {offsets = [0, 832], sizes = [1, 64], strides = [1, 1]} : vector<1x1024xf32> to vector<1x64xf32>
    %176 = arith.maximumf %174, %175 : vector<1x64xf32>
    %177 = vector.extract_strided_slice %125 {offsets = [0, 448], sizes = [1, 64], strides = [1, 1]} : vector<1x1024xf32> to vector<1x64xf32>
    %178 = vector.extract_strided_slice %125 {offsets = [0, 512], sizes = [1, 64], strides = [1, 1]} : vector<1x1024xf32> to vector<1x64xf32>
    %179 = arith.maximumf %177, %178 : vector<1x64xf32>
    %180 = vector.extract_strided_slice %125 {offsets = [0, 576], sizes = [1, 64], strides = [1, 1]} : vector<1x1024xf32> to vector<1x64xf32>
    %181 = arith.maximumf %179, %180 : vector<1x64xf32>
    %182 = vector.extract_strided_slice %125 {offsets = [0, 640], sizes = [1, 64], strides = [1, 1]} : vector<1x1024xf32> to vector<1x64xf32>
    %183 = arith.maximumf %181, %182 : vector<1x64xf32>
    %184 = vector.extract_strided_slice %125 {offsets = [0, 704], sizes = [1, 64], strides = [1, 1]} : vector<1x1024xf32> to vector<1x64xf32>
    %185 = arith.maximumf %183, %184 : vector<1x64xf32>
    %186 = vector.extract_strided_slice %125 {offsets = [0, 768], sizes = [1, 64], strides = [1, 1]} : vector<1x1024xf32> to vector<1x64xf32>
    %187 = arith.maximumf %185, %186 : vector<1x64xf32>
    %188 = vector.extract_strided_slice %125 {offsets = [0, 832], sizes = [1, 64], strides = [1, 1]} : vector<1x1024xf32> to vector<1x64xf32>
    %189 = arith.maximumf %187, %188 : vector<1x64xf32>
    %190 = vector.extract_strided_slice %125 {offsets = [0, 896], sizes = [1, 64], strides = [1, 1]} : vector<1x1024xf32> to vector<1x64xf32>
    %191 = arith.maximumf %189, %190 : vector<1x64xf32>
    %192 = vector.extract_strided_slice %125 {offsets = [0, 960], sizes = [1, 64], strides = [1, 1]} : vector<1x1024xf32> to vector<1x64xf32>
    %193 = arith.maximumf %191, %192 : vector<1x64xf32>
    %194 = tpu.concatenate %136, %155, %176, %193 in 1 : vector<1x64xf32>, vector<1x64xf32>, vector<1x64xf32>, vector<1x64xf32> -> vector<1x256xf32>
    %c0_57 = arith.constant 0 : index
    %c1_58 = arith.constant 1 : index
    %c0_59 = arith.constant 0 : index
    %195 = vector.load %arg4[%c0_57, %c1_58, %c0_59] : memref<1x4x256xf32, #tpu.memory_space<vmem>>, vector<1x1x256xf32>
    %196 = vector.shape_cast %195 : vector<1x1x256xf32> to vector<1x256xf32>
    %197 = vector.shape_cast %194 : vector<1x256xf32> to vector<1x1x256xf32>
    tpu.vector_store %arg4[%c0_57, %c1_58, %c0_59], %197 {strides = array<i32>} : memref<1x4x256xf32, #tpu.memory_space<vmem>>, vector<1x1x256xf32>,
    %198 = vector.extract_strided_slice %47 {offsets = [3, 0], sizes = [11, 1024], strides = [1, 1]} : vector<16x1024xf32> to vector<11x1024xf32>
    %cst_60 = arith.constant dense<0xFF800000> : vector<1024xf32>
    %199 = vector.multi_reduction <maximumf>, %198, %cst_60 [0] : vector<11x1024xf32> to vector<1024xf32>
    %200 = vector.shape_cast %199 : vector<1024xf32> to vector<1x1024xf32>
    %201 = vector.extract_strided_slice %200 {offsets = [0, 0], sizes = [1, 64], strides = [1, 1]} : vector<1x1024xf32> to vector<1x64xf32>
    %202 = vector.extract_strided_slice %200 {offsets = [0, 64], sizes = [1, 64], strides = [1, 1]} : vector<1x1024xf32> to vector<1x64xf32>
    %203 = arith.maximumf %201, %202 : vector<1x64xf32>
    %204 = vector.extract_strided_slice %200 {offsets = [0, 128], sizes = [1, 64], strides = [1, 1]} : vector<1x1024xf32> to vector<1x64xf32>
    %205 = arith.maximumf %203, %204 : vector<1x64xf32>
    %206 = vector.extract_strided_slice %200 {offsets = [0, 192], sizes = [1, 64], strides = [1, 1]} : vector<1x1024xf32> to vector<1x64xf32>
    %207 = arith.maximumf %205, %206 : vector<1x64xf32>
    %208 = vector.extract_strided_slice %200 {offsets = [0, 256], sizes = [1, 64], strides = [1, 1]} : vector<1x1024xf32> to vector<1x64xf32>
    %209 = arith.maximumf %207, %208 : vector<1x64xf32>
    %210 = vector.extract_strided_slice %200 {offsets = [0, 320], sizes = [1, 64], strides = [1, 1]} : vector<1x1024xf32> to vector<1x64xf32>
    %211 = arith.maximumf %209, %210 : vector<1x64xf32>
    %212 = vector.extract_strided_slice %200 {offsets = [0, 0], sizes = [1, 64], strides = [1, 1]} : vector<1x1024xf32> to vector<1x64xf32>
    %213 = vector.extract_strided_slice %200 {offsets = [0, 64], sizes = [1, 64], strides = [1, 1]} : vector<1x1024xf32> to vector<1x64xf32>
    %214 = arith.maximumf %212, %213 : vector<1x64xf32>
    %215 = vector.extract_strided_slice %200 {offsets = [0, 128], sizes = [1, 64], strides = [1, 1]} : vector<1x1024xf32> to vector<1x64xf32>
    %216 = arith.maximumf %214, %215 : vector<1x64xf32>
    %217 = vector.extract_strided_slice %200 {offsets = [0, 192], sizes = [1, 64], strides = [1, 1]} : vector<1x1024xf32> to vector<1x64xf32>
    %218 = arith.maximumf %216, %217 : vector<1x64xf32>
    %219 = vector.extract_strided_slice %200 {offsets = [0, 256], sizes = [1, 64], strides = [1, 1]} : vector<1x1024xf32> to vector<1x64xf32>
    %220 = arith.maximumf %218, %219 : vector<1x64xf32>
    %221 = vector.extract_strided_slice %200 {offsets = [0, 320], sizes = [1, 64], strides = [1, 1]} : vector<1x1024xf32> to vector<1x64xf32>
    %222 = arith.maximumf %220, %221 : vector<1x64xf32>
    %223 = vector.extract_strided_slice %200 {offsets = [0, 384], sizes = [1, 64], strides = [1, 1]} : vector<1x1024xf32> to vector<1x64xf32>
    %224 = arith.maximumf %222, %223 : vector<1x64xf32>
    %225 = vector.extract_strided_slice %200 {offsets = [0, 448], sizes = [1, 64], strides = [1, 1]} : vector<1x1024xf32> to vector<1x64xf32>
    %226 = arith.maximumf %224, %225 : vector<1x64xf32>
    %227 = vector.extract_strided_slice %200 {offsets = [0, 512], sizes = [1, 64], strides = [1, 1]} : vector<1x1024xf32> to vector<1x64xf32>
    %228 = arith.maximumf %226, %227 : vector<1x64xf32>
    %229 = vector.extract_strided_slice %200 {offsets = [0, 576], sizes = [1, 64], strides = [1, 1]} : vector<1x1024xf32> to vector<1x64xf32>
    %230 = arith.maximumf %228, %229 : vector<1x64xf32>
    %231 = vector.extract_strided_slice %200 {offsets = [0, 192], sizes = [1, 64], strides = [1, 1]} : vector<1x1024xf32> to vector<1x64xf32>
    %232 = vector.extract_strided_slice %200 {offsets = [0, 256], sizes = [1, 64], strides = [1, 1]} : vector<1x1024xf32> to vector<1x64xf32>
    %233 = arith.maximumf %231, %232 : vector<1x64xf32>
    %234 = vector.extract_strided_slice %200 {offsets = [0, 320], sizes = [1, 64], strides = [1, 1]} : vector<1x1024xf32> to vector<1x64xf32>
    %235 = arith.maximumf %233, %234 : vector<1x64xf32>
    %236 = vector.extract_strided_slice %200 {offsets = [0, 384], sizes = [1, 64], strides = [1, 1]} : vector<1x1024xf32> to vector<1x64xf32>
    %237 = arith.maximumf %235, %236 : vector<1x64xf32>
    %238 = vector.extract_strided_slice %200 {offsets = [0, 448], sizes = [1, 64], strides = [1, 1]} : vector<1x1024xf32> to vector<1x64xf32>
    %239 = arith.maximumf %237, %238 : vector<1x64xf32>
    %240 = vector.extract_strided_slice %200 {offsets = [0, 512], sizes = [1, 64], strides = [1, 1]} : vector<1x1024xf32> to vector<1x64xf32>
    %241 = arith.maximumf %239, %240 : vector<1x64xf32>
    %242 = vector.extract_strided_slice %200 {offsets = [0, 576], sizes = [1, 64], strides = [1, 1]} : vector<1x1024xf32> to vector<1x64xf32>
    %243 = arith.maximumf %241, %242 : vector<1x64xf32>
    %244 = vector.extract_strided_slice %200 {offsets = [0, 640], sizes = [1, 64], strides = [1, 1]} : vector<1x1024xf32> to vector<1x64xf32>
    %245 = arith.maximumf %243, %244 : vector<1x64xf32>
    %246 = vector.extract_strided_slice %200 {offsets = [0, 704], sizes = [1, 64], strides = [1, 1]} : vector<1x1024xf32> to vector<1x64xf32>
    %247 = arith.maximumf %245, %246 : vector<1x64xf32>
    %248 = vector.extract_strided_slice %200 {offsets = [0, 768], sizes = [1, 64], strides = [1, 1]} : vector<1x1024xf32> to vector<1x64xf32>
    %249 = arith.maximumf %247, %248 : vector<1x64xf32>
    %250 = vector.extract_strided_slice %200 {offsets = [0, 832], sizes = [1, 64], strides = [1, 1]} : vector<1x1024xf32> to vector<1x64xf32>
    %251 = arith.maximumf %249, %250 : vector<1x64xf32>
    %252 = vector.extract_strided_slice %200 {offsets = [0, 448], sizes = [1, 64], strides = [1, 1]} : vector<1x1024xf32> to vector<1x64xf32>
    %253 = vector.extract_strided_slice %200 {offsets = [0, 512], sizes = [1, 64], strides = [1, 1]} : vector<1x1024xf32> to vector<1x64xf32>
    %254 = arith.maximumf %252, %253 : vector<1x64xf32>
    %255 = vector.extract_strided_slice %200 {offsets = [0, 576], sizes = [1, 64], strides = [1, 1]} : vector<1x1024xf32> to vector<1x64xf32>
    %256 = arith.maximumf %254, %255 : vector<1x64xf32>
    %257 = vector.extract_strided_slice %200 {offsets = [0, 640], sizes = [1, 64], strides = [1, 1]} : vector<1x1024xf32> to vector<1x64xf32>
    %258 = arith.maximumf %256, %257 : vector<1x64xf32>
    %259 = vector.extract_strided_slice %200 {offsets = [0, 704], sizes = [1, 64], strides = [1, 1]} : vector<1x1024xf32> to vector<1x64xf32>
    %260 = arith.maximumf %258, %259 : vector<1x64xf32>
    %261 = vector.extract_strided_slice %200 {offsets = [0, 768], sizes = [1, 64], strides = [1, 1]} : vector<1x1024xf32> to vector<1x64xf32>
    %262 = arith.maximumf %260, %261 : vector<1x64xf32>
    %263 = vector.extract_strided_slice %200 {offsets = [0, 832], sizes = [1, 64], strides = [1, 1]} : vector<1x1024xf32> to vector<1x64xf32>
    %264 = arith.maximumf %262, %263 : vector<1x64xf32>
    %265 = vector.extract_strided_slice %200 {offsets = [0, 896], sizes = [1, 64], strides = [1, 1]} : vector<1x1024xf32> to vector<1x64xf32>
    %266 = arith.maximumf %264, %265 : vector<1x64xf32>
    %267 = vector.extract_strided_slice %200 {offsets = [0, 960], sizes = [1, 64], strides = [1, 1]} : vector<1x1024xf32> to vector<1x64xf32>
    %268 = arith.maximumf %266, %267 : vector<1x64xf32>
    %269 = tpu.concatenate %211, %230, %251, %268 in 1 : vector<1x64xf32>, vector<1x64xf32>, vector<1x64xf32>, vector<1x64xf32> -> vector<1x256xf32>
    %c0_61 = arith.constant 0 : index
    %c2_62 = arith.constant 2 : index
    %c0_63 = arith.constant 0 : index
    %270 = vector.load %arg4[%c0_61, %c2_62, %c0_63] : memref<1x4x256xf32, #tpu.memory_space<vmem>>, vector<1x1x256xf32>
    %271 = vector.shape_cast %270 : vector<1x1x256xf32> to vector<1x256xf32>
    %272 = vector.shape_cast %269 : vector<1x256xf32> to vector<1x1x256xf32>
    tpu.vector_store %arg4[%c0_61, %c2_62, %c0_63], %272 {strides = array<i32>} : memref<1x4x256xf32, #tpu.memory_space<vmem>>, vector<1x1x256xf32>,
    %273 = vector.extract_strided_slice %47 {offsets = [7, 0], sizes = [9, 1024], strides = [1, 1]} : vector<16x1024xf32> to vector<9x1024xf32>
    %cst_64 = arith.constant dense<0xFF800000> : vector<1024xf32>
    %274 = vector.multi_reduction <maximumf>, %273, %cst_64 [0] : vector<9x1024xf32> to vector<1024xf32>
    %275 = vector.shape_cast %274 : vector<1024xf32> to vector<1x1024xf32>
    %276 = vector.extract_strided_slice %275 {offsets = [0, 0], sizes = [1, 64], strides = [1, 1]} : vector<1x1024xf32> to vector<1x64xf32>
    %277 = vector.extract_strided_slice %275 {offsets = [0, 64], sizes = [1, 64], strides = [1, 1]} : vector<1x1024xf32> to vector<1x64xf32>
    %278 = arith.maximumf %276, %277 : vector<1x64xf32>
    %279 = vector.extract_strided_slice %275 {offsets = [0, 128], sizes = [1, 64], strides = [1, 1]} : vector<1x1024xf32> to vector<1x64xf32>
    %280 = arith.maximumf %278, %279 : vector<1x64xf32>
    %281 = vector.extract_strided_slice %275 {offsets = [0, 192], sizes = [1, 64], strides = [1, 1]} : vector<1x1024xf32> to vector<1x64xf32>
    %282 = arith.maximumf %280, %281 : vector<1x64xf32>
    %283 = vector.extract_strided_slice %275 {offsets = [0, 256], sizes = [1, 64], strides = [1, 1]} : vector<1x1024xf32> to vector<1x64xf32>
    %284 = arith.maximumf %282, %283 : vector<1x64xf32>
    %285 = vector.extract_strided_slice %275 {offsets = [0, 320], sizes = [1, 64], strides = [1, 1]} : vector<1x1024xf32> to vector<1x64xf32>
    %286 = arith.maximumf %284, %285 : vector<1x64xf32>
    %287 = vector.extract_strided_slice %275 {offsets = [0, 0], sizes = [1, 64], strides = [1, 1]} : vector<1x1024xf32> to vector<1x64xf32>
    %288 = vector.extract_strided_slice %275 {offsets = [0, 64], sizes = [1, 64], strides = [1, 1]} : vector<1x1024xf32> to vector<1x64xf32>
    %289 = arith.maximumf %287, %288 : vector<1x64xf32>
    %290 = vector.extract_strided_slice %275 {offsets = [0, 128], sizes = [1, 64], strides = [1, 1]} : vector<1x1024xf32> to vector<1x64xf32>
    %291 = arith.maximumf %289, %290 : vector<1x64xf32>
    %292 = vector.extract_strided_slice %275 {offsets = [0, 192], sizes = [1, 64], strides = [1, 1]} : vector<1x1024xf32> to vector<1x64xf32>
    %293 = arith.maximumf %291, %292 : vector<1x64xf32>
    %294 = vector.extract_strided_slice %275 {offsets = [0, 256], sizes = [1, 64], strides = [1, 1]} : vector<1x1024xf32> to vector<1x64xf32>
    %295 = arith.maximumf %293, %294 : vector<1x64xf32>
    %296 = vector.extract_strided_slice %275 {offsets = [0, 320], sizes = [1, 64], strides = [1, 1]} : vector<1x1024xf32> to vector<1x64xf32>
    %297 = arith.maximumf %295, %296 : vector<1x64xf32>
    %298 = vector.extract_strided_slice %275 {offsets = [0, 384], sizes = [1, 64], strides = [1, 1]} : vector<1x1024xf32> to vector<1x64xf32>
    %299 = arith.maximumf %297, %298 : vector<1x64xf32>
    %300 = vector.extract_strided_slice %275 {offsets = [0, 448], sizes = [1, 64], strides = [1, 1]} : vector<1x1024xf32> to vector<1x64xf32>
    %301 = arith.maximumf %299, %300 : vector<1x64xf32>
    %302 = vector.extract_strided_slice %275 {offsets = [0, 512], sizes = [1, 64], strides = [1, 1]} : vector<1x1024xf32> to vector<1x64xf32>
    %303 = arith.maximumf %301, %302 : vector<1x64xf32>
    %304 = vector.extract_strided_slice %275 {offsets = [0, 576], sizes = [1, 64], strides = [1, 1]} : vector<1x1024xf32> to vector<1x64xf32>
    %305 = arith.maximumf %303, %304 : vector<1x64xf32>
    %306 = vector.extract_strided_slice %275 {offsets = [0, 192], sizes = [1, 64], strides = [1, 1]} : vector<1x1024xf32> to vector<1x64xf32>
    %307 = vector.extract_strided_slice %275 {offsets = [0, 256], sizes = [1, 64], strides = [1, 1]} : vector<1x1024xf32> to vector<1x64xf32>
    %308 = arith.maximumf %306, %307 : vector<1x64xf32>
    %309 = vector.extract_strided_slice %275 {offsets = [0, 320], sizes = [1, 64], strides = [1, 1]} : vector<1x1024xf32> to vector<1x64xf32>
    %310 = arith.maximumf %308, %309 : vector<1x64xf32>
    %311 = vector.extract_strided_slice %275 {offsets = [0, 384], sizes = [1, 64], strides = [1, 1]} : vector<1x1024xf32> to vector<1x64xf32>
    %312 = arith.maximumf %310, %311 : vector<1x64xf32>
    %313 = vector.extract_strided_slice %275 {offsets = [0, 448], sizes = [1, 64], strides = [1, 1]} : vector<1x1024xf32> to vector<1x64xf32>
    %314 = arith.maximumf %312, %313 : vector<1x64xf32>
    %315 = vector.extract_strided_slice %275 {offsets = [0, 512], sizes = [1, 64], strides = [1, 1]} : vector<1x1024xf32> to vector<1x64xf32>
    %316 = arith.maximumf %314, %315 : vector<1x64xf32>
    %317 = vector.extract_strided_slice %275 {offsets = [0, 576], sizes = [1, 64], strides = [1, 1]} : vector<1x1024xf32> to vector<1x64xf32>
    %318 = arith.maximumf %316, %317 : vector<1x64xf32>
    %319 = vector.extract_strided_slice %275 {offsets = [0, 640], sizes = [1, 64], strides = [1, 1]} : vector<1x1024xf32> to vector<1x64xf32>
    %320 = arith.maximumf %318, %319 : vector<1x64xf32>
    %321 = vector.extract_strided_slice %275 {offsets = [0, 704], sizes = [1, 64], strides = [1, 1]} : vector<1x1024xf32> to vector<1x64xf32>
    %322 = arith.maximumf %320, %321 : vector<1x64xf32>
    %323 = vector.extract_strided_slice %275 {offsets = [0, 768], sizes = [1, 64], strides = [1, 1]} : vector<1x1024xf32> to vector<1x64xf32>
    %324 = arith.maximumf %322, %323 : vector<1x64xf32>
    %325 = vector.extract_strided_slice %275 {offsets = [0, 832], sizes = [1, 64], strides = [1, 1]} : vector<1x1024xf32> to vector<1x64xf32>
    %326 = arith.maximumf %324, %325 : vector<1x64xf32>
    %327 = vector.extract_strided_slice %275 {offsets = [0, 448], sizes = [1, 64], strides = [1, 1]} : vector<1x1024xf32> to vector<1x64xf32>
    %328 = vector.extract_strided_slice %275 {offsets = [0, 512], sizes = [1, 64], strides = [1, 1]} : vector<1x1024xf32> to vector<1x64xf32>
    %329 = arith.maximumf %327, %328 : vector<1x64xf32>
    %330 = vector.extract_strided_slice %275 {offsets = [0, 576], sizes = [1, 64], strides = [1, 1]} : vector<1x1024xf32> to vector<1x64xf32>
    %331 = arith.maximumf %329, %330 : vector<1x64xf32>
    %332 = vector.extract_strided_slice %275 {offsets = [0, 640], sizes = [1, 64], strides = [1, 1]} : vector<1x1024xf32> to vector<1x64xf32>
    %333 = arith.maximumf %331, %332 : vector<1x64xf32>
    %334 = vector.extract_strided_slice %275 {offsets = [0, 704], sizes = [1, 64], strides = [1, 1]} : vector<1x1024xf32> to vector<1x64xf32>
    %335 = arith.maximumf %333, %334 : vector<1x64xf32>
    %336 = vector.extract_strided_slice %275 {offsets = [0, 768], sizes = [1, 64], strides = [1, 1]} : vector<1x1024xf32> to vector<1x64xf32>
    %337 = arith.maximumf %335, %336 : vector<1x64xf32>
    %338 = vector.extract_strided_slice %275 {offsets = [0, 832], sizes = [1, 64], strides = [1, 1]} : vector<1x1024xf32> to vector<1x64xf32>
    %339 = arith.maximumf %337, %338 : vector<1x64xf32>
    %340 = vector.extract_strided_slice %275 {offsets = [0, 896], sizes = [1, 64], strides = [1, 1]} : vector<1x1024xf32> to vector<1x64xf32>
    %341 = arith.maximumf %339, %340 : vector<1x64xf32>
    %342 = vector.extract_strided_slice %275 {offsets = [0, 960], sizes = [1, 64], strides = [1, 1]} : vector<1x1024xf32> to vector<1x64xf32>
    %343 = arith.maximumf %341, %342 : vector<1x64xf32>
    %344 = tpu.concatenate %286, %305, %326, %343 in 1 : vector<1x64xf32>, vector<1x64xf32>, vector<1x64xf32>, vector<1x64xf32> -> vector<1x256xf32>
    %c0_65 = arith.constant 0 : index
    %c3_66 = arith.constant 3 : index
    %c0_67 = arith.constant 0 : index
    %345 = vector.load %arg4[%c0_65, %c3_66, %c0_67] : memref<1x4x256xf32, #tpu.memory_space<vmem>>, vector<1x1x256xf32>
    %346 = vector.shape_cast %345 : vector<1x1x256xf32> to vector<1x256xf32>
    %347 = vector.shape_cast %344 : vector<1x256xf32> to vector<1x1x256xf32>
    tpu.vector_store %arg4[%c0_65, %c3_66, %c0_67], %347 {strides = array<i32>} : memref<1x4x256xf32, #tpu.memory_space<vmem>>, vector<1x1x256xf32>,
    return
  }
  func.func @transform_0(%arg0: i32) -> (i32, i32, i32, i32) {
    %c0_i32 = arith.constant 0 : i32
    %c0_i32_0 = arith.constant 0 : i32
    %c0_i32_1 = arith.constant 0 : i32
    %c0_i32_2 = arith.constant 0 : i32
    return %arg0, %c0_i32, %c0_i32_0, %c0_i32_1 : i32, i32, i32, i32
  }
  func.func @transform_1(%arg0: i32) -> (i32, i32, i32) {
    %c0_i32 = arith.constant 0 : i32
    %c0_i32_0 = arith.constant 0 : i32
    %c0_i32_1 = arith.constant 0 : i32
    %c0_i32_2 = arith.constant 0 : i32
    return %c0_i32, %c0_i32_0, %c0_i32_1 : i32, i32, i32
  }
  func.func @transform_2(%arg0: i32) -> (i32, i32) {
    %c0_i32 = arith.constant 0 : i32
    %c0_i32_0 = arith.constant 0 : i32
    %c0_i32_1 = arith.constant 0 : i32
    return %c0_i32, %c0_i32_0 : i32, i32
  }
  func.func @transform_3(%arg0: i32) -> (i32, i32, i32) {
    %c0_i32 = arith.constant 0 : i32
    %c0_i32_0 = arith.constant 0 : i32
    %c0_i32_1 = arith.constant 0 : i32
    return %arg0, %c0_i32, %c0_i32_0 : i32, i32, i32
  }
}

</mosaic_0001>

<llo_original>
// kernel: _forward.1
$region0: #{_forward.1}
  #allocation0 [shape = 'u32[]', space=smem, size = 0x4, offset = 0x4, fixed_abs, tag = 'smem constant byte address 0x4 - core index']
  #allocation1 [shape = 'u32[144,128]{1,0:T(1,128)}', space=vmem, size = 0x12000, scoped, tag = 'internal scratch']
  %s0 = inlined_call_operand.vmem [shape: bf16[2,2,19,128], index: 0, kind: input, shape index: {}]
  %s1 = inlined_call_operand.hbm [shape: bf16[7,128,1024], index: 1, kind: input, shape index: {}]
  %s2 = inlined_call_operand.hbm [shape: f32[1,1024], index: 2, kind: input, shape index: {}]
  %s3 = inlined_call_operand.vmem [shape: f32[2,4,256], index: 3, kind: output, shape index: {}]
  %s4 = sld [smem:[#allocation0]]
  $region53: #{_forward.1} parent=0
    _
  %s6 = ssub.s32 1, %s4
  %s7 = scalar_select 0, %s6, %s4
  $region1: #{_forward.1} parent=0
    #allocation2 [shape = 'u8[1835008]{0}', space=vmem, size = 0x1c0000, scoped, tag = 'input window, operand 1, single buffered']
    #allocation3 [shape = 's32[2]{0}', space=sflag, size = 0x8, scoped, tag = 'scoped memory for _forward.1']
    #allocation4 [shape = 'u8[4096]{0}', space=vmem, size = 0x1000, scoped, tag = 'input window, operand 2, single buffered']
    #allocation5 [shape = 's32[1]{0}', space=sflag, size = 0x4, scoped, tag = 'scoped memory for _forward.1']
    %8 = vsyncpa [#allocation3], 0
    %9 = vsyncpa [#allocation5], 0
    loop: start=0, step=1, limit=4
    $region2: #{_forward.1} parent=1 // loop_pre_header
      _
    $region3: #{_forward.1} parent=1 // loop_header
      %s11 = sphi 0, %s15
      %p12 = scmp.ge.s32.totalorder %s11, 4
      %s21 = sphi 0, %s23
      %s24 = sphi 0, %s21
      %s25 = sphi 0, %s24
      %s41 = sphi 0, %s25
      %s45 = sphi 0, %s45
      %s47 = sphi 0, %s45
      %s48 = sphi 0, %s47
      %s62 = sphi 0, %s48
      %s66 = sphi 0, %s66
      %s68 = sphi 0, %s66
      %s69 = sphi 0, %s68
      %s83 = sphi 0, %s69
      %s89 = sphi 0, %s91
      %s92 = sphi 0, %s89
      %s93 = sphi 0, %s92
      %s109 = sphi 0, %s93
    $region4: #{_forward.1} parent=1 // loop_header_branch
      %14 = sbr.rel (%p12) target = $region8
    $region5: #{_forward.1} parent=1 // loop_body
      %s16 = ssub.s32 %s11, 1
      %s17 = ssub.s32 %s11, 2
      %s18 = sadd.s32 %s11, 1
      %s19 = ssub.s32 %s11, %s18
      %p20 = scmp.eq.s32.totalorder %s19, 0
      %s22 = sadd.s32 %s21, 1
      %s23 = scalar_select %p20, %s21, %s22
      %p26 = pneg %p20
      %p27 = scmp.eq.s32.totalorder %s11, 1
      %p28 = por %p26, %p27
      %p29 = scmp.ne.s32.totalorder %s21, %s24
      %p30 = scmp.eq.s32.totalorder %s11, 0
      %p31 = por %p29, %p30
      %p32 = scmp.ne.s32.totalorder %s21, %s24
      %p33 = scmp.eq.s32.totalorder %s16, 1
      %p34 = por %p32, %p33
      %p35 = scmp.ne.s32.totalorder %s24, %s25
      %p36 = scmp.eq.s32.totalorder %s16, 0
      %p37 = por %p35, %p36
      %p38 = scmp.ne.s32.totalorder %s24, %s25
      %p39 = scmp.eq.s32.totalorder %s17, 1
      %p40 = por %p38, %p39
      %p42 = scmp.ne.s32.totalorder %s25, %s41
      %p43 = scmp.eq.s32.totalorder %s17, 0
      %p44 = por %p42, %p43
      %s46 = sadd.s32 %s45, 1
      %p49 = scmp.eq.s32.totalorder %s11, 1
      %p50 = scmp.ne.s32.totalorder %s45, %s47
      %p51 = scmp.eq.s32.totalorder %s11, 0
      %p52 = por %p50, %p51
      %p53 = scmp.ne.s32.totalorder %s45, %s47
      %p54 = scmp.eq.s32.totalorder %s16, 1
      %p55 = por %p53, %p54
      %p56 = scmp.ne.s32.totalorder %s47, %s48
      %p57 = scmp.eq.s32.totalorder %s16, 0
      %p58 = por %p56, %p57
      %p59 = scmp.ne.s32.totalorder %s47, %s48
      %p60 = scmp.eq.s32.totalorder %s17, 1
      %p61 = por %p59, %p60
      %p63 = scmp.ne.s32.totalorder %s48, %s62
      %p64 = scmp.eq.s32.totalorder %s17, 0
      %p65 = por %p63, %p64
      %s67 = sadd.s32 %s66, 1
      %p70 = scmp.eq.s32.totalorder %s11, 1
      %p71 = scmp.ne.s32.totalorder %s66, %s68
      %p72 = scmp.eq.s32.totalorder %s11, 0
      %p73 = por %p71, %p72
      %p74 = scmp.ne.s32.totalorder %s66, %s68
      %p75 = scmp.eq.s32.totalorder %s16, 1
      %p76 = por %p74, %p75
      %p77 = scmp.ne.s32.totalorder %s68, %s69
      %p78 = scmp.eq.s32.totalorder %s16, 0
      %p79 = por %p77, %p78
      %p80 = scmp.ne.s32.totalorder %s68, %s69
      %p81 = scmp.eq.s32.totalorder %s17, 1
      %p82 = por %p80, %p81
      %p84 = scmp.ne.s32.totalorder %s69, %s83
      %p85 = scmp.eq.s32.totalorder %s17, 0
      %p86 = por %p84, %p85
      %s87 = ssub.s32 %s11, %s18
      %p88 = scmp.eq.s32.totalorder %s87, 0
      %s90 = sadd.s32 %s89, 1
      %s91 = scalar_select %p88, %s89, %s90
      %p94 = pneg %p88
      %p95 = scmp.eq.s32.totalorder %s11, 1
      %p96 = por %p94, %p95
      %p97 = scmp.ne.s32.totalorder %s89, %s92
      %p98 = scmp.eq.s32.totalorder %s11, 0
      %p99 = por %p97, %p98
      %p100 = scmp.ne.s32.totalorder %s89, %s92
      %p101 = scmp.eq.s32.totalorder %s16, 1
      %p102 = por %p100, %p101
      %p103 = scmp.ne.s32.totalorder %s92, %s93
      %p104 = scmp.eq.s32.totalorder %s16, 0
      %p105 = por %p103, %p104
      %p106 = scmp.ne.s32.totalorder %s92, %s93
      %p107 = scmp.eq.s32.totalorder %s17, 1
      %p108 = por %p106, %p107
      %p110 = scmp.ne.s32.totalorder %s93, %s109
      %p111 = scmp.eq.s32.totalorder %s17, 0
      %p112 = por %p110, %p111
      %p113 = scmp.le.s32.totalorder 1, %s11
      %p114 = scmp.lt.s32.totalorder %s11, 3
      %p115 = pnand %p113, %p114
      %p116 = pneg %p115
      // Predicated region
      $region9: #{_forward.1} parent=5 // pred_check
        _
      $region10: #{_forward.1} parent=5 // pred_check_branch
        %118 = sbr.rel (%p115) target = $region12
      $region11: #{_forward.1} parent=5 // pred_region
        %s119 = ssub.s32 %s11, 1
        // Predicated region
        $region13: #{_forward.1} parent=11 // pred_check
          %p120 = pneg %p58
        $region14: #{_forward.1} parent=11 // pred_check_branch
          %122 = sbr.rel (%p120) target = $region16
        $region15: #{_forward.1} parent=11 // pred_region
          %s124 = ssub.s32 57344, 57344
          %125 = vsyncadd [#allocation3], %s124
          %s126 = sshll.u32 [#allocation2], 4
          %s127 = int_to_ptr.vmem [resolvable:$true] %s126
          %132 = dma.hbm_to_vmem [thread:$0]  %s1, 57344, %s127, [#allocation3], 512, 512, 32
        $region16: #{_forward.1} parent=11 // pred_fallthru
          _
        // Predicated region
        $region17: #{_forward.1} parent=11 // pred_check
          %p133 = pneg %p79
        $region18: #{_forward.1} parent=11 // pred_check_branch
          %135 = sbr.rel (%p133) target = $region20
        $region19: #{_forward.1} parent=11 // pred_region
          %s137 = ssub.s32 128, 128
          %138 = vsyncadd [#allocation5], %s137
          %s140 = sshll.u32 [#allocation4], 4
          %s141 = int_to_ptr.vmem [resolvable:$true] %s140
          %143 = dma.hbm_to_vmem [thread:$0]  %s2, 128, %s141, [#allocation5]
        $region20: #{_forward.1} parent=11 // pred_fallthru
          _
      $region12: #{_forward.1} parent=5 // pred_fallthru
        _
      %p144 = scmp.lt.s32.totalorder %s11, 2
      // Predicated region
      $region21: #{_forward.1} parent=5 // pred_check
        %p145 = pneg %p144
      $region22: #{_forward.1} parent=5 // pred_check_branch
        %147 = sbr.rel (%p145) target = $region24
      $region23: #{_forward.1} parent=5 // pred_region
        // Predicated region
        $region25: #{_forward.1} parent=23 // pred_check
          %p148 = pneg %p31
        $region26: #{_forward.1} parent=23 // pred_check_branch
          %150 = sbr.rel (%p148) target = $region28
        $region27: #{_forward.1} parent=23 // pred_region
          %p151 = scmp.lt.s32.totalorder %s11, 1
          %s152 = scalar_select %p151, %s11, 1
          %s153 = smul.addr %s152, 6
          %s154 = smul.addr %s153, 4
          %s155 = scalar_lea.vmem %s0, %s154
        $region28: #{_forward.1} parent=23 // pred_fallthru
          _
      $region24: #{_forward.1} parent=5 // pred_fallthru
        _
      %p156 = scmp.le.s32.totalorder 1, %s11
      %p157 = scmp.lt.s32.totalorder %s11, 3
      %p158 = pnand %p156, %p157
      %p159 = pneg %p158
      // Predicated region
      $region29: #{_forward.1} parent=5 // pred_check
        _
      $region30: #{_forward.1} parent=5 // pred_check_branch
        %161 = sbr.rel (%p158) target = $region32
      $region31: #{_forward.1} parent=5 // pred_region
        %s162 = ssub.s32 %s11, 1
        // Predicated region
        $region33: #{_forward.1} parent=31 // pred_check
          %p163 = pneg %p58
        $region34: #{_forward.1} parent=31 // pred_check_branch
          %165 = sbr.rel (%p163) target = $region36
        $region35: #{_forward.1} parent=31 // pred_region
          %166 = dma.done [#allocation3], 57344
        $region36: #{_forward.1} parent=31 // pred_fallthru
          _
        // Predicated region
        $region37: #{_forward.1} parent=31 // pred_check
          %p167 = pneg %p79
        $region38: #{_forward.1} parent=31 // pred_check_branch
          %169 = sbr.rel (%p167) target = $region40
        $region39: #{_forward.1} parent=31 // pred_region
          %170 = dma.done [#allocation5], 128
        $region40: #{_forward.1} parent=31 // pred_fallthru
          _
        %p171 = scmp.lt.s32.totalorder %s16, 1
        %s172 = scalar_select %p171, %s16, 1
        %s173 = smul.addr %s172, 6
        %s174 = smul.addr %s173, 4
        %s175 = scalar_lea.vmem %s0, %s174
        %p176 = pneg %p37
        %p177 = pneg %p34
        %p178 = pneg %p58
        %p179 = pneg %p55
        %p180 = pneg %p79
        %p181 = pneg %p76
        %p182 = pneg %p105
        %p183 = pneg %p102
        %p184 = scmp.lt.s32.totalorder %s16, 1
        %s185 = scalar_select %p184, %s16, 1
        %s186 = smul.addr %s185, 2
        %s187 = smul.addr %s186, 4
        %s188 = scalar_lea.vmem %s3, %s187
        %p189 = scmp.lt.s32.totalorder %s16, 1
        %s190 = scalar_select %p189, %s16, 1
        %s191 = smul.addr %s190, 6
        %s192 = smul.addr %s191, 4
        %s193 = scalar_lea.vmem %s0, %s192
        %p194 = scmp.lt.s32.totalorder %s16, 1
        %s195 = scalar_select %p194, %s16, 1
        %s196 = smul.addr %s195, 2
        %s197 = smul.addr %s196, 4
        %s198 = scalar_lea.vmem %s3, %s197
        %v200 = vld [vmem:[%s193] sm:$0xf]
        %v201 = vld [vmem:[%s193 + $0x4] sm:$0xf]
        %v202 = vld [vmem:[#allocation2] sm:$0xff]
        %v203 = vld [vmem:[#allocation2 + $0x8] sm:$0xff]
        %v204 = vld [vmem:[#allocation2 + $0x10] sm:$0xff]
        %v205 = vld [vmem:[#allocation2 + $0x18] sm:$0xff]
        %v206 = vld [vmem:[#allocation2 + $0x20] sm:$0xff]
        %v207 = vld [vmem:[#allocation2 + $0x28] sm:$0xff]
        %v208 = vld [vmem:[#allocation2 + $0x30] sm:$0xff]
        %v209 = vld [vmem:[#allocation2 + $0x38] sm:$0xff]
        %v210 = vld [vmem:[#allocation2 + $0x40] sm:$0xff]
        %v211 = vld [vmem:[#allocation2 + $0x48] sm:$0xff]
        %v212 = vld [vmem:[#allocation2 + $0x50] sm:$0xff]
        %v213 = vld [vmem:[#allocation2 + $0x58] sm:$0xff]
        %v214 = vld [vmem:[#allocation2 + $0x60] sm:$0xff]
        %v215 = vld [vmem:[#allocation2 + $0x68] sm:$0xff]
        %v216 = vld [vmem:[#allocation2 + $0x70] sm:$0xff]
        %v217 = vld [vmem:[#allocation2 + $0x78] sm:$0xff]
        %v218 = vld [vmem:[#allocation2 + $0x80] sm:$0xff]
        %v219 = vld [vmem:[#allocation2 + $0x88] sm:$0xff]
        %v220 = vld [vmem:[#allocation2 + $0x90] sm:$0xff]
        %v221 = vld [vmem:[#allocation2 + $0x98] sm:$0xff]
        %v222 = vld [vmem:[#allocation2 + $0xa0] sm:$0xff]
        %v223 = vld [vmem:[#allocation2 + $0xa8] sm:$0xff]
        %v224 = vld [vmem:[#allocation2 + $0xb0] sm:$0xff]
        %v225 = vld [vmem:[#allocation2 + $0xb8] sm:$0xff]
        %v226 = vld [vmem:[#allocation2 + $0xc0] sm:$0xff]
        %v227 = vld [vmem:[#allocation2 + $0xc8] sm:$0xff]
        %v228 = vld [vmem:[#allocation2 + $0xd0] sm:$0xff]
        %v229 = vld [vmem:[#allocation2 + $0xd8] sm:$0xff]
        %v230 = vld [vmem:[#allocation2 + $0xe0] sm:$0xff]
        %v231 = vld [vmem:[#allocation2 + $0xe8] sm:$0xff]
        %v232 = vld [vmem:[#allocation2 + $0xf0] sm:$0xff]
        %v233 = vld [vmem:[#allocation2 + $0xf8] sm:$0xff]
        %v234 = vld [vmem:[#allocation2 + $0x100] sm:$0xff]
        %v235 = vld [vmem:[#allocation2 + $0x108] sm:$0xff]
        %v236 = vld [vmem:[#allocation2 + $0x110] sm:$0xff]
        %v237 = vld [vmem:[#allocation2 + $0x118] sm:$0xff]
        %v238 = vld [vmem:[#allocation2 + $0x120] sm:$0xff]
        %v239 = vld [vmem:[#allocation2 + $0x128] sm:$0xff]
        %v240 = vld [vmem:[#allocation2 + $0x130] sm:$0xff]
        %v241 = vld [vmem:[#allocation2 + $0x138] sm:$0xff]
        %v242 = vld [vmem:[#allocation2 + $0x140] sm:$0xff]
        %v243 = vld [vmem:[#allocation2 + $0x148] sm:$0xff]
        %v244 = vld [vmem:[#allocation2 + $0x150] sm:$0xff]
        %v245 = vld [vmem:[#allocation2 + $0x158] sm:$0xff]
        %v246 = vld [vmem:[#allocation2 + $0x160] sm:$0xff]
        %v247 = vld [vmem:[#allocation2 + $0x168] sm:$0xff]
        %v248 = vld [vmem:[#allocation2 + $0x170] sm:$0xff]
        %v249 = vld [vmem:[#allocation2 + $0x178] sm:$0xff]
        %v250 = vld [vmem:[#allocation2 + $0x180] sm:$0xff]
        %v251 = vld [vmem:[#allocation2 + $0x188] sm:$0xff]
        %v252 = vld [vmem:[#allocation2 + $0x190] sm:$0xff]
        %v253 = vld [vmem:[#allocation2 + $0x198] sm:$0xff]
        %v254 = vld [vmem:[#allocation2 + $0x1a0] sm:$0xff]
        %v255 = vld [vmem:[#allocation2 + $0x1a8] sm:$0xff]
        %v256 = vld [vmem:[#allocation2 + $0x1b0] sm:$0xff]
        %v257 = vld [vmem:[#allocation2 + $0x1b8] sm:$0xff]
        %v258 = vld [vmem:[#allocation2 + $0x1c0] sm:$0xff]
        %v259 = vld [vmem:[#allocation2 + $0x1c8] sm:$0xff]
        %v260 = vld [vmem:[#allocation2 + $0x1d0] sm:$0xff]
        %v261 = vld [vmem:[#allocation2 + $0x1d8] sm:$0xff]
        %v262 = vld [vmem:[#allocation2 + $0x1e0] sm:$0xff]
        %v263 = vld [vmem:[#allocation2 + $0x1e8] sm:$0xff]
        %v264 = vld [vmem:[#allocation2 + $0x1f0] sm:$0xff]
        %v265 = vld [vmem:[#allocation2 + $0x1f8] sm:$0xff]
        %s266 = scalar_lea.vmem %s193, 12
        %v267 = vld [vmem:[%s266] sm:$0xf]
        %v268 = vld [vmem:[%s266 + $0x4] sm:$0xf]
        %s269 = scalar_lea.vmem [#allocation2], 512
        %v270 = vld [vmem:[%s269] sm:$0xff]
        %v271 = vld [vmem:[%s269 + $0x8] sm:$0xff]
        %v272 = vld [vmem:[%s269 + $0x10] sm:$0xff]
        %v273 = vld [vmem:[%s269 + $0x18] sm:$0xff]
        %v274 = vld [vmem:[%s269 + $0x20] sm:$0xff]
        %v275 = vld [vmem:[%s269 + $0x28] sm:$0xff]
        %v276 = vld [vmem:[%s269 + $0x30] sm:$0xff]
        %v277 = vld [vmem:[%s269 + $0x38] sm:$0xff]
        %v278 = vld [vmem:[%s269 + $0x40] sm:$0xff]
        %v279 = vld [vmem:[%s269 + $0x48] sm:$0xff]
        %v280 = vld [vmem:[%s269 + $0x50] sm:$0xff]
        %v281 = vld [vmem:[%s269 + $0x58] sm:$0xff]
        %v282 = vld [vmem:[%s269 + $0x60] sm:$0xff]
        %v283 = vld [vmem:[%s269 + $0x68] sm:$0xff]
        %v284 = vld [vmem:[%s269 + $0x70] sm:$0xff]
        %v285 = vld [vmem:[%s269 + $0x78] sm:$0xff]
        %v286 = vld [vmem:[%s269 + $0x80] sm:$0xff]
        %v287 = vld [vmem:[%s269 + $0x88] sm:$0xff]
        %v288 = vld [vmem:[%s269 + $0x90] sm:$0xff]
        %v289 = vld [vmem:[%s269 + $0x98] sm:$0xff]
        %v290 = vld [vmem:[%s269 + $0xa0] sm:$0xff]
        %v291 = vld [vmem:[%s269 + $0xa8] sm:$0xff]
        %v292 = vld [vmem:[%s269 + $0xb0] sm:$0xff]
        %v293 = vld [vmem:[%s269 + $0xb8] sm:$0xff]
        %v294 = vld [vmem:[%s269 + $0xc0] sm:$0xff]
        %v295 = vld [vmem:[%s269 + $0xc8] sm:$0xff]
        %v296 = vld [vmem:[%s269 + $0xd0] sm:$0xff]
        %v297 = vld [vmem:[%s269 + $0xd8] sm:$0xff]
        %v298 = vld [vmem:[%s269 + $0xe0] sm:$0xff]
        %v299 = vld [vmem:[%s269 + $0xe8] sm:$0xff]
        %v300 = vld [vmem:[%s269 + $0xf0] sm:$0xff]
        %v301 = vld [vmem:[%s269 + $0xf8] sm:$0xff]
        %v302 = vld [vmem:[%s269 + $0x100] sm:$0xff]
        %v303 = vld [vmem:[%s269 + $0x108] sm:$0xff]
        %v304 = vld [vmem:[%s269 + $0x110] sm:$0xff]
        %v305 = vld [vmem:[%s269 + $0x118] sm:$0xff]
        %v306 = vld [vmem:[%s269 + $0x120] sm:$0xff]
        %v307 = vld [vmem:[%s269 + $0x128] sm:$0xff]
        %v308 = vld [vmem:[%s269 + $0x130] sm:$0xff]
        %v309 = vld [vmem:[%s269 + $0x138] sm:$0xff]
        %v310 = vld [vmem:[%s269 + $0x140] sm:$0xff]
        %v311 = vld [vmem:[%s269 + $0x148] sm:$0xff]
        %v312 = vld [vmem:[%s269 + $0x150] sm:$0xff]
        %v313 = vld [vmem:[%s269 + $0x158] sm:$0xff]
        %v314 = vld [vmem:[%s269 + $0x160] sm:$0xff]
        %v315 = vld [vmem:[%s269 + $0x168] sm:$0xff]
        %v316 = vld [vmem:[%s269 + $0x170] sm:$0xff]
        %v317 = vld [vmem:[%s269 + $0x178] sm:$0xff]
        %v318 = vld [vmem:[%s269 + $0x180] sm:$0xff]
        %v319 = vld [vmem:[%s269 + $0x188] sm:$0xff]
        %v320 = vld [vmem:[%s269 + $0x190] sm:$0xff]
        %v321 = vld [vmem:[%s269 + $0x198] sm:$0xff]
        %v322 = vld [vmem:[%s269 + $0x1a0] sm:$0xff]
        %v323 = vld [vmem:[%s269 + $0x1a8] sm:$0xff]
        %v324 = vld [vmem:[%s269 + $0x1b0] sm:$0xff]
        %v325 = vld [vmem:[%s269 + $0x1b8] sm:$0xff]
        %v326 = vld [vmem:[%s269 + $0x1c0] sm:$0xff]
        %v327 = vld [vmem:[%s269 + $0x1c8] sm:$0xff]
        %v328 = vld [vmem:[%s269 + $0x1d0] sm:$0xff]
        %v329 = vld [vmem:[%s269 + $0x1d8] sm:$0xff]
        %v330 = vld [vmem:[%s269 + $0x1e0] sm:$0xff]
        %v331 = vld [vmem:[%s269 + $0x1e8] sm:$0xff]
        %v332 = vld [vmem:[%s269 + $0x1f0] sm:$0xff]
        %v333 = vld [vmem:[%s269 + $0x1f8] sm:$0xff]
        %v336 = vunpack.c.l.b16 %v267
        %v337 = vunpack.c.l.b16 %v268
        %v338 = vpack.c.b16 %v337, %v336
        %v404 = vunpack.c.l.b16 %v270
        %v405 = vunpack.c.h.b16 %v270
        %v406 = vunpack.c.l.b16 %v271
        %v407 = vunpack.c.h.b16 %v271
        %v408 = vunpack.c.l.b16 %v272
        %v409 = vunpack.c.h.b16 %v272
        %v410 = vunpack.c.l.b16 %v273
        %v411 = vunpack.c.h.b16 %v273
        %v412 = vunpack.c.l.b16 %v274
        %v413 = vunpack.c.h.b16 %v274
        %v414 = vunpack.c.l.b16 %v275
        %v415 = vunpack.c.h.b16 %v275
        %v416 = vunpack.c.l.b16 %v276
        %v417 = vunpack.c.h.b16 %v276
        %v418 = vunpack.c.l.b16 %v277
        %v419 = vunpack.c.h.b16 %v277
        %v420 = vunpack.c.l.b16 %v278
        %v421 = vunpack.c.h.b16 %v278
        %v422 = vunpack.c.l.b16 %v279
        %v423 = vunpack.c.h.b16 %v279
        %v424 = vunpack.c.l.b16 %v280
        %v425 = vunpack.c.h.b16 %v280
        %v426 = vunpack.c.l.b16 %v281
        %v427 = vunpack.c.h.b16 %v281
        %v428 = vunpack.c.l.b16 %v282
        %v429 = vunpack.c.h.b16 %v282
        %v430 = vunpack.c.l.b16 %v283
        %v431 = vunpack.c.h.b16 %v283
        %v432 = vunpack.c.l.b16 %v284
        %v433 = vunpack.c.h.b16 %v284
        %v434 = vunpack.c.l.b16 %v285
        %v435 = vunpack.c.h.b16 %v285
        %v436 = vunpack.c.l.b16 %v286
        %v437 = vunpack.c.h.b16 %v286
        %v438 = vunpack.c.l.b16 %v287
        %v439 = vunpack.c.h.b16 %v287
        %v440 = vunpack.c.l.b16 %v288
        %v441 = vunpack.c.h.b16 %v288
        %v442 = vunpack.c.l.b16 %v289
        %v443 = vunpack.c.h.b16 %v289
        %v444 = vunpack.c.l.b16 %v290
        %v445 = vunpack.c.h.b16 %v290
        %v446 = vunpack.c.l.b16 %v291
        %v447 = vunpack.c.h.b16 %v291
        %v448 = vunpack.c.l.b16 %v292
        %v449 = vunpack.c.h.b16 %v292
        %v450 = vunpack.c.l.b16 %v293
        %v451 = vunpack.c.h.b16 %v293
        %v452 = vunpack.c.l.b16 %v294
        %v453 = vunpack.c.h.b16 %v294
        %v454 = vunpack.c.l.b16 %v295
        %v455 = vunpack.c.h.b16 %v295
        %v456 = vunpack.c.l.b16 %v296
        %v457 = vunpack.c.h.b16 %v296
        %v458 = vunpack.c.l.b16 %v297
        %v459 = vunpack.c.h.b16 %v297
        %v460 = vunpack.c.l.b16 %v298
        %v461 = vunpack.c.h.b16 %v298
        %v462 = vunpack.c.l.b16 %v299
        %v463 = vunpack.c.h.b16 %v299
        %v464 = vunpack.c.l.b16 %v300
        %v465 = vunpack.c.h.b16 %v300
        %v466 = vunpack.c.l.b16 %v301
        %v467 = vunpack.c.h.b16 %v301
        %v468 = vunpack.c.l.b16 %v302
        %v469 = vunpack.c.h.b16 %v302
        %v470 = vunpack.c.l.b16 %v303
        %v471 = vunpack.c.h.b16 %v303
        %v472 = vunpack.c.l.b16 %v304
        %v473 = vunpack.c.h.b16 %v304
        %v474 = vunpack.c.l.b16 %v305
        %v475 = vunpack.c.h.b16 %v305
        %v476 = vunpack.c.l.b16 %v306
        %v477 = vunpack.c.h.b16 %v306
        %v478 = vunpack.c.l.b16 %v307
        %v479 = vunpack.c.h.b16 %v307
        %v480 = vunpack.c.l.b16 %v308
        %v481 = vunpack.c.h.b16 %v308
        %v482 = vunpack.c.l.b16 %v309
        %v483 = vunpack.c.h.b16 %v309
        %v484 = vunpack.c.l.b16 %v310
        %v485 = vunpack.c.h.b16 %v310
        %v486 = vunpack.c.l.b16 %v311
        %v487 = vunpack.c.h.b16 %v311
        %v488 = vunpack.c.l.b16 %v312
        %v489 = vunpack.c.h.b16 %v312
        %v490 = vunpack.c.l.b16 %v313
        %v491 = vunpack.c.h.b16 %v313
        %v492 = vunpack.c.l.b16 %v314
        %v493 = vunpack.c.h.b16 %v314
        %v494 = vunpack.c.l.b16 %v315
        %v495 = vunpack.c.h.b16 %v315
        %v496 = vunpack.c.l.b16 %v316
        %v497 = vunpack.c.h.b16 %v316
        %v498 = vunpack.c.l.b16 %v317
        %v499 = vunpack.c.h.b16 %v317
        %v500 = vunpack.c.l.b16 %v318
        %v501 = vunpack.c.h.b16 %v318
        %v502 = vunpack.c.l.b16 %v319
        %v503 = vunpack.c.h.b16 %v319
        %v504 = vunpack.c.l.b16 %v320
        %v505 = vunpack.c.h.b16 %v320
        %v506 = vunpack.c.l.b16 %v321
        %v507 = vunpack.c.h.b16 %v321
        %v508 = vunpack.c.l.b16 %v322
        %v509 = vunpack.c.h.b16 %v322
        %v510 = vunpack.c.l.b16 %v323
        %v511 = vunpack.c.h.b16 %v323
        %v512 = vunpack.c.l.b16 %v324
        %v513 = vunpack.c.h.b16 %v324
        %v514 = vunpack.c.l.b16 %v325
        %v515 = vunpack.c.h.b16 %v325
        %v516 = vunpack.c.l.b16 %v326
        %v517 = vunpack.c.h.b16 %v326
        %v518 = vunpack.c.l.b16 %v327
        %v519 = vunpack.c.h.b16 %v327
        %v520 = vunpack.c.l.b16 %v328
        %v521 = vunpack.c.h.b16 %v328
        %v522 = vunpack.c.l.b16 %v329
        %v523 = vunpack.c.h.b16 %v329
        %v524 = vunpack.c.l.b16 %v330
        %v525 = vunpack.c.h.b16 %v330
        %v526 = vunpack.c.l.b16 %v331
        %v527 = vunpack.c.h.b16 %v331
        %v528 = vunpack.c.l.b16 %v332
        %v529 = vunpack.c.h.b16 %v332
        %v530 = vunpack.c.l.b16 %v333
        %v531 = vunpack.c.h.b16 %v333
        %v532 = vpack.c.b16 %v412, %v404
        %v533 = vpack.c.b16 %v413, %v405
        %v534 = vpack.c.b16 %v414, %v406
        %v535 = vpack.c.b16 %v415, %v407
        %v536 = vpack.c.b16 %v416, %v408
        %v537 = vpack.c.b16 %v417, %v409
        %v538 = vpack.c.b16 %v418, %v410
        %v539 = vpack.c.b16 %v419, %v411
        %v540 = vpack.c.b16 %v428, %v420
        %v541 = vpack.c.b16 %v429, %v421
        %v542 = vpack.c.b16 %v430, %v422
        %v543 = vpack.c.b16 %v431, %v423
        %v544 = vpack.c.b16 %v432, %v424
        %v545 = vpack.c.b16 %v433, %v425
        %v546 = vpack.c.b16 %v434, %v426
        %v547 = vpack.c.b16 %v435, %v427
        %v548 = vpack.c.b16 %v444, %v436
        %v549 = vpack.c.b16 %v445, %v437
        %v550 = vpack.c.b16 %v446, %v438
        %v551 = vpack.c.b16 %v447, %v439
        %v552 = vpack.c.b16 %v448, %v440
        %v553 = vpack.c.b16 %v449, %v441
        %v554 = vpack.c.b16 %v450, %v442
        %v555 = vpack.c.b16 %v451, %v443
        %v556 = vpack.c.b16 %v460, %v452
        %v557 = vpack.c.b16 %v461, %v453
        %v558 = vpack.c.b16 %v462, %v454
        %v559 = vpack.c.b16 %v463, %v455
        %v560 = vpack.c.b16 %v464, %v456
        %v561 = vpack.c.b16 %v465, %v457
        %v562 = vpack.c.b16 %v466, %v458
        %v563 = vpack.c.b16 %v467, %v459
        %v564 = vpack.c.b16 %v476, %v468
        %v565 = vpack.c.b16 %v477, %v469
        %v566 = vpack.c.b16 %v478, %v470
        %v567 = vpack.c.b16 %v479, %v471
        %v568 = vpack.c.b16 %v480, %v472
        %v569 = vpack.c.b16 %v481, %v473
        %v570 = vpack.c.b16 %v482, %v474
        %v571 = vpack.c.b16 %v483, %v475
        %v572 = vpack.c.b16 %v492, %v484
        %v573 = vpack.c.b16 %v493, %v485
        %v574 = vpack.c.b16 %v494, %v486
        %v575 = vpack.c.b16 %v495, %v487
        %v576 = vpack.c.b16 %v496, %v488
        %v577 = vpack.c.b16 %v497, %v489
        %v578 = vpack.c.b16 %v498, %v490
        %v579 = vpack.c.b16 %v499, %v491
        %v580 = vpack.c.b16 %v508, %v500
        %v581 = vpack.c.b16 %v509, %v501
        %v582 = vpack.c.b16 %v510, %v502
        %v583 = vpack.c.b16 %v511, %v503
        %v584 = vpack.c.b16 %v512, %v504
        %v585 = vpack.c.b16 %v513, %v505
        %v586 = vpack.c.b16 %v514, %v506
        %v587 = vpack.c.b16 %v515, %v507
        %v588 = vpack.c.b16 %v524, %v516
        %v589 = vpack.c.b16 %v525, %v517
        %v590 = vpack.c.b16 %v526, %v518
        %v591 = vpack.c.b16 %v527, %v519
        %v592 = vpack.c.b16 %v528, %v520
        %v593 = vpack.c.b16 %v529, %v521
        %v594 = vpack.c.b16 %v530, %v522
        %v595 = vpack.c.b16 %v531, %v523
        %660 = vmatprep.subr.bf16.mxu0 %v533
        %661 = vmatpush1.bf16.msra.mxu0 %v532
        %662 = vmatprep.subr.bf16.mxu0 %v541
        %663 = vmatpush1.bf16.msra.mxu0 %v540
        %664 = vmatprep.subr.bf16.mxu0 %v549
        %665 = vmatpush1.bf16.msra.mxu0 %v548
        %666 = vmatprep.subr.bf16.mxu0 %v557
        %667 = vmatpush1.bf16.msra.mxu0 %v556
        %668 = vmatprep.subr.bf16.mxu0 %v565
        %669 = vmatpush1.bf16.msra.mxu0 %v564
        %670 = vmatprep.subr.bf16.mxu0 %v573
        %671 = vmatpush1.bf16.msra.mxu0 %v572
        %672 = vmatprep.subr.bf16.mxu0 %v581
        %673 = vmatpush1.bf16.msra.mxu0 %v580
        %674 = vmatprep.subr.bf16.mxu0 %v589
        %675 = vmatpush1.bf16.msra.mxu0 %v588
        %676 = vmatprep.subr.bf16.mxu0 0
        %677 = vmatpush1.bf16.msra.mxu0 0
        %678 = vmatprep.subr.bf16.mxu0 0
        %679 = vmatpush1.bf16.msra.mxu0 0
        %680 = vmatprep.subr.bf16.mxu0 0
        %681 = vmatpush1.bf16.msra.mxu0 0
        %682 = vmatprep.subr.bf16.mxu0 0
        %683 = vmatpush1.bf16.msra.mxu0 0
        %684 = vmatprep.subr.bf16.mxu0 0
        %685 = vmatpush1.bf16.msra.mxu0 0
        %686 = vmatprep.subr.bf16.mxu0 0
        %687 = vmatpush1.bf16.msra.mxu0 0
        %688 = vmatprep.subr.bf16.mxu0 0
        %689 = vmatpush1.bf16.msra.mxu0 0
        %690 = vmatprep.subr.bf16.mxu0 0
        %691 = vmatpush1.bf16.msra.mxu0 0
        %692 = vmatprep.mubr.bf16.mxu0 0
        %693 = vmatmul.mubr.bf16.gmra.mrb[0].mxu0 %v338
        %v694 = vpop.f32.mrb[0].mxu0
        %v695 = vadd.f32 0.0, %v694
        %v696 = vpop.f32.mrb[0].mxu0
        %v697 = vadd.f32 0.0, %v696
        %v698 = vpop.f32.mrb[0].mxu0
        %v699 = vadd.f32 0.0, %v698
        %v700 = vpop.f32.mrb[0].mxu0
        %v701 = vadd.f32 0.0, %v700
        %702 = vdwg.mxu0
        %703 = vmatprep.subr.bf16.mxu0 %v535
        %704 = vmatpush1.bf16.msra.mxu0 %v534
        %705 = vmatprep.subr.bf16.mxu0 %v543
        %706 = vmatpush1.bf16.msra.mxu0 %v542
        %707 = vmatprep.subr.bf16.mxu0 %v551
        %708 = vmatpush1.bf16.msra.mxu0 %v550
        %709 = vmatprep.subr.bf16.mxu0 %v559
        %710 = vmatpush1.bf16.msra.mxu0 %v558
        %711 = vmatprep.subr.bf16.mxu0 %v567
        %712 = vmatpush1.bf16.msra.mxu0 %v566
        %713 = vmatprep.subr.bf16.mxu0 %v575
        %714 = vmatpush1.bf16.msra.mxu0 %v574
        %715 = vmatprep.subr.bf16.mxu0 %v583
        %716 = vmatpush1.bf16.msra.mxu0 %v582
        %717 = vmatprep.subr.bf16.mxu0 %v591
        %718 = vmatpush1.bf16.msra.mxu0 %v590
        %719 = vmatprep.subr.bf16.mxu0 0
        %720 = vmatpush1.bf16.msra.mxu0 0
        %721 = vmatprep.subr.bf16.mxu0 0
        %722 = vmatpush1.bf16.msra.mxu0 0
        %723 = vmatprep.subr.bf16.mxu0 0
        %724 = vmatpush1.bf16.msra.mxu0 0
        %725 = vmatprep.subr.bf16.mxu0 0
        %726 = vmatpush1.bf16.msra.mxu0 0
        %727 = vmatprep.subr.bf16.mxu0 0
        %728 = vmatpush1.bf16.msra.mxu0 0
        %729 = vmatprep.subr.bf16.mxu0 0
        %730 = vmatpush1.bf16.msra.mxu0 0
        %731 = vmatprep.subr.bf16.mxu0 0
        %732 = vmatpush1.bf16.msra.mxu0 0
        %733 = vmatprep.subr.bf16.mxu0 0
        %734 = vmatpush1.bf16.msra.mxu0 0
        %735 = vmatprep.mubr.bf16.mxu0 0
        %736 = vmatmul.mubr.bf16.gmra.mrb[0].mxu0 %v338
        %v737 = vpop.f32.mrb[0].mxu0
        %v738 = vadd.f32 0.0, %v737
        %v739 = vpop.f32.mrb[0].mxu0
        %v740 = vadd.f32 0.0, %v739
        %v741 = vpop.f32.mrb[0].mxu0
        %v742 = vadd.f32 0.0, %v741
        %v743 = vpop.f32.mrb[0].mxu0
        %v744 = vadd.f32 0.0, %v743
        %745 = vdwg.mxu0
        %746 = vmatprep.subr.bf16.mxu0 %v537
        %747 = vmatpush1.bf16.msra.mxu0 %v536
        %748 = vmatprep.subr.bf16.mxu0 %v545
        %749 = vmatpush1.bf16.msra.mxu0 %v544
        %750 = vmatprep.subr.bf16.mxu0 %v553
        %751 = vmatpush1.bf16.msra.mxu0 %v552
        %752 = vmatprep.subr.bf16.mxu0 %v561
        %753 = vmatpush1.bf16.msra.mxu0 %v560
        %754 = vmatprep.subr.bf16.mxu0 %v569
        %755 = vmatpush1.bf16.msra.mxu0 %v568
        %756 = vmatprep.subr.bf16.mxu0 %v577
        %757 = vmatpush1.bf16.msra.mxu0 %v576
        %758 = vmatprep.subr.bf16.mxu0 %v585
        %759 = vmatpush1.bf16.msra.mxu0 %v584
        %760 = vmatprep.subr.bf16.mxu0 %v593
        %761 = vmatpush1.bf16.msra.mxu0 %v592
        %762 = vmatprep.subr.bf16.mxu0 0
        %763 = vmatpush1.bf16.msra.mxu0 0
        %764 = vmatprep.subr.bf16.mxu0 0
        %765 = vmatpush1.bf16.msra.mxu0 0
        %766 = vmatprep.subr.bf16.mxu0 0
        %767 = vmatpush1.bf16.msra.mxu0 0
        %768 = vmatprep.subr.bf16.mxu0 0
        %769 = vmatpush1.bf16.msra.mxu0 0
        %770 = vmatprep.subr.bf16.mxu0 0
        %771 = vmatpush1.bf16.msra.mxu0 0
        %772 = vmatprep.subr.bf16.mxu0 0
        %773 = vmatpush1.bf16.msra.mxu0 0
        %774 = vmatprep.subr.bf16.mxu0 0
        %775 = vmatpush1.bf16.msra.mxu0 0
        %776 = vmatprep.subr.bf16.mxu0 0
        %777 = vmatpush1.bf16.msra.mxu0 0
        %778 = vmatprep.mubr.bf16.mxu0 0
        %779 = vmatmul.mubr.bf16.gmra.mrb[0].mxu0 %v338
        %v780 = vpop.f32.mrb[0].mxu0
        %v781 = vadd.f32 0.0, %v780
        %v782 = vpop.f32.mrb[0].mxu0
        %v783 = vadd.f32 0.0, %v782
        %v784 = vpop.f32.mrb[0].mxu0
        %v785 = vadd.f32 0.0, %v784
        %v786 = vpop.f32.mrb[0].mxu0
        %v787 = vadd.f32 0.0, %v786
        %788 = vdwg.mxu0
        %789 = vmatprep.subr.bf16.mxu0 %v539
        %790 = vmatpush1.bf16.msra.mxu0 %v538
        %791 = vmatprep.subr.bf16.mxu0 %v547
        %792 = vmatpush1.bf16.msra.mxu0 %v546
        %793 = vmatprep.subr.bf16.mxu0 %v555
        %794 = vmatpush1.bf16.msra.mxu0 %v554
        %795 = vmatprep.subr.bf16.mxu0 %v563
        %796 = vmatpush1.bf16.msra.mxu0 %v562
        %797 = vmatprep.subr.bf16.mxu0 %v571
        %798 = vmatpush1.bf16.msra.mxu0 %v570
        %799 = vmatprep.subr.bf16.mxu0 %v579
        %800 = vmatpush1.bf16.msra.mxu0 %v578
        %801 = vmatprep.subr.bf16.mxu0 %v587
        %802 = vmatpush1.bf16.msra.mxu0 %v586
        %803 = vmatprep.subr.bf16.mxu0 %v595
        %804 = vmatpush1.bf16.msra.mxu0 %v594
        %805 = vmatprep.subr.bf16.mxu0 0
        %806 = vmatpush1.bf16.msra.mxu0 0
        %807 = vmatprep.subr.bf16.mxu0 0
        %808 = vmatpush1.bf16.msra.mxu0 0
        %809 = vmatprep.subr.bf16.mxu0 0
        %810 = vmatpush1.bf16.msra.mxu0 0
        %811 = vmatprep.subr.bf16.mxu0 0
        %812 = vmatpush1.bf16.msra.mxu0 0
        %813 = vmatprep.subr.bf16.mxu0 0
        %814 = vmatpush1.bf16.msra.mxu0 0
        %815 = vmatprep.subr.bf16.mxu0 0
        %816 = vmatpush1.bf16.msra.mxu0 0
        %817 = vmatprep.subr.bf16.mxu0 0
        %818 = vmatpush1.bf16.msra.mxu0 0
        %819 = vmatprep.subr.bf16.mxu0 0
        %820 = vmatpush1.bf16.msra.mxu0 0
        %821 = vmatprep.mubr.bf16.mxu0 0
        %822 = vmatmul.mubr.bf16.gmra.mrb[0].mxu0 %v338
        %v823 = vpop.f32.mrb[0].mxu0
        %v824 = vadd.f32 0.0, %v823
        %v825 = vpop.f32.mrb[0].mxu0
        %v826 = vadd.f32 0.0, %v825
        %v827 = vpop.f32.mrb[0].mxu0
        %v828 = vadd.f32 0.0, %v827
        %v829 = vpop.f32.mrb[0].mxu0
        %v830 = vadd.f32 0.0, %v829
        %831 = vdwg.mxu0
        %v834 = vunpack.c.l.b16 %v200
        %v835 = vunpack.c.l.b16 %v201
        %v836 = vpack.c.b16 %v835, %v834
        %v902 = vunpack.c.l.b16 %v202
        %v903 = vunpack.c.h.b16 %v202
        %v904 = vunpack.c.l.b16 %v203
        %v905 = vunpack.c.h.b16 %v203
        %v906 = vunpack.c.l.b16 %v204
        %v907 = vunpack.c.h.b16 %v204
        %v908 = vunpack.c.l.b16 %v205
        %v909 = vunpack.c.h.b16 %v205
        %v910 = vunpack.c.l.b16 %v206
        %v911 = vunpack.c.h.b16 %v206
        %v912 = vunpack.c.l.b16 %v207
        %v913 = vunpack.c.h.b16 %v207
        %v914 = vunpack.c.l.b16 %v208
        %v915 = vunpack.c.h.b16 %v208
        %v916 = vunpack.c.l.b16 %v209
        %v917 = vunpack.c.h.b16 %v209
        %v918 = vunpack.c.l.b16 %v210
        %v919 = vunpack.c.h.b16 %v210
        %v920 = vunpack.c.l.b16 %v211
        %v921 = vunpack.c.h.b16 %v211
        %v922 = vunpack.c.l.b16 %v212
        %v923 = vunpack.c.h.b16 %v212
        %v924 = vunpack.c.l.b16 %v213
        %v925 = vunpack.c.h.b16 %v213
        %v926 = vunpack.c.l.b16 %v214
        %v927 = vunpack.c.h.b16 %v214
        %v928 = vunpack.c.l.b16 %v215
        %v929 = vunpack.c.h.b16 %v215
        %v930 = vunpack.c.l.b16 %v216
        %v931 = vunpack.c.h.b16 %v216
        %v932 = vunpack.c.l.b16 %v217
        %v933 = vunpack.c.h.b16 %v217
        %v934 = vunpack.c.l.b16 %v218
        %v935 = vunpack.c.h.b16 %v218
        %v936 = vunpack.c.l.b16 %v219
        %v937 = vunpack.c.h.b16 %v219
        %v938 = vunpack.c.l.b16 %v220
        %v939 = vunpack.c.h.b16 %v220
        %v940 = vunpack.c.l.b16 %v221
        %v941 = vunpack.c.h.b16 %v221
        %v942 = vunpack.c.l.b16 %v222
        %v943 = vunpack.c.h.b16 %v222
        %v944 = vunpack.c.l.b16 %v223
        %v945 = vunpack.c.h.b16 %v223
        %v946 = vunpack.c.l.b16 %v224
        %v947 = vunpack.c.h.b16 %v224
        %v948 = vunpack.c.l.b16 %v225
        %v949 = vunpack.c.h.b16 %v225
        %v950 = vunpack.c.l.b16 %v226
        %v951 = vunpack.c.h.b16 %v226
        %v952 = vunpack.c.l.b16 %v227
        %v953 = vunpack.c.h.b16 %v227
        %v954 = vunpack.c.l.b16 %v228
        %v955 = vunpack.c.h.b16 %v228
        %v956 = vunpack.c.l.b16 %v229
        %v957 = vunpack.c.h.b16 %v229
        %v958 = vunpack.c.l.b16 %v230
        %v959 = vunpack.c.h.b16 %v230
        %v960 = vunpack.c.l.b16 %v231
        %v961 = vunpack.c.h.b16 %v231
        %v962 = vunpack.c.l.b16 %v232
        %v963 = vunpack.c.h.b16 %v232
        %v964 = vunpack.c.l.b16 %v233
        %v965 = vunpack.c.h.b16 %v233
        %v966 = vunpack.c.l.b16 %v234
        %v967 = vunpack.c.h.b16 %v234
        %v968 = vunpack.c.l.b16 %v235
        %v969 = vunpack.c.h.b16 %v235
        %v970 = vunpack.c.l.b16 %v236
        %v971 = vunpack.c.h.b16 %v236
        %v972 = vunpack.c.l.b16 %v237
        %v973 = vunpack.c.h.b16 %v237
        %v974 = vunpack.c.l.b16 %v238
        %v975 = vunpack.c.h.b16 %v238
        %v976 = vunpack.c.l.b16 %v239
        %v977 = vunpack.c.h.b16 %v239
        %v978 = vunpack.c.l.b16 %v240
        %v979 = vunpack.c.h.b16 %v240
        %v980 = vunpack.c.l.b16 %v241
        %v981 = vunpack.c.h.b16 %v241
        %v982 = vunpack.c.l.b16 %v242
        %v983 = vunpack.c.h.b16 %v242
        %v984 = vunpack.c.l.b16 %v243
        %v985 = vunpack.c.h.b16 %v243
        %v986 = vunpack.c.l.b16 %v244
        %v987 = vunpack.c.h.b16 %v244
        %v988 = vunpack.c.l.b16 %v245
        %v989 = vunpack.c.h.b16 %v245
        %v990 = vunpack.c.l.b16 %v246
        %v991 = vunpack.c.h.b16 %v246
        %v992 = vunpack.c.l.b16 %v247
        %v993 = vunpack.c.h.b16 %v247
        %v994 = vunpack.c.l.b16 %v248
        %v995 = vunpack.c.h.b16 %v248
        %v996 = vunpack.c.l.b16 %v249
        %v997 = vunpack.c.h.b16 %v249
        %v998 = vunpack.c.l.b16 %v250
        %v999 = vunpack.c.h.b16 %v250
        %v1000 = vunpack.c.l.b16 %v251
        %v1001 = vunpack.c.h.b16 %v251
        %v1002 = vunpack.c.l.b16 %v252
        %v1003 = vunpack.c.h.b16 %v252
        %v1004 = vunpack.c.l.b16 %v253
        %v1005 = vunpack.c.h.b16 %v253
        %v1006 = vunpack.c.l.b16 %v254
        %v1007 = vunpack.c.h.b16 %v254
        %v1008 = vunpack.c.l.b16 %v255
        %v1009 = vunpack.c.h.b16 %v255
        %v1010 = vunpack.c.l.b16 %v256
        %v1011 = vunpack.c.h.b16 %v256
        %v1012 = vunpack.c.l.b16 %v257
        %v1013 = vunpack.c.h.b16 %v257
        %v1014 = vunpack.c.l.b16 %v258
        %v1015 = vunpack.c.h.b16 %v258
        %v1016 = vunpack.c.l.b16 %v259
        %v1017 = vunpack.c.h.b16 %v259
        %v1018 = vunpack.c.l.b16 %v260
        %v1019 = vunpack.c.h.b16 %v260
        %v1020 = vunpack.c.l.b16 %v261
        %v1021 = vunpack.c.h.b16 %v261
        %v1022 = vunpack.c.l.b16 %v262
        %v1023 = vunpack.c.h.b16 %v262
        %v1024 = vunpack.c.l.b16 %v263
        %v1025 = vunpack.c.h.b16 %v263
        %v1026 = vunpack.c.l.b16 %v264
        %v1027 = vunpack.c.h.b16 %v264
        %v1028 = vunpack.c.l.b16 %v265
        %v1029 = vunpack.c.h.b16 %v265
        %v1030 = vpack.c.b16 %v910, %v902
        %v1031 = vpack.c.b16 %v911, %v903
        %v1032 = vpack.c.b16 %v912, %v904
        %v1033 = vpack.c.b16 %v913, %v905
        %v1034 = vpack.c.b16 %v914, %v906
        %v1035 = vpack.c.b16 %v915, %v907
        %v1036 = vpack.c.b16 %v916, %v908
        %v1037 = vpack.c.b16 %v917, %v909
        %v1038 = vpack.c.b16 %v926, %v918
        %v1039 = vpack.c.b16 %v927, %v919
        %v1040 = vpack.c.b16 %v928, %v920
        %v1041 = vpack.c.b16 %v929, %v921
        %v1042 = vpack.c.b16 %v930, %v922
        %v1043 = vpack.c.b16 %v931, %v923
        %v1044 = vpack.c.b16 %v932, %v924
        %v1045 = vpack.c.b16 %v933, %v925
        %v1046 = vpack.c.b16 %v942, %v934
        %v1047 = vpack.c.b16 %v943, %v935
        %v1048 = vpack.c.b16 %v944, %v936
        %v1049 = vpack.c.b16 %v945, %v937
        %v1050 = vpack.c.b16 %v946, %v938
        %v1051 = vpack.c.b16 %v947, %v939
        %v1052 = vpack.c.b16 %v948, %v940
        %v1053 = vpack.c.b16 %v949, %v941
        %v1054 = vpack.c.b16 %v958, %v950
        %v1055 = vpack.c.b16 %v959, %v951
        %v1056 = vpack.c.b16 %v960, %v952
        %v1057 = vpack.c.b16 %v961, %v953
        %v1058 = vpack.c.b16 %v962, %v954
        %v1059 = vpack.c.b16 %v963, %v955
        %v1060 = vpack.c.b16 %v964, %v956
        %v1061 = vpack.c.b16 %v965, %v957
        %v1062 = vpack.c.b16 %v974, %v966
        %v1063 = vpack.c.b16 %v975, %v967
        %v1064 = vpack.c.b16 %v976, %v968
        %v1065 = vpack.c.b16 %v977, %v969
        %v1066 = vpack.c.b16 %v978, %v970
        %v1067 = vpack.c.b16 %v979, %v971
        %v1068 = vpack.c.b16 %v980, %v972
        %v1069 = vpack.c.b16 %v981, %v973
        %v1070 = vpack.c.b16 %v990, %v982
        %v1071 = vpack.c.b16 %v991, %v983
        %v1072 = vpack.c.b16 %v992, %v984
        %v1073 = vpack.c.b16 %v993, %v985
        %v1074 = vpack.c.b16 %v994, %v986
        %v1075 = vpack.c.b16 %v995, %v987
        %v1076 = vpack.c.b16 %v996, %v988
        %v1077 = vpack.c.b16 %v997, %v989
        %v1078 = vpack.c.b16 %v1006, %v998
        %v1079 = vpack.c.b16 %v1007, %v999
        %v1080 = vpack.c.b16 %v1008, %v1000
        %v1081 = vpack.c.b16 %v1009, %v1001
        %v1082 = vpack.c.b16 %v1010, %v1002
        %v1083 = vpack.c.b16 %v1011, %v1003
        %v1084 = vpack.c.b16 %v1012, %v1004
        %v1085 = vpack.c.b16 %v1013, %v1005
        %v1086 = vpack.c.b16 %v1022, %v1014
        %v1087 = vpack.c.b16 %v1023, %v1015
        %v1088 = vpack.c.b16 %v1024, %v1016
        %v1089 = vpack.c.b16 %v1025, %v1017
        %v1090 = vpack.c.b16 %v1026, %v1018
        %v1091 = vpack.c.b16 %v1027, %v1019
        %v1092 = vpack.c.b16 %v1028, %v1020
        %v1093 = vpack.c.b16 %v1029, %v1021
        %1158 = vmatprep.subr.bf16.mxu0 %v1031
        %1159 = vmatpush1.bf16.msra.mxu0 %v1030
        %1160 = vmatprep.subr.bf16.mxu0 %v1039
        %1161 = vmatpush1.bf16.msra.mxu0 %v1038
        %1162 = vmatprep.subr.bf16.mxu0 %v1047
        %1163 = vmatpush1.bf16.msra.mxu0 %v1046
        %1164 = vmatprep.subr.bf16.mxu0 %v1055
        %1165 = vmatpush1.bf16.msra.mxu0 %v1054
        %1166 = vmatprep.subr.bf16.mxu0 %v1063
        %1167 = vmatpush1.bf16.msra.mxu0 %v1062
        %1168 = vmatprep.subr.bf16.mxu0 %v1071
        %1169 = vmatpush1.bf16.msra.mxu0 %v1070
        %1170 = vmatprep.subr.bf16.mxu0 %v1079
        %1171 = vmatpush1.bf16.msra.mxu0 %v1078
        %1172 = vmatprep.subr.bf16.mxu0 %v1087
        %1173 = vmatpush1.bf16.msra.mxu0 %v1086
        %1174 = vmatprep.subr.bf16.mxu0 0
        %1175 = vmatpush1.bf16.msra.mxu0 0
        %1176 = vmatprep.subr.bf16.mxu0 0
        %1177 = vmatpush1.bf16.msra.mxu0 0
        %1178 = vmatprep.subr.bf16.mxu0 0
        %1179 = vmatpush1.bf16.msra.mxu0 0
        %1180 = vmatprep.subr.bf16.mxu0 0
        %1181 = vmatpush1.bf16.msra.mxu0 0
        %1182 = vmatprep.subr.bf16.mxu0 0
        %1183 = vmatpush1.bf16.msra.mxu0 0
        %1184 = vmatprep.subr.bf16.mxu0 0
        %1185 = vmatpush1.bf16.msra.mxu0 0
        %1186 = vmatprep.subr.bf16.mxu0 0
        %1187 = vmatpush1.bf16.msra.mxu0 0
        %1188 = vmatprep.subr.bf16.mxu0 0
        %1189 = vmatpush1.bf16.msra.mxu0 0
        %1190 = vmatprep.mubr.bf16.mxu0 0
        %1191 = vmatmul.mubr.bf16.gmra.mrb[0].mxu0 %v836
        %v1192 = vpop.f32.mrb[0].mxu0
        %v1193 = vadd.f32 %v695, %v1192
        %v1194 = vpop.f32.mrb[0].mxu0
        %v1195 = vadd.f32 %v697, %v1194
        %v1196 = vpop.f32.mrb[0].mxu0
        %v1197 = vadd.f32 %v699, %v1196
        %v1198 = vpop.f32.mrb[0].mxu0
        %v1199 = vadd.f32 %v701, %v1198
        %1200 = vdwg.mxu0
        %1201 = vmatprep.subr.bf16.mxu0 %v1033
        %1202 = vmatpush1.bf16.msra.mxu0 %v1032
        %1203 = vmatprep.subr.bf16.mxu0 %v1041
        %1204 = vmatpush1.bf16.msra.mxu0 %v1040
        %1205 = vmatprep.subr.bf16.mxu0 %v1049
        %1206 = vmatpush1.bf16.msra.mxu0 %v1048
        %1207 = vmatprep.subr.bf16.mxu0 %v1057
        %1208 = vmatpush1.bf16.msra.mxu0 %v1056
        %1209 = vmatprep.subr.bf16.mxu0 %v1065
        %1210 = vmatpush1.bf16.msra.mxu0 %v1064
        %1211 = vmatprep.subr.bf16.mxu0 %v1073
        %1212 = vmatpush1.bf16.msra.mxu0 %v1072
        %1213 = vmatprep.subr.bf16.mxu0 %v1081
        %1214 = vmatpush1.bf16.msra.mxu0 %v1080
        %1215 = vmatprep.subr.bf16.mxu0 %v1089
        %1216 = vmatpush1.bf16.msra.mxu0 %v1088
        %1217 = vmatprep.subr.bf16.mxu0 0
        %1218 = vmatpush1.bf16.msra.mxu0 0
        %1219 = vmatprep.subr.bf16.mxu0 0
        %1220 = vmatpush1.bf16.msra.mxu0 0
        %1221 = vmatprep.subr.bf16.mxu0 0
        %1222 = vmatpush1.bf16.msra.mxu0 0
        %1223 = vmatprep.subr.bf16.mxu0 0
        %1224 = vmatpush1.bf16.msra.mxu0 0
        %1225 = vmatprep.subr.bf16.mxu0 0
        %1226 = vmatpush1.bf16.msra.mxu0 0
        %1227 = vmatprep.subr.bf16.mxu0 0
        %1228 = vmatpush1.bf16.msra.mxu0 0
        %1229 = vmatprep.subr.bf16.mxu0 0
        %1230 = vmatpush1.bf16.msra.mxu0 0
        %1231 = vmatprep.subr.bf16.mxu0 0
        %1232 = vmatpush1.bf16.msra.mxu0 0
        %1233 = vmatprep.mubr.bf16.mxu0 0
        %1234 = vmatmul.mubr.bf16.gmra.mrb[0].mxu0 %v836
        %v1235 = vpop.f32.mrb[0].mxu0
        %v1236 = vadd.f32 %v738, %v1235
        %v1237 = vpop.f32.mrb[0].mxu0
        %v1238 = vadd.f32 %v740, %v1237
        %v1239 = vpop.f32.mrb[0].mxu0
        %v1240 = vadd.f32 %v742, %v1239
        %v1241 = vpop.f32.mrb[0].mxu0
        %v1242 = vadd.f32 %v744, %v1241
        %1243 = vdwg.mxu0
        %1244 = vmatprep.subr.bf16.mxu0 %v1035
        %1245 = vmatpush1.bf16.msra.mxu0 %v1034
        %1246 = vmatprep.subr.bf16.mxu0 %v1043
        %1247 = vmatpush1.bf16.msra.mxu0 %v1042
        %1248 = vmatprep.subr.bf16.mxu0 %v1051
        %1249 = vmatpush1.bf16.msra.mxu0 %v1050
        %1250 = vmatprep.subr.bf16.mxu0 %v1059
        %1251 = vmatpush1.bf16.msra.mxu0 %v1058
        %1252 = vmatprep.subr.bf16.mxu0 %v1067
        %1253 = vmatpush1.bf16.msra.mxu0 %v1066
        %1254 = vmatprep.subr.bf16.mxu0 %v1075
        %1255 = vmatpush1.bf16.msra.mxu0 %v1074
        %1256 = vmatprep.subr.bf16.mxu0 %v1083
        %1257 = vmatpush1.bf16.msra.mxu0 %v1082
        %1258 = vmatprep.subr.bf16.mxu0 %v1091
        %1259 = vmatpush1.bf16.msra.mxu0 %v1090
        %1260 = vmatprep.subr.bf16.mxu0 0
        %1261 = vmatpush1.bf16.msra.mxu0 0
        %1262 = vmatprep.subr.bf16.mxu0 0
        %1263 = vmatpush1.bf16.msra.mxu0 0
        %1264 = vmatprep.subr.bf16.mxu0 0
        %1265 = vmatpush1.bf16.msra.mxu0 0
        %1266 = vmatprep.subr.bf16.mxu0 0
        %1267 = vmatpush1.bf16.msra.mxu0 0
        %1268 = vmatprep.subr.bf16.mxu0 0
        %1269 = vmatpush1.bf16.msra.mxu0 0
        %1270 = vmatprep.subr.bf16.mxu0 0
        %1271 = vmatpush1.bf16.msra.mxu0 0
        %1272 = vmatprep.subr.bf16.mxu0 0
        %1273 = vmatpush1.bf16.msra.mxu0 0
        %1274 = vmatprep.subr.bf16.mxu0 0
        %1275 = vmatpush1.bf16.msra.mxu0 0
        %1276 = vmatprep.mubr.bf16.mxu0 0
        %1277 = vmatmul.mubr.bf16.gmra.mrb[0].mxu0 %v836
        %v1278 = vpop.f32.mrb[0].mxu0
        %v1279 = vadd.f32 %v781, %v1278
        %v1280 = vpop.f32.mrb[0].mxu0
        %v1281 = vadd.f32 %v783, %v1280
        %v1282 = vpop.f32.mrb[0].mxu0
        %v1283 = vadd.f32 %v785, %v1282
        %v1284 = vpop.f32.mrb[0].mxu0
        %v1285 = vadd.f32 %v787, %v1284
        %1286 = vdwg.mxu0
        %1287 = vmatprep.subr.bf16.mxu0 %v1037
        %1288 = vmatpush1.bf16.msra.mxu0 %v1036
        %1289 = vmatprep.subr.bf16.mxu0 %v1045
        %1290 = vmatpush1.bf16.msra.mxu0 %v1044
        %1291 = vmatprep.subr.bf16.mxu0 %v1053
        %1292 = vmatpush1.bf16.msra.mxu0 %v1052
        %1293 = vmatprep.subr.bf16.mxu0 %v1061
        %1294 = vmatpush1.bf16.msra.mxu0 %v1060
        %1295 = vmatprep.subr.bf16.mxu0 %v1069
        %1296 = vmatpush1.bf16.msra.mxu0 %v1068
        %1297 = vmatprep.subr.bf16.mxu0 %v1077
        %1298 = vmatpush1.bf16.msra.mxu0 %v1076
        %1299 = vmatprep.subr.bf16.mxu0 %v1085
        %1300 = vmatpush1.bf16.msra.mxu0 %v1084
        %1301 = vmatprep.subr.bf16.mxu0 %v1093
        %1302 = vmatpush1.bf16.msra.mxu0 %v1092
        %1303 = vmatprep.subr.bf16.mxu0 0
        %1304 = vmatpush1.bf16.msra.mxu0 0
        %1305 = vmatprep.subr.bf16.mxu0 0
        %1306 = vmatpush1.bf16.msra.mxu0 0
        %1307 = vmatprep.subr.bf16.mxu0 0
        %1308 = vmatpush1.bf16.msra.mxu0 0
        %1309 = vmatprep.subr.bf16.mxu0 0
        %1310 = vmatpush1.bf16.msra.mxu0 0
        %1311 = vmatprep.subr.bf16.mxu0 0
        %1312 = vmatpush1.bf16.msra.mxu0 0
        %1313 = vmatprep.subr.bf16.mxu0 0
        %1314 = vmatpush1.bf16.msra.mxu0 0
        %1315 = vmatprep.subr.bf16.mxu0 0
        %1316 = vmatpush1.bf16.msra.mxu0 0
        %1317 = vmatprep.subr.bf16.mxu0 0
        %1318 = vmatpush1.bf16.msra.mxu0 0
        %1319 = vmatprep.mubr.bf16.mxu0 0
        %1320 = vmatmul.mubr.bf16.gmra.mrb[0].mxu0 %v836
        %v1321 = vpop.f32.mrb[0].mxu0
        %v1322 = vadd.f32 %v824, %v1321
        %v1323 = vpop.f32.mrb[0].mxu0
        %v1324 = vadd.f32 %v826, %v1323
        %v1325 = vpop.f32.mrb[0].mxu0
        %v1326 = vadd.f32 %v828, %v1325
        %v1327 = vpop.f32.mrb[0].mxu0
        %v1328 = vadd.f32 %v830, %v1327
        %1329 = vdwg.mxu0
        %v1330 = vld [vmem:[%s193] sm:$0xf]
        %v1331 = vld [vmem:[%s193 + $0x4] sm:$0xf]
        %v1332 = vld [vmem:[%s193 + $0x8] sm:$0x1]
        %s1333 = scalar_lea.vmem [#allocation2], 1024
        %v1334 = vld [vmem:[%s1333] sm:$0xff]
        %v1335 = vld [vmem:[%s1333 + $0x8] sm:$0xff]
        %v1336 = vld [vmem:[%s1333 + $0x10] sm:$0xff]
        %v1337 = vld [vmem:[%s1333 + $0x18] sm:$0xff]
        %v1338 = vld [vmem:[%s1333 + $0x20] sm:$0xff]
        %v1339 = vld [vmem:[%s1333 + $0x28] sm:$0xff]
        %v1340 = vld [vmem:[%s1333 + $0x30] sm:$0xff]
        %v1341 = vld [vmem:[%s1333 + $0x38] sm:$0xff]
        %v1342 = vld [vmem:[%s1333 + $0x40] sm:$0xff]
        %v1343 = vld [vmem:[%s1333 + $0x48] sm:$0xff]
        %v1344 = vld [vmem:[%s1333 + $0x50] sm:$0xff]
        %v1345 = vld [vmem:[%s1333 + $0x58] sm:$0xff]
        %v1346 = vld [vmem:[%s1333 + $0x60] sm:$0xff]
        %v1347 = vld [vmem:[%s1333 + $0x68] sm:$0xff]
        %v1348 = vld [vmem:[%s1333 + $0x70] sm:$0xff]
        %v1349 = vld [vmem:[%s1333 + $0x78] sm:$0xff]
        %v1350 = vld [vmem:[%s1333 + $0x80] sm:$0xff]
        %v1351 = vld [vmem:[%s1333 + $0x88] sm:$0xff]
        %v1352 = vld [vmem:[%s1333 + $0x90] sm:$0xff]
        %v1353 = vld [vmem:[%s1333 + $0x98] sm:$0xff]
        %v1354 = vld [vmem:[%s1333 + $0xa0] sm:$0xff]
        %v1355 = vld [vmem:[%s1333 + $0xa8] sm:$0xff]
        %v1356 = vld [vmem:[%s1333 + $0xb0] sm:$0xff]
        %v1357 = vld [vmem:[%s1333 + $0xb8] sm:$0xff]
        %v1358 = vld [vmem:[%s1333 + $0xc0] sm:$0xff]
        %v1359 = vld [vmem:[%s1333 + $0xc8] sm:$0xff]
        %v1360 = vld [vmem:[%s1333 + $0xd0] sm:$0xff]
        %v1361 = vld [vmem:[%s1333 + $0xd8] sm:$0xff]
        %v1362 = vld [vmem:[%s1333 + $0xe0] sm:$0xff]
        %v1363 = vld [vmem:[%s1333 + $0xe8] sm:$0xff]
        %v1364 = vld [vmem:[%s1333 + $0xf0] sm:$0xff]
        %v1365 = vld [vmem:[%s1333 + $0xf8] sm:$0xff]
        %v1366 = vld [vmem:[%s1333 + $0x100] sm:$0xff]
        %v1367 = vld [vmem:[%s1333 + $0x108] sm:$0xff]
        %v1368 = vld [vmem:[%s1333 + $0x110] sm:$0xff]
        %v1369 = vld [vmem:[%s1333 + $0x118] sm:$0xff]
        %v1370 = vld [vmem:[%s1333 + $0x120] sm:$0xff]
        %v1371 = vld [vmem:[%s1333 + $0x128] sm:$0xff]
        %v1372 = vld [vmem:[%s1333 + $0x130] sm:$0xff]
        %v1373 = vld [vmem:[%s1333 + $0x138] sm:$0xff]
        %v1374 = vld [vmem:[%s1333 + $0x140] sm:$0xff]
        %v1375 = vld [vmem:[%s1333 + $0x148] sm:$0xff]
        %v1376 = vld [vmem:[%s1333 + $0x150] sm:$0xff]
        %v1377 = vld [vmem:[%s1333 + $0x158] sm:$0xff]
        %v1378 = vld [vmem:[%s1333 + $0x160] sm:$0xff]
        %v1379 = vld [vmem:[%s1333 + $0x168] sm:$0xff]
        %v1380 = vld [vmem:[%s1333 + $0x170] sm:$0xff]
        %v1381 = vld [vmem:[%s1333 + $0x178] sm:$0xff]
        %v1382 = vld [vmem:[%s1333 + $0x180] sm:$0xff]
        %v1383 = vld [vmem:[%s1333 + $0x188] sm:$0xff]
        %v1384 = vld [vmem:[%s1333 + $0x190] sm:$0xff]
        %v1385 = vld [vmem:[%s1333 + $0x198] sm:$0xff]
        %v1386 = vld [vmem:[%s1333 + $0x1a0] sm:$0xff]
        %v1387 = vld [vmem:[%s1333 + $0x1a8] sm:$0xff]
        %v1388 = vld [vmem:[%s1333 + $0x1b0] sm:$0xff]
        %v1389 = vld [vmem:[%s1333 + $0x1b8] sm:$0xff]
        %v1390 = vld [vmem:[%s1333 + $0x1c0] sm:$0xff]
        %v1391 = vld [vmem:[%s1333 + $0x1c8] sm:$0xff]
        %v1392 = vld [vmem:[%s1333 + $0x1d0] sm:$0xff]
        %v1393 = vld [vmem:[%s1333 + $0x1d8] sm:$0xff]
        %v1394 = vld [vmem:[%s1333 + $0x1e0] sm:$0xff]
        %v1395 = vld [vmem:[%s1333 + $0x1e8] sm:$0xff]
        %v1396 = vld [vmem:[%s1333 + $0x1f0] sm:$0xff]
        %v1397 = vld [vmem:[%s1333 + $0x1f8] sm:$0xff]
        %v1401 = vunpack.c.l.b16 %v1330
        %v1402 = vunpack.c.l.b16 %v1331
        %v1403 = vunpack.c.l.b16 %v1332
        %v1404 = vpack.c.b16 %v1402, %v1401
        %v1405 = vpack.c.b16 %v1403, %v1403
        %vm1406 = vsmask.f32 7424
        %v1408 = vshrl.u32 %v1404, 16
        %v1410 = vshll.u32 %v1404, 16
        %v1412 = vrot.slane %v1410, 1
        %v1413 = vor.u32 %v1408, %v1412
        %v1415 = vshll.u32 %v1405, 16
        %v1417 = vrot.slane %v1415, 1
        %v1418 = vsel %vm1406, %v1413, %v1417
        %v1484 = vunpack.c.l.b16 %v1334
        %v1485 = vunpack.c.h.b16 %v1334
        %v1486 = vunpack.c.l.b16 %v1335
        %v1487 = vunpack.c.h.b16 %v1335
        %v1488 = vunpack.c.l.b16 %v1336
        %v1489 = vunpack.c.h.b16 %v1336
        %v1490 = vunpack.c.l.b16 %v1337
        %v1491 = vunpack.c.h.b16 %v1337
        %v1492 = vunpack.c.l.b16 %v1338
        %v1493 = vunpack.c.h.b16 %v1338
        %v1494 = vunpack.c.l.b16 %v1339
        %v1495 = vunpack.c.h.b16 %v1339
        %v1496 = vunpack.c.l.b16 %v1340
        %v1497 = vunpack.c.h.b16 %v1340
        %v1498 = vunpack.c.l.b16 %v1341
        %v1499 = vunpack.c.h.b16 %v1341
        %v1500 = vunpack.c.l.b16 %v1342
        %v1501 = vunpack.c.h.b16 %v1342
        %v1502 = vunpack.c.l.b16 %v1343
        %v1503 = vunpack.c.h.b16 %v1343
        %v1504 = vunpack.c.l.b16 %v1344
        %v1505 = vunpack.c.h.b16 %v1344
        %v1506 = vunpack.c.l.b16 %v1345
        %v1507 = vunpack.c.h.b16 %v1345
        %v1508 = vunpack.c.l.b16 %v1346
        %v1509 = vunpack.c.h.b16 %v1346
        %v1510 = vunpack.c.l.b16 %v1347
        %v1511 = vunpack.c.h.b16 %v1347
        %v1512 = vunpack.c.l.b16 %v1348
        %v1513 = vunpack.c.h.b16 %v1348
        %v1514 = vunpack.c.l.b16 %v1349
        %v1515 = vunpack.c.h.b16 %v1349
        %v1516 = vunpack.c.l.b16 %v1350
        %v1517 = vunpack.c.h.b16 %v1350
        %v1518 = vunpack.c.l.b16 %v1351
        %v1519 = vunpack.c.h.b16 %v1351
        %v1520 = vunpack.c.l.b16 %v1352
        %v1521 = vunpack.c.h.b16 %v1352
        %v1522 = vunpack.c.l.b16 %v1353
        %v1523 = vunpack.c.h.b16 %v1353
        %v1524 = vunpack.c.l.b16 %v1354
        %v1525 = vunpack.c.h.b16 %v1354
        %v1526 = vunpack.c.l.b16 %v1355
        %v1527 = vunpack.c.h.b16 %v1355
        %v1528 = vunpack.c.l.b16 %v1356
        %v1529 = vunpack.c.h.b16 %v1356
        %v1530 = vunpack.c.l.b16 %v1357
        %v1531 = vunpack.c.h.b16 %v1357
        %v1532 = vunpack.c.l.b16 %v1358
        %v1533 = vunpack.c.h.b16 %v1358
        %v1534 = vunpack.c.l.b16 %v1359
        %v1535 = vunpack.c.h.b16 %v1359
        %v1536 = vunpack.c.l.b16 %v1360
        %v1537 = vunpack.c.h.b16 %v1360
        %v1538 = vunpack.c.l.b16 %v1361
        %v1539 = vunpack.c.h.b16 %v1361
        %v1540 = vunpack.c.l.b16 %v1362
        %v1541 = vunpack.c.h.b16 %v1362
        %v1542 = vunpack.c.l.b16 %v1363
        %v1543 = vunpack.c.h.b16 %v1363
        %v1544 = vunpack.c.l.b16 %v1364
        %v1545 = vunpack.c.h.b16 %v1364
        %v1546 = vunpack.c.l.b16 %v1365
        %v1547 = vunpack.c.h.b16 %v1365
        %v1548 = vunpack.c.l.b16 %v1366
        %v1549 = vunpack.c.h.b16 %v1366
        %v1550 = vunpack.c.l.b16 %v1367
        %v1551 = vunpack.c.h.b16 %v1367
        %v1552 = vunpack.c.l.b16 %v1368
        %v1553 = vunpack.c.h.b16 %v1368
        %v1554 = vunpack.c.l.b16 %v1369
        %v1555 = vunpack.c.h.b16 %v1369
        %v1556 = vunpack.c.l.b16 %v1370
        %v1557 = vunpack.c.h.b16 %v1370
        %v1558 = vunpack.c.l.b16 %v1371
        %v1559 = vunpack.c.h.b16 %v1371
        %v1560 = vunpack.c.l.b16 %v1372
        %v1561 = vunpack.c.h.b16 %v1372
        %v1562 = vunpack.c.l.b16 %v1373
        %v1563 = vunpack.c.h.b16 %v1373
        %v1564 = vunpack.c.l.b16 %v1374
        %v1565 = vunpack.c.h.b16 %v1374
        %v1566 = vunpack.c.l.b16 %v1375
        %v1567 = vunpack.c.h.b16 %v1375
        %v1568 = vunpack.c.l.b16 %v1376
        %v1569 = vunpack.c.h.b16 %v1376
        %v1570 = vunpack.c.l.b16 %v1377
        %v1571 = vunpack.c.h.b16 %v1377
        %v1572 = vunpack.c.l.b16 %v1378
        %v1573 = vunpack.c.h.b16 %v1378
        %v1574 = vunpack.c.l.b16 %v1379
        %v1575 = vunpack.c.h.b16 %v1379
        %v1576 = vunpack.c.l.b16 %v1380
        %v1577 = vunpack.c.h.b16 %v1380
        %v1578 = vunpack.c.l.b16 %v1381
        %v1579 = vunpack.c.h.b16 %v1381
        %v1580 = vunpack.c.l.b16 %v1382
        %v1581 = vunpack.c.h.b16 %v1382
        %v1582 = vunpack.c.l.b16 %v1383
        %v1583 = vunpack.c.h.b16 %v1383
        %v1584 = vunpack.c.l.b16 %v1384
        %v1585 = vunpack.c.h.b16 %v1384
        %v1586 = vunpack.c.l.b16 %v1385
        %v1587 = vunpack.c.h.b16 %v1385
        %v1588 = vunpack.c.l.b16 %v1386
        %v1589 = vunpack.c.h.b16 %v1386
        %v1590 = vunpack.c.l.b16 %v1387
        %v1591 = vunpack.c.h.b16 %v1387
        %v1592 = vunpack.c.l.b16 %v1388
        %v1593 = vunpack.c.h.b16 %v1388
        %v1594 = vunpack.c.l.b16 %v1389
        %v1595 = vunpack.c.h.b16 %v1389
        %v1596 = vunpack.c.l.b16 %v1390
        %v1597 = vunpack.c.h.b16 %v1390
        %v1598 = vunpack.c.l.b16 %v1391
        %v1599 = vunpack.c.h.b16 %v1391
        %v1600 = vunpack.c.l.b16 %v1392
        %v1601 = vunpack.c.h.b16 %v1392
        %v1602 = vunpack.c.l.b16 %v1393
        %v1603 = vunpack.c.h.b16 %v1393
        %v1604 = vunpack.c.l.b16 %v1394
        %v1605 = vunpack.c.h.b16 %v1394
        %v1606 = vunpack.c.l.b16 %v1395
        %v1607 = vunpack.c.h.b16 %v1395
        %v1608 = vunpack.c.l.b16 %v1396
        %v1609 = vunpack.c.h.b16 %v1396
        %v1610 = vunpack.c.l.b16 %v1397
        %v1611 = vunpack.c.h.b16 %v1397
        %v1612 = vpack.c.b16 %v1492, %v1484
        %v1613 = vpack.c.b16 %v1493, %v1485
        %v1614 = vpack.c.b16 %v1494, %v1486
        %v1615 = vpack.c.b16 %v1495, %v1487
        %v1616 = vpack.c.b16 %v1496, %v1488
        %v1617 = vpack.c.b16 %v1497, %v1489
        %v1618 = vpack.c.b16 %v1498, %v1490
        %v1619 = vpack.c.b16 %v1499, %v1491
        %v1620 = vpack.c.b16 %v1508, %v1500
        %v1621 = vpack.c.b16 %v1509, %v1501
        %v1622 = vpack.c.b16 %v1510, %v1502
        %v1623 = vpack.c.b16 %v1511, %v1503
        %v1624 = vpack.c.b16 %v1512, %v1504
        %v1625 = vpack.c.b16 %v1513, %v1505
        %v1626 = vpack.c.b16 %v1514, %v1506
        %v1627 = vpack.c.b16 %v1515, %v1507
        %v1628 = vpack.c.b16 %v1524, %v1516
        %v1629 = vpack.c.b16 %v1525, %v1517
        %v1630 = vpack.c.b16 %v1526, %v1518
        %v1631 = vpack.c.b16 %v1527, %v1519
        %v1632 = vpack.c.b16 %v1528, %v1520
        %v1633 = vpack.c.b16 %v1529, %v1521
        %v1634 = vpack.c.b16 %v1530, %v1522
        %v1635 = vpack.c.b16 %v1531, %v1523
        %v1636 = vpack.c.b16 %v1540, %v1532
        %v1637 = vpack.c.b16 %v1541, %v1533
        %v1638 = vpack.c.b16 %v1542, %v1534
        %v1639 = vpack.c.b16 %v1543, %v1535
        %v1640 = vpack.c.b16 %v1544, %v1536
        %v1641 = vpack.c.b16 %v1545, %v1537
        %v1642 = vpack.c.b16 %v1546, %v1538
        %v1643 = vpack.c.b16 %v1547, %v1539
        %v1644 = vpack.c.b16 %v1556, %v1548
        %v1645 = vpack.c.b16 %v1557, %v1549
        %v1646 = vpack.c.b16 %v1558, %v1550
        %v1647 = vpack.c.b16 %v1559, %v1551
        %v1648 = vpack.c.b16 %v1560, %v1552
        %v1649 = vpack.c.b16 %v1561, %v1553
        %v1650 = vpack.c.b16 %v1562, %v1554
        %v1651 = vpack.c.b16 %v1563, %v1555
        %v1652 = vpack.c.b16 %v1572, %v1564
        %v1653 = vpack.c.b16 %v1573, %v1565
        %v1654 = vpack.c.b16 %v1574, %v1566
        %v1655 = vpack.c.b16 %v1575, %v1567
        %v1656 = vpack.c.b16 %v1576, %v1568
        %v1657 = vpack.c.b16 %v1577, %v1569
        %v1658 = vpack.c.b16 %v1578, %v1570
        %v1659 = vpack.c.b16 %v1579, %v1571
        %v1660 = vpack.c.b16 %v1588, %v1580
        %v1661 = vpack.c.b16 %v1589, %v1581
        %v1662 = vpack.c.b16 %v1590, %v1582
        %v1663 = vpack.c.b16 %v1591, %v1583
        %v1664 = vpack.c.b16 %v1592, %v1584
        %v1665 = vpack.c.b16 %v1593, %v1585
        %v1666 = vpack.c.b16 %v1594, %v1586
        %v1667 = vpack.c.b16 %v1595, %v1587
        %v1668 = vpack.c.b16 %v1604, %v1596
        %v1669 = vpack.c.b16 %v1605, %v1597
        %v1670 = vpack.c.b16 %v1606, %v1598
        %v1671 = vpack.c.b16 %v1607, %v1599
        %v1672 = vpack.c.b16 %v1608, %v1600
        %v1673 = vpack.c.b16 %v1609, %v1601
        %v1674 = vpack.c.b16 %v1610, %v1602
        %v1675 = vpack.c.b16 %v1611, %v1603
        %1740 = vmatprep.subr.bf16.mxu0 %v1613
        %1741 = vmatpush1.bf16.msra.mxu0 %v1612
        %1742 = vmatprep.subr.bf16.mxu0 %v1621
        %1743 = vmatpush1.bf16.msra.mxu0 %v1620
        %1744 = vmatprep.subr.bf16.mxu0 %v1629
        %1745 = vmatpush1.bf16.msra.mxu0 %v1628
        %1746 = vmatprep.subr.bf16.mxu0 %v1637
        %1747 = vmatpush1.bf16.msra.mxu0 %v1636
        %1748 = vmatprep.subr.bf16.mxu0 %v1645
        %1749 = vmatpush1.bf16.msra.mxu0 %v1644
        %1750 = vmatprep.subr.bf16.mxu0 %v1653
        %1751 = vmatpush1.bf16.msra.mxu0 %v1652
        %1752 = vmatprep.subr.bf16.mxu0 %v1661
        %1753 = vmatpush1.bf16.msra.mxu0 %v1660
        %1754 = vmatprep.subr.bf16.mxu0 %v1669
        %1755 = vmatpush1.bf16.msra.mxu0 %v1668
        %1756 = vmatprep.subr.bf16.mxu0 0
        %1757 = vmatpush1.bf16.msra.mxu0 0
        %1758 = vmatprep.subr.bf16.mxu0 0
        %1759 = vmatpush1.bf16.msra.mxu0 0
        %1760 = vmatprep.subr.bf16.mxu0 0
        %1761 = vmatpush1.bf16.msra.mxu0 0
        %1762 = vmatprep.subr.bf16.mxu0 0
        %1763 = vmatpush1.bf16.msra.mxu0 0
        %1764 = vmatprep.subr.bf16.mxu0 0
        %1765 = vmatpush1.bf16.msra.mxu0 0
        %1766 = vmatprep.subr.bf16.mxu0 0
        %1767 = vmatpush1.bf16.msra.mxu0 0
        %1768 = vmatprep.subr.bf16.mxu0 0
        %1769 = vmatpush1.bf16.msra.mxu0 0
        %1770 = vmatprep.subr.bf16.mxu0 0
        %1771 = vmatpush1.bf16.msra.mxu0 0
        %1772 = vmatprep.mubr.bf16.mxu0 0
        %1773 = vmatmul.mubr.bf16.gmra.mrb[0].mxu0 %v1418
        %v1774 = vpop.f32.mrb[0].mxu0
        %v1775 = vadd.f32 0.0, %v1774
        %v1776 = vpop.f32.mrb[0].mxu0
        %v1777 = vadd.f32 0.0, %v1776
        %v1778 = vpop.f32.mrb[0].mxu0
        %v1779 = vadd.f32 0.0, %v1778
        %v1780 = vpop.f32.mrb[0].mxu0
        %v1781 = vadd.f32 0.0, %v1780
        %1782 = vdwg.mxu0
        %1783 = vmatprep.subr.bf16.mxu0 %v1615
        %1784 = vmatpush1.bf16.msra.mxu0 %v1614
        %1785 = vmatprep.subr.bf16.mxu0 %v1623
        %1786 = vmatpush1.bf16.msra.mxu0 %v1622
        %1787 = vmatprep.subr.bf16.mxu0 %v1631
        %1788 = vmatpush1.bf16.msra.mxu0 %v1630
        %1789 = vmatprep.subr.bf16.mxu0 %v1639
        %1790 = vmatpush1.bf16.msra.mxu0 %v1638
        %1791 = vmatprep.subr.bf16.mxu0 %v1647
        %1792 = vmatpush1.bf16.msra.mxu0 %v1646
        %1793 = vmatprep.subr.bf16.mxu0 %v1655
        %1794 = vmatpush1.bf16.msra.mxu0 %v1654
        %1795 = vmatprep.subr.bf16.mxu0 %v1663
        %1796 = vmatpush1.bf16.msra.mxu0 %v1662
        %1797 = vmatprep.subr.bf16.mxu0 %v1671
        %1798 = vmatpush1.bf16.msra.mxu0 %v1670
        %1799 = vmatprep.subr.bf16.mxu0 0
        %1800 = vmatpush1.bf16.msra.mxu0 0
        %1801 = vmatprep.subr.bf16.mxu0 0
        %1802 = vmatpush1.bf16.msra.mxu0 0
        %1803 = vmatprep.subr.bf16.mxu0 0
        %1804 = vmatpush1.bf16.msra.mxu0 0
        %1805 = vmatprep.subr.bf16.mxu0 0
        %1806 = vmatpush1.bf16.msra.mxu0 0
        %1807 = vmatprep.subr.bf16.mxu0 0
        %1808 = vmatpush1.bf16.msra.mxu0 0
        %1809 = vmatprep.subr.bf16.mxu0 0
        %1810 = vmatpush1.bf16.msra.mxu0 0
        %1811 = vmatprep.subr.bf16.mxu0 0
        %1812 = vmatpush1.bf16.msra.mxu0 0
        %1813 = vmatprep.subr.bf16.mxu0 0
        %1814 = vmatpush1.bf16.msra.mxu0 0
        %1815 = vmatprep.mubr.bf16.mxu0 0
        %1816 = vmatmul.mubr.bf16.gmra.mrb[0].mxu0 %v1418
        %v1817 = vpop.f32.mrb[0].mxu0
        %v1818 = vadd.f32 0.0, %v1817
        %v1819 = vpop.f32.mrb[0].mxu0
        %v1820 = vadd.f32 0.0, %v1819
        %v1821 = vpop.f32.mrb[0].mxu0
        %v1822 = vadd.f32 0.0, %v1821
        %v1823 = vpop.f32.mrb[0].mxu0
        %v1824 = vadd.f32 0.0, %v1823
        %1825 = vdwg.mxu0
        %1826 = vmatprep.subr.bf16.mxu0 %v1617
        %1827 = vmatpush1.bf16.msra.mxu0 %v1616
        %1828 = vmatprep.subr.bf16.mxu0 %v1625
        %1829 = vmatpush1.bf16.msra.mxu0 %v1624
        %1830 = vmatprep.subr.bf16.mxu0 %v1633
        %1831 = vmatpush1.bf16.msra.mxu0 %v1632
        %1832 = vmatprep.subr.bf16.mxu0 %v1641
        %1833 = vmatpush1.bf16.msra.mxu0 %v1640
        %1834 = vmatprep.subr.bf16.mxu0 %v1649
        %1835 = vmatpush1.bf16.msra.mxu0 %v1648
        %1836 = vmatprep.subr.bf16.mxu0 %v1657
        %1837 = vmatpush1.bf16.msra.mxu0 %v1656
        %1838 = vmatprep.subr.bf16.mxu0 %v1665
        %1839 = vmatpush1.bf16.msra.mxu0 %v1664
        %1840 = vmatprep.subr.bf16.mxu0 %v1673
        %1841 = vmatpush1.bf16.msra.mxu0 %v1672
        %1842 = vmatprep.subr.bf16.mxu0 0
        %1843 = vmatpush1.bf16.msra.mxu0 0
        %1844 = vmatprep.subr.bf16.mxu0 0
        %1845 = vmatpush1.bf16.msra.mxu0 0
        %1846 = vmatprep.subr.bf16.mxu0 0
        %1847 = vmatpush1.bf16.msra.mxu0 0
        %1848 = vmatprep.subr.bf16.mxu0 0
        %1849 = vmatpush1.bf16.msra.mxu0 0
        %1850 = vmatprep.subr.bf16.mxu0 0
        %1851 = vmatpush1.bf16.msra.mxu0 0
        %1852 = vmatprep.subr.bf16.mxu0 0
        %1853 = vmatpush1.bf16.msra.mxu0 0
        %1854 = vmatprep.subr.bf16.mxu0 0
        %1855 = vmatpush1.bf16.msra.mxu0 0
        %1856 = vmatprep.subr.bf16.mxu0 0
        %1857 = vmatpush1.bf16.msra.mxu0 0
        %1858 = vmatprep.mubr.bf16.mxu0 0
        %1859 = vmatmul.mubr.bf16.gmra.mrb[0].mxu0 %v1418
        %v1860 = vpop.f32.mrb[0].mxu0
        %v1861 = vadd.f32 0.0, %v1860
        %v1862 = vpop.f32.mrb[0].mxu0
        %v1863 = vadd.f32 0.0, %v1862
        %v1864 = vpop.f32.mrb[0].mxu0
        %v1865 = vadd.f32 0.0, %v1864
        %v1866 = vpop.f32.mrb[0].mxu0
        %v1867 = vadd.f32 0.0, %v1866
        %1868 = vdwg.mxu0
        %1869 = vmatprep.subr.bf16.mxu0 %v1619
        %1870 = vmatpush1.bf16.msra.mxu0 %v1618
        %1871 = vmatprep.subr.bf16.mxu0 %v1627
        %1872 = vmatpush1.bf16.msra.mxu0 %v1626
        %1873 = vmatprep.subr.bf16.mxu0 %v1635
        %1874 = vmatpush1.bf16.msra.mxu0 %v1634
        %1875 = vmatprep.subr.bf16.mxu0 %v1643
        %1876 = vmatpush1.bf16.msra.mxu0 %v1642
        %1877 = vmatprep.subr.bf16.mxu0 %v1651
        %1878 = vmatpush1.bf16.msra.mxu0 %v1650
        %1879 = vmatprep.subr.bf16.mxu0 %v1659
        %1880 = vmatpush1.bf16.msra.mxu0 %v1658
        %1881 = vmatprep.subr.bf16.mxu0 %v1667
        %1882 = vmatpush1.bf16.msra.mxu0 %v1666
        %1883 = vmatprep.subr.bf16.mxu0 %v1675
        %1884 = vmatpush1.bf16.msra.mxu0 %v1674
        %1885 = vmatprep.subr.bf16.mxu0 0
        %1886 = vmatpush1.bf16.msra.mxu0 0
        %1887 = vmatprep.subr.bf16.mxu0 0
        %1888 = vmatpush1.bf16.msra.mxu0 0
        %1889 = vmatprep.subr.bf16.mxu0 0
        %1890 = vmatpush1.bf16.msra.mxu0 0
        %1891 = vmatprep.subr.bf16.mxu0 0
        %1892 = vmatpush1.bf16.msra.mxu0 0
        %1893 = vmatprep.subr.bf16.mxu0 0
        %1894 = vmatpush1.bf16.msra.mxu0 0
        %1895 = vmatprep.subr.bf16.mxu0 0
        %1896 = vmatpush1.bf16.msra.mxu0 0
        %1897 = vmatprep.subr.bf16.mxu0 0
        %1898 = vmatpush1.bf16.msra.mxu0 0
        %1899 = vmatprep.subr.bf16.mxu0 0
        %1900 = vmatpush1.bf16.msra.mxu0 0
        %1901 = vmatprep.mubr.bf16.mxu0 0
        %1902 = vmatmul.mubr.bf16.gmra.mrb[0].mxu0 %v1418
        %v1903 = vpop.f32.mrb[0].mxu0
        %v1904 = vadd.f32 0.0, %v1903
        %v1905 = vpop.f32.mrb[0].mxu0
        %v1906 = vadd.f32 0.0, %v1905
        %v1907 = vpop.f32.mrb[0].mxu0
        %v1908 = vadd.f32 0.0, %v1907
        %v1909 = vpop.f32.mrb[0].mxu0
        %v1910 = vadd.f32 0.0, %v1909
        %1911 = vdwg.mxu0
        %v1912 = vadd.f32 %v1193, %v1775
        %v1913 = vadd.f32 %v1195, %v1777
        %v1914 = vadd.f32 %v1236, %v1818
        %v1915 = vadd.f32 %v1238, %v1820
        %v1916 = vadd.f32 %v1279, %v1861
        %v1917 = vadd.f32 %v1281, %v1863
        %v1918 = vadd.f32 %v1322, %v1904
        %v1919 = vadd.f32 %v1324, %v1906
        %v1920 = vadd.f32 %v1197, %v1779
        %v1921 = vadd.f32 %v1199, %v1781
        %v1922 = vadd.f32 %v1240, %v1822
        %v1923 = vadd.f32 %v1242, %v1824
        %v1924 = vadd.f32 %v1283, %v1865
        %v1925 = vadd.f32 %v1285, %v1867
        %v1926 = vadd.f32 %v1326, %v1908
        %v1927 = vadd.f32 %v1328, %v1910
        %v1928 = vld [vmem:[%s266] sm:$0xf]
        %v1929 = vld [vmem:[%s266 + $0x4] sm:$0xf]
        %v1930 = vld [vmem:[%s266 + $0x8] sm:$0x1]
        %s1931 = scalar_lea.vmem [#allocation2], 1536
        %v1932 = vld [vmem:[%s1931] sm:$0xff]
        %v1933 = vld [vmem:[%s1931 + $0x8] sm:$0xff]
        %v1934 = vld [vmem:[%s1931 + $0x10] sm:$0xff]
        %v1935 = vld [vmem:[%s1931 + $0x18] sm:$0xff]
        %v1936 = vld [vmem:[%s1931 + $0x20] sm:$0xff]
        %v1937 = vld [vmem:[%s1931 + $0x28] sm:$0xff]
        %v1938 = vld [vmem:[%s1931 + $0x30] sm:$0xff]
        %v1939 = vld [vmem:[%s1931 + $0x38] sm:$0xff]
        %v1940 = vld [vmem:[%s1931 + $0x40] sm:$0xff]
        %v1941 = vld [vmem:[%s1931 + $0x48] sm:$0xff]
        %v1942 = vld [vmem:[%s1931 + $0x50] sm:$0xff]
        %v1943 = vld [vmem:[%s1931 + $0x58] sm:$0xff]
        %v1944 = vld [vmem:[%s1931 + $0x60] sm:$0xff]
        %v1945 = vld [vmem:[%s1931 + $0x68] sm:$0xff]
        %v1946 = vld [vmem:[%s1931 + $0x70] sm:$0xff]
        %v1947 = vld [vmem:[%s1931 + $0x78] sm:$0xff]
        %v1948 = vld [vmem:[%s1931 + $0x80] sm:$0xff]
        %v1949 = vld [vmem:[%s1931 + $0x88] sm:$0xff]
        %v1950 = vld [vmem:[%s1931 + $0x90] sm:$0xff]
        %v1951 = vld [vmem:[%s1931 + $0x98] sm:$0xff]
        %v1952 = vld [vmem:[%s1931 + $0xa0] sm:$0xff]
        %v1953 = vld [vmem:[%s1931 + $0xa8] sm:$0xff]
        %v1954 = vld [vmem:[%s1931 + $0xb0] sm:$0xff]
        %v1955 = vld [vmem:[%s1931 + $0xb8] sm:$0xff]
        %v1956 = vld [vmem:[%s1931 + $0xc0] sm:$0xff]
        %v1957 = vld [vmem:[%s1931 + $0xc8] sm:$0xff]
        %v1958 = vld [vmem:[%s1931 + $0xd0] sm:$0xff]
        %v1959 = vld [vmem:[%s1931 + $0xd8] sm:$0xff]
        %v1960 = vld [vmem:[%s1931 + $0xe0] sm:$0xff]
        %v1961 = vld [vmem:[%s1931 + $0xe8] sm:$0xff]
        %v1962 = vld [vmem:[%s1931 + $0xf0] sm:$0xff]
        %v1963 = vld [vmem:[%s1931 + $0xf8] sm:$0xff]
        %v1964 = vld [vmem:[%s1931 + $0x100] sm:$0xff]
        %v1965 = vld [vmem:[%s1931 + $0x108] sm:$0xff]
        %v1966 = vld [vmem:[%s1931 + $0x110] sm:$0xff]
        %v1967 = vld [vmem:[%s1931 + $0x118] sm:$0xff]
        %v1968 = vld [vmem:[%s1931 + $0x120] sm:$0xff]
        %v1969 = vld [vmem:[%s1931 + $0x128] sm:$0xff]
        %v1970 = vld [vmem:[%s1931 + $0x130] sm:$0xff]
        %v1971 = vld [vmem:[%s1931 + $0x138] sm:$0xff]
        %v1972 = vld [vmem:[%s1931 + $0x140] sm:$0xff]
        %v1973 = vld [vmem:[%s1931 + $0x148] sm:$0xff]
        %v1974 = vld [vmem:[%s1931 + $0x150] sm:$0xff]
        %v1975 = vld [vmem:[%s1931 + $0x158] sm:$0xff]
        %v1976 = vld [vmem:[%s1931 + $0x160] sm:$0xff]
        %v1977 = vld [vmem:[%s1931 + $0x168] sm:$0xff]
        %v1978 = vld [vmem:[%s1931 + $0x170] sm:$0xff]
        %v1979 = vld [vmem:[%s1931 + $0x178] sm:$0xff]
        %v1980 = vld [vmem:[%s1931 + $0x180] sm:$0xff]
        %v1981 = vld [vmem:[%s1931 + $0x188] sm:$0xff]
        %v1982 = vld [vmem:[%s1931 + $0x190] sm:$0xff]
        %v1983 = vld [vmem:[%s1931 + $0x198] sm:$0xff]
        %v1984 = vld [vmem:[%s1931 + $0x1a0] sm:$0xff]
        %v1985 = vld [vmem:[%s1931 + $0x1a8] sm:$0xff]
        %v1986 = vld [vmem:[%s1931 + $0x1b0] sm:$0xff]
        %v1987 = vld [vmem:[%s1931 + $0x1b8] sm:$0xff]
        %v1988 = vld [vmem:[%s1931 + $0x1c0] sm:$0xff]
        %v1989 = vld [vmem:[%s1931 + $0x1c8] sm:$0xff]
        %v1990 = vld [vmem:[%s1931 + $0x1d0] sm:$0xff]
        %v1991 = vld [vmem:[%s1931 + $0x1d8] sm:$0xff]
        %v1992 = vld [vmem:[%s1931 + $0x1e0] sm:$0xff]
        %v1993 = vld [vmem:[%s1931 + $0x1e8] sm:$0xff]
        %v1994 = vld [vmem:[%s1931 + $0x1f0] sm:$0xff]
        %v1995 = vld [vmem:[%s1931 + $0x1f8] sm:$0xff]
        %v1999 = vunpack.c.l.b16 %v1928
        %v2000 = vunpack.c.l.b16 %v1929
        %v2001 = vunpack.c.l.b16 %v1930
        %v2002 = vpack.c.b16 %v2000, %v1999
        %v2003 = vpack.c.b16 %v2001, %v2001
        %v2005 = vshrl.u32 %v2002, 16
        %v2007 = vshll.u32 %v2002, 16
        %v2009 = vrot.slane %v2007, 1
        %v2010 = vor.u32 %v2005, %v2009
        %v2012 = vshll.u32 %v2003, 16
        %v2014 = vrot.slane %v2012, 1
        %v2015 = vsel %vm1406, %v2010, %v2014
        %v2081 = vunpack.c.l.b16 %v1932
        %v2082 = vunpack.c.h.b16 %v1932
        %v2083 = vunpack.c.l.b16 %v1933
        %v2084 = vunpack.c.h.b16 %v1933
        %v2085 = vunpack.c.l.b16 %v1934
        %v2086 = vunpack.c.h.b16 %v1934
        %v2087 = vunpack.c.l.b16 %v1935
        %v2088 = vunpack.c.h.b16 %v1935
        %v2089 = vunpack.c.l.b16 %v1936
        %v2090 = vunpack.c.h.b16 %v1936
        %v2091 = vunpack.c.l.b16 %v1937
        %v2092 = vunpack.c.h.b16 %v1937
        %v2093 = vunpack.c.l.b16 %v1938
        %v2094 = vunpack.c.h.b16 %v1938
        %v2095 = vunpack.c.l.b16 %v1939
        %v2096 = vunpack.c.h.b16 %v1939
        %v2097 = vunpack.c.l.b16 %v1940
        %v2098 = vunpack.c.h.b16 %v1940
        %v2099 = vunpack.c.l.b16 %v1941
        %v2100 = vunpack.c.h.b16 %v1941
        %v2101 = vunpack.c.l.b16 %v1942
        %v2102 = vunpack.c.h.b16 %v1942
        %v2103 = vunpack.c.l.b16 %v1943
        %v2104 = vunpack.c.h.b16 %v1943
        %v2105 = vunpack.c.l.b16 %v1944
        %v2106 = vunpack.c.h.b16 %v1944
        %v2107 = vunpack.c.l.b16 %v1945
        %v2108 = vunpack.c.h.b16 %v1945
        %v2109 = vunpack.c.l.b16 %v1946
        %v2110 = vunpack.c.h.b16 %v1946
        %v2111 = vunpack.c.l.b16 %v1947
        %v2112 = vunpack.c.h.b16 %v1947
        %v2113 = vunpack.c.l.b16 %v1948
        %v2114 = vunpack.c.h.b16 %v1948
        %v2115 = vunpack.c.l.b16 %v1949
        %v2116 = vunpack.c.h.b16 %v1949
        %v2117 = vunpack.c.l.b16 %v1950
        %v2118 = vunpack.c.h.b16 %v1950
        %v2119 = vunpack.c.l.b16 %v1951
        %v2120 = vunpack.c.h.b16 %v1951
        %v2121 = vunpack.c.l.b16 %v1952
        %v2122 = vunpack.c.h.b16 %v1952
        %v2123 = vunpack.c.l.b16 %v1953
        %v2124 = vunpack.c.h.b16 %v1953
        %v2125 = vunpack.c.l.b16 %v1954
        %v2126 = vunpack.c.h.b16 %v1954
        %v2127 = vunpack.c.l.b16 %v1955
        %v2128 = vunpack.c.h.b16 %v1955
        %v2129 = vunpack.c.l.b16 %v1956
        %v2130 = vunpack.c.h.b16 %v1956
        %v2131 = vunpack.c.l.b16 %v1957
        %v2132 = vunpack.c.h.b16 %v1957
        %v2133 = vunpack.c.l.b16 %v1958
        %v2134 = vunpack.c.h.b16 %v1958
        %v2135 = vunpack.c.l.b16 %v1959
        %v2136 = vunpack.c.h.b16 %v1959
        %v2137 = vunpack.c.l.b16 %v1960
        %v2138 = vunpack.c.h.b16 %v1960
        %v2139 = vunpack.c.l.b16 %v1961
        %v2140 = vunpack.c.h.b16 %v1961
        %v2141 = vunpack.c.l.b16 %v1962
        %v2142 = vunpack.c.h.b16 %v1962
        %v2143 = vunpack.c.l.b16 %v1963
        %v2144 = vunpack.c.h.b16 %v1963
        %v2145 = vunpack.c.l.b16 %v1964
        %v2146 = vunpack.c.h.b16 %v1964
        %v2147 = vunpack.c.l.b16 %v1965
        %v2148 = vunpack.c.h.b16 %v1965
        %v2149 = vunpack.c.l.b16 %v1966
        %v2150 = vunpack.c.h.b16 %v1966
        %v2151 = vunpack.c.l.b16 %v1967
        %v2152 = vunpack.c.h.b16 %v1967
        %v2153 = vunpack.c.l.b16 %v1968
        %v2154 = vunpack.c.h.b16 %v1968
        %v2155 = vunpack.c.l.b16 %v1969
        %v2156 = vunpack.c.h.b16 %v1969
        %v2157 = vunpack.c.l.b16 %v1970
        %v2158 = vunpack.c.h.b16 %v1970
        %v2159 = vunpack.c.l.b16 %v1971
        %v2160 = vunpack.c.h.b16 %v1971
        %v2161 = vunpack.c.l.b16 %v1972
        %v2162 = vunpack.c.h.b16 %v1972
        %v2163 = vunpack.c.l.b16 %v1973
        %v2164 = vunpack.c.h.b16 %v1973
        %v2165 = vunpack.c.l.b16 %v1974
        %v2166 = vunpack.c.h.b16 %v1974
        %v2167 = vunpack.c.l.b16 %v1975
        %v2168 = vunpack.c.h.b16 %v1975
        %v2169 = vunpack.c.l.b16 %v1976
        %v2170 = vunpack.c.h.b16 %v1976
        %v2171 = vunpack.c.l.b16 %v1977
        %v2172 = vunpack.c.h.b16 %v1977
        %v2173 = vunpack.c.l.b16 %v1978
        %v2174 = vunpack.c.h.b16 %v1978
        %v2175 = vunpack.c.l.b16 %v1979
        %v2176 = vunpack.c.h.b16 %v1979
        %v2177 = vunpack.c.l.b16 %v1980
        %v2178 = vunpack.c.h.b16 %v1980
        %v2179 = vunpack.c.l.b16 %v1981
        %v2180 = vunpack.c.h.b16 %v1981
        %v2181 = vunpack.c.l.b16 %v1982
        %v2182 = vunpack.c.h.b16 %v1982
        %v2183 = vunpack.c.l.b16 %v1983
        %v2184 = vunpack.c.h.b16 %v1983
        %v2185 = vunpack.c.l.b16 %v1984
        %v2186 = vunpack.c.h.b16 %v1984
        %v2187 = vunpack.c.l.b16 %v1985
        %v2188 = vunpack.c.h.b16 %v1985
        %v2189 = vunpack.c.l.b16 %v1986
        %v2190 = vunpack.c.h.b16 %v1986
        %v2191 = vunpack.c.l.b16 %v1987
        %v2192 = vunpack.c.h.b16 %v1987
        %v2193 = vunpack.c.l.b16 %v1988
        %v2194 = vunpack.c.h.b16 %v1988
        %v2195 = vunpack.c.l.b16 %v1989
        %v2196 = vunpack.c.h.b16 %v1989
        %v2197 = vunpack.c.l.b16 %v1990
        %v2198 = vunpack.c.h.b16 %v1990
        %v2199 = vunpack.c.l.b16 %v1991
        %v2200 = vunpack.c.h.b16 %v1991
        %v2201 = vunpack.c.l.b16 %v1992
        %v2202 = vunpack.c.h.b16 %v1992
        %v2203 = vunpack.c.l.b16 %v1993
        %v2204 = vunpack.c.h.b16 %v1993
        %v2205 = vunpack.c.l.b16 %v1994
        %v2206 = vunpack.c.h.b16 %v1994
        %v2207 = vunpack.c.l.b16 %v1995
        %v2208 = vunpack.c.h.b16 %v1995
        %v2209 = vpack.c.b16 %v2089, %v2081
        %v2210 = vpack.c.b16 %v2090, %v2082
        %v2211 = vpack.c.b16 %v2091, %v2083
        %v2212 = vpack.c.b16 %v2092, %v2084
        %v2213 = vpack.c.b16 %v2093, %v2085
        %v2214 = vpack.c.b16 %v2094, %v2086
        %v2215 = vpack.c.b16 %v2095, %v2087
        %v2216 = vpack.c.b16 %v2096, %v2088
        %v2217 = vpack.c.b16 %v2105, %v2097
        %v2218 = vpack.c.b16 %v2106, %v2098
        %v2219 = vpack.c.b16 %v2107, %v2099
        %v2220 = vpack.c.b16 %v2108, %v2100
        %v2221 = vpack.c.b16 %v2109, %v2101
        %v2222 = vpack.c.b16 %v2110, %v2102
        %v2223 = vpack.c.b16 %v2111, %v2103
        %v2224 = vpack.c.b16 %v2112, %v2104
        %v2225 = vpack.c.b16 %v2121, %v2113
        %v2226 = vpack.c.b16 %v2122, %v2114
        %v2227 = vpack.c.b16 %v2123, %v2115
        %v2228 = vpack.c.b16 %v2124, %v2116
        %v2229 = vpack.c.b16 %v2125, %v2117
        %v2230 = vpack.c.b16 %v2126, %v2118
        %v2231 = vpack.c.b16 %v2127, %v2119
        %v2232 = vpack.c.b16 %v2128, %v2120
        %v2233 = vpack.c.b16 %v2137, %v2129
        %v2234 = vpack.c.b16 %v2138, %v2130
        %v2235 = vpack.c.b16 %v2139, %v2131
        %v2236 = vpack.c.b16 %v2140, %v2132
        %v2237 = vpack.c.b16 %v2141, %v2133
        %v2238 = vpack.c.b16 %v2142, %v2134
        %v2239 = vpack.c.b16 %v2143, %v2135
        %v2240 = vpack.c.b16 %v2144, %v2136
        %v2241 = vpack.c.b16 %v2153, %v2145
        %v2242 = vpack.c.b16 %v2154, %v2146
        %v2243 = vpack.c.b16 %v2155, %v2147
        %v2244 = vpack.c.b16 %v2156, %v2148
        %v2245 = vpack.c.b16 %v2157, %v2149
        %v2246 = vpack.c.b16 %v2158, %v2150
        %v2247 = vpack.c.b16 %v2159, %v2151
        %v2248 = vpack.c.b16 %v2160, %v2152
        %v2249 = vpack.c.b16 %v2169, %v2161
        %v2250 = vpack.c.b16 %v2170, %v2162
        %v2251 = vpack.c.b16 %v2171, %v2163
        %v2252 = vpack.c.b16 %v2172, %v2164
        %v2253 = vpack.c.b16 %v2173, %v2165
        %v2254 = vpack.c.b16 %v2174, %v2166
        %v2255 = vpack.c.b16 %v2175, %v2167
        %v2256 = vpack.c.b16 %v2176, %v2168
        %v2257 = vpack.c.b16 %v2185, %v2177
        %v2258 = vpack.c.b16 %v2186, %v2178
        %v2259 = vpack.c.b16 %v2187, %v2179
        %v2260 = vpack.c.b16 %v2188, %v2180
        %v2261 = vpack.c.b16 %v2189, %v2181
        %v2262 = vpack.c.b16 %v2190, %v2182
        %v2263 = vpack.c.b16 %v2191, %v2183
        %v2264 = vpack.c.b16 %v2192, %v2184
        %v2265 = vpack.c.b16 %v2201, %v2193
        %v2266 = vpack.c.b16 %v2202, %v2194
        %v2267 = vpack.c.b16 %v2203, %v2195
        %v2268 = vpack.c.b16 %v2204, %v2196
        %v2269 = vpack.c.b16 %v2205, %v2197
        %v2270 = vpack.c.b16 %v2206, %v2198
        %v2271 = vpack.c.b16 %v2207, %v2199
        %v2272 = vpack.c.b16 %v2208, %v2200
        %2337 = vmatprep.subr.bf16.mxu0 %v2210
        %2338 = vmatpush1.bf16.msra.mxu0 %v2209
        %2339 = vmatprep.subr.bf16.mxu0 %v2218
        %2340 = vmatpush1.bf16.msra.mxu0 %v2217
        %2341 = vmatprep.subr.bf16.mxu0 %v2226
        %2342 = vmatpush1.bf16.msra.mxu0 %v2225
        %2343 = vmatprep.subr.bf16.mxu0 %v2234
        %2344 = vmatpush1.bf16.msra.mxu0 %v2233
        %2345 = vmatprep.subr.bf16.mxu0 %v2242
        %2346 = vmatpush1.bf16.msra.mxu0 %v2241
        %2347 = vmatprep.subr.bf16.mxu0 %v2250
        %2348 = vmatpush1.bf16.msra.mxu0 %v2249
        %2349 = vmatprep.subr.bf16.mxu0 %v2258
        %2350 = vmatpush1.bf16.msra.mxu0 %v2257
        %2351 = vmatprep.subr.bf16.mxu0 %v2266
        %2352 = vmatpush1.bf16.msra.mxu0 %v2265
        %2353 = vmatprep.subr.bf16.mxu0 0
        %2354 = vmatpush1.bf16.msra.mxu0 0
        %2355 = vmatprep.subr.bf16.mxu0 0
        %2356 = vmatpush1.bf16.msra.mxu0 0
        %2357 = vmatprep.subr.bf16.mxu0 0
        %2358 = vmatpush1.bf16.msra.mxu0 0
        %2359 = vmatprep.subr.bf16.mxu0 0
        %2360 = vmatpush1.bf16.msra.mxu0 0
        %2361 = vmatprep.subr.bf16.mxu0 0
        %2362 = vmatpush1.bf16.msra.mxu0 0
        %2363 = vmatprep.subr.bf16.mxu0 0
        %2364 = vmatpush1.bf16.msra.mxu0 0
        %2365 = vmatprep.subr.bf16.mxu0 0
        %2366 = vmatpush1.bf16.msra.mxu0 0
        %2367 = vmatprep.subr.bf16.mxu0 0
        %2368 = vmatpush1.bf16.msra.mxu0 0
        %2369 = vmatprep.mubr.bf16.mxu0 0
        %2370 = vmatmul.mubr.bf16.gmra.mrb[0].mxu0 %v2015
        %v2371 = vpop.f32.mrb[0].mxu0
        %v2372 = vadd.f32 0.0, %v2371
        %v2373 = vpop.f32.mrb[0].mxu0
        %v2374 = vadd.f32 0.0, %v2373
        %v2375 = vpop.f32.mrb[0].mxu0
        %v2376 = vadd.f32 0.0, %v2375
        %v2377 = vpop.f32.mrb[0].mxu0
        %v2378 = vadd.f32 0.0, %v2377
        %2379 = vdwg.mxu0
        %2380 = vmatprep.subr.bf16.mxu0 %v2212
        %2381 = vmatpush1.bf16.msra.mxu0 %v2211
        %2382 = vmatprep.subr.bf16.mxu0 %v2220
        %2383 = vmatpush1.bf16.msra.mxu0 %v2219
        %2384 = vmatprep.subr.bf16.mxu0 %v2228
        %2385 = vmatpush1.bf16.msra.mxu0 %v2227
        %2386 = vmatprep.subr.bf16.mxu0 %v2236
        %2387 = vmatpush1.bf16.msra.mxu0 %v2235
        %2388 = vmatprep.subr.bf16.mxu0 %v2244
        %2389 = vmatpush1.bf16.msra.mxu0 %v2243
        %2390 = vmatprep.subr.bf16.mxu0 %v2252
        %2391 = vmatpush1.bf16.msra.mxu0 %v2251
        %2392 = vmatprep.subr.bf16.mxu0 %v2260
        %2393 = vmatpush1.bf16.msra.mxu0 %v2259
        %2394 = vmatprep.subr.bf16.mxu0 %v2268
        %2395 = vmatpush1.bf16.msra.mxu0 %v2267
        %2396 = vmatprep.subr.bf16.mxu0 0
        %2397 = vmatpush1.bf16.msra.mxu0 0
        %2398 = vmatprep.subr.bf16.mxu0 0
        %2399 = vmatpush1.bf16.msra.mxu0 0
        %2400 = vmatprep.subr.bf16.mxu0 0
        %2401 = vmatpush1.bf16.msra.mxu0 0
        %2402 = vmatprep.subr.bf16.mxu0 0
        %2403 = vmatpush1.bf16.msra.mxu0 0
        %2404 = vmatprep.subr.bf16.mxu0 0
        %2405 = vmatpush1.bf16.msra.mxu0 0
        %2406 = vmatprep.subr.bf16.mxu0 0
        %2407 = vmatpush1.bf16.msra.mxu0 0
        %2408 = vmatprep.subr.bf16.mxu0 0
        %2409 = vmatpush1.bf16.msra.mxu0 0
        %2410 = vmatprep.subr.bf16.mxu0 0
        %2411 = vmatpush1.bf16.msra.mxu0 0
        %2412 = vmatprep.mubr.bf16.mxu0 0
        %2413 = vmatmul.mubr.bf16.gmra.mrb[0].mxu0 %v2015
        %v2414 = vpop.f32.mrb[0].mxu0
        %v2415 = vadd.f32 0.0, %v2414
        %v2416 = vpop.f32.mrb[0].mxu0
        %v2417 = vadd.f32 0.0, %v2416
        %v2418 = vpop.f32.mrb[0].mxu0
        %v2419 = vadd.f32 0.0, %v2418
        %v2420 = vpop.f32.mrb[0].mxu0
        %v2421 = vadd.f32 0.0, %v2420
        %2422 = vdwg.mxu0
        %2423 = vmatprep.subr.bf16.mxu0 %v2214
        %2424 = vmatpush1.bf16.msra.mxu0 %v2213
        %2425 = vmatprep.subr.bf16.mxu0 %v2222
        %2426 = vmatpush1.bf16.msra.mxu0 %v2221
        %2427 = vmatprep.subr.bf16.mxu0 %v2230
        %2428 = vmatpush1.bf16.msra.mxu0 %v2229
        %2429 = vmatprep.subr.bf16.mxu0 %v2238
        %2430 = vmatpush1.bf16.msra.mxu0 %v2237
        %2431 = vmatprep.subr.bf16.mxu0 %v2246
        %2432 = vmatpush1.bf16.msra.mxu0 %v2245
        %2433 = vmatprep.subr.bf16.mxu0 %v2254
        %2434 = vmatpush1.bf16.msra.mxu0 %v2253
        %2435 = vmatprep.subr.bf16.mxu0 %v2262
        %2436 = vmatpush1.bf16.msra.mxu0 %v2261
        %2437 = vmatprep.subr.bf16.mxu0 %v2270
        %2438 = vmatpush1.bf16.msra.mxu0 %v2269
        %2439 = vmatprep.subr.bf16.mxu0 0
        %2440 = vmatpush1.bf16.msra.mxu0 0
        %2441 = vmatprep.subr.bf16.mxu0 0
        %2442 = vmatpush1.bf16.msra.mxu0 0
        %2443 = vmatprep.subr.bf16.mxu0 0
        %2444 = vmatpush1.bf16.msra.mxu0 0
        %2445 = vmatprep.subr.bf16.mxu0 0
        %2446 = vmatpush1.bf16.msra.mxu0 0
        %2447 = vmatprep.subr.bf16.mxu0 0
        %2448 = vmatpush1.bf16.msra.mxu0 0
        %2449 = vmatprep.subr.bf16.mxu0 0
        %2450 = vmatpush1.bf16.msra.mxu0 0
        %2451 = vmatprep.subr.bf16.mxu0 0
        %2452 = vmatpush1.bf16.msra.mxu0 0
        %2453 = vmatprep.subr.bf16.mxu0 0
        %2454 = vmatpush1.bf16.msra.mxu0 0
        %2455 = vmatprep.mubr.bf16.mxu0 0
        %2456 = vmatmul.mubr.bf16.gmra.mrb[0].mxu0 %v2015
        %v2457 = vpop.f32.mrb[0].mxu0
        %v2458 = vadd.f32 0.0, %v2457
        %v2459 = vpop.f32.mrb[0].mxu0
        %v2460 = vadd.f32 0.0, %v2459
        %v2461 = vpop.f32.mrb[0].mxu0
        %v2462 = vadd.f32 0.0, %v2461
        %v2463 = vpop.f32.mrb[0].mxu0
        %v2464 = vadd.f32 0.0, %v2463
        %2465 = vdwg.mxu0
        %2466 = vmatprep.subr.bf16.mxu0 %v2216
        %2467 = vmatpush1.bf16.msra.mxu0 %v2215
        %2468 = vmatprep.subr.bf16.mxu0 %v2224
        %2469 = vmatpush1.bf16.msra.mxu0 %v2223
        %2470 = vmatprep.subr.bf16.mxu0 %v2232
        %2471 = vmatpush1.bf16.msra.mxu0 %v2231
        %2472 = vmatprep.subr.bf16.mxu0 %v2240
        %2473 = vmatpush1.bf16.msra.mxu0 %v2239
        %2474 = vmatprep.subr.bf16.mxu0 %v2248
        %2475 = vmatpush1.bf16.msra.mxu0 %v2247
        %2476 = vmatprep.subr.bf16.mxu0 %v2256
        %2477 = vmatpush1.bf16.msra.mxu0 %v2255
        %2478 = vmatprep.subr.bf16.mxu0 %v2264
        %2479 = vmatpush1.bf16.msra.mxu0 %v2263
        %2480 = vmatprep.subr.bf16.mxu0 %v2272
        %2481 = vmatpush1.bf16.msra.mxu0 %v2271
        %2482 = vmatprep.subr.bf16.mxu0 0
        %2483 = vmatpush1.bf16.msra.mxu0 0
        %2484 = vmatprep.subr.bf16.mxu0 0
        %2485 = vmatpush1.bf16.msra.mxu0 0
        %2486 = vmatprep.subr.bf16.mxu0 0
        %2487 = vmatpush1.bf16.msra.mxu0 0
        %2488 = vmatprep.subr.bf16.mxu0 0
        %2489 = vmatpush1.bf16.msra.mxu0 0
        %2490 = vmatprep.subr.bf16.mxu0 0
        %2491 = vmatpush1.bf16.msra.mxu0 0
        %2492 = vmatprep.subr.bf16.mxu0 0
        %2493 = vmatpush1.bf16.msra.mxu0 0
        %2494 = vmatprep.subr.bf16.mxu0 0
        %2495 = vmatpush1.bf16.msra.mxu0 0
        %2496 = vmatprep.subr.bf16.mxu0 0
        %2497 = vmatpush1.bf16.msra.mxu0 0
        %2498 = vmatprep.mubr.bf16.mxu0 0
        %2499 = vmatmul.mubr.bf16.gmra.mrb[0].mxu0 %v2015
        %v2500 = vpop.f32.mrb[0].mxu0
        %v2501 = vadd.f32 0.0, %v2500
        %v2502 = vpop.f32.mrb[0].mxu0
        %v2503 = vadd.f32 0.0, %v2502
        %v2504 = vpop.f32.mrb[0].mxu0
        %v2505 = vadd.f32 0.0, %v2504
        %v2506 = vpop.f32.mrb[0].mxu0
        %v2507 = vadd.f32 0.0, %v2506
        %2508 = vdwg.mxu0
        %v2509 = vadd.f32 %v1912, %v2372
        %v2510 = vadd.f32 %v1913, %v2374
        %v2511 = vadd.f32 %v1914, %v2415
        %v2512 = vadd.f32 %v1915, %v2417
        %v2513 = vadd.f32 %v1916, %v2458
        %v2514 = vadd.f32 %v1917, %v2460
        %v2515 = vadd.f32 %v1918, %v2501
        %v2516 = vadd.f32 %v1919, %v2503
        %v2517 = vadd.f32 %v1920, %v2376
        %v2518 = vadd.f32 %v1921, %v2378
        %v2519 = vadd.f32 %v1922, %v2419
        %v2520 = vadd.f32 %v1923, %v2421
        %v2521 = vadd.f32 %v1924, %v2462
        %v2522 = vadd.f32 %v1925, %v2464
        %v2523 = vadd.f32 %v1926, %v2505
        %v2524 = vadd.f32 %v1927, %v2507
        %v2525 = vld [vmem:[%s193] sm:$0xe]
        %s2526 = scalar_lea.vmem [#allocation2], 2048
        %v2527 = vld [vmem:[%s2526] sm:$0xff]
        %v2528 = vld [vmem:[%s2526 + $0x8] sm:$0xff]
        %v2529 = vld [vmem:[%s2526 + $0x10] sm:$0xff]
        %v2530 = vld [vmem:[%s2526 + $0x18] sm:$0xff]
        %v2531 = vld [vmem:[%s2526 + $0x20] sm:$0xff]
        %v2532 = vld [vmem:[%s2526 + $0x28] sm:$0xff]
        %v2533 = vld [vmem:[%s2526 + $0x30] sm:$0xff]
        %v2534 = vld [vmem:[%s2526 + $0x38] sm:$0xff]
        %v2535 = vld [vmem:[%s2526 + $0x40] sm:$0xff]
        %v2536 = vld [vmem:[%s2526 + $0x48] sm:$0xff]
        %v2537 = vld [vmem:[%s2526 + $0x50] sm:$0xff]
        %v2538 = vld [vmem:[%s2526 + $0x58] sm:$0xff]
        %v2539 = vld [vmem:[%s2526 + $0x60] sm:$0xff]
        %v2540 = vld [vmem:[%s2526 + $0x68] sm:$0xff]
        %v2541 = vld [vmem:[%s2526 + $0x70] sm:$0xff]
        %v2542 = vld [vmem:[%s2526 + $0x78] sm:$0xff]
        %v2543 = vld [vmem:[%s2526 + $0x80] sm:$0xff]
        %v2544 = vld [vmem:[%s2526 + $0x88] sm:$0xff]
        %v2545 = vld [vmem:[%s2526 + $0x90] sm:$0xff]
        %v2546 = vld [vmem:[%s2526 + $0x98] sm:$0xff]
        %v2547 = vld [vmem:[%s2526 + $0xa0] sm:$0xff]
        %v2548 = vld [vmem:[%s2526 + $0xa8] sm:$0xff]
        %v2549 = vld [vmem:[%s2526 + $0xb0] sm:$0xff]
        %v2550 = vld [vmem:[%s2526 + $0xb8] sm:$0xff]
        %v2551 = vld [vmem:[%s2526 + $0xc0] sm:$0xff]
        %v2552 = vld [vmem:[%s2526 + $0xc8] sm:$0xff]
        %v2553 = vld [vmem:[%s2526 + $0xd0] sm:$0xff]
        %v2554 = vld [vmem:[%s2526 + $0xd8] sm:$0xff]
        %v2555 = vld [vmem:[%s2526 + $0xe0] sm:$0xff]
        %v2556 = vld [vmem:[%s2526 + $0xe8] sm:$0xff]
        %v2557 = vld [vmem:[%s2526 + $0xf0] sm:$0xff]
        %v2558 = vld [vmem:[%s2526 + $0xf8] sm:$0xff]
        %v2559 = vld [vmem:[%s2526 + $0x100] sm:$0xff]
        %v2560 = vld [vmem:[%s2526 + $0x108] sm:$0xff]
        %v2561 = vld [vmem:[%s2526 + $0x110] sm:$0xff]
        %v2562 = vld [vmem:[%s2526 + $0x118] sm:$0xff]
        %v2563 = vld [vmem:[%s2526 + $0x120] sm:$0xff]
        %v2564 = vld [vmem:[%s2526 + $0x128] sm:$0xff]
        %v2565 = vld [vmem:[%s2526 + $0x130] sm:$0xff]
        %v2566 = vld [vmem:[%s2526 + $0x138] sm:$0xff]
        %v2567 = vld [vmem:[%s2526 + $0x140] sm:$0xff]
        %v2568 = vld [vmem:[%s2526 + $0x148] sm:$0xff]
        %v2569 = vld [vmem:[%s2526 + $0x150] sm:$0xff]
        %v2570 = vld [vmem:[%s2526 + $0x158] sm:$0xff]
        %v2571 = vld [vmem:[%s2526 + $0x160] sm:$0xff]
        %v2572 = vld [vmem:[%s2526 + $0x168] sm:$0xff]
        %v2573 = vld [vmem:[%s2526 + $0x170] sm:$0xff]
        %v2574 = vld [vmem:[%s2526 + $0x178] sm:$0xff]
        %v2575 = vld [vmem:[%s2526 + $0x180] sm:$0xff]
        %v2576 = vld [vmem:[%s2526 + $0x188] sm:$0xff]
        %v2577 = vld [vmem:[%s2526 + $0x190] sm:$0xff]
        %v2578 = vld [vmem:[%s2526 + $0x198] sm:$0xff]
        %v2579 = vld [vmem:[%s2526 + $0x1a0] sm:$0xff]
        %v2580 = vld [vmem:[%s2526 + $0x1a8] sm:$0xff]
        %v2581 = vld [vmem:[%s2526 + $0x1b0] sm:$0xff]
        %v2582 = vld [vmem:[%s2526 + $0x1b8] sm:$0xff]
        %v2583 = vld [vmem:[%s2526 + $0x1c0] sm:$0xff]
        %v2584 = vld [vmem:[%s2526 + $0x1c8] sm:$0xff]
        %v2585 = vld [vmem:[%s2526 + $0x1d0] sm:$0xff]
        %v2586 = vld [vmem:[%s2526 + $0x1d8] sm:$0xff]
        %v2587 = vld [vmem:[%s2526 + $0x1e0] sm:$0xff]
        %v2588 = vld [vmem:[%s2526 + $0x1e8] sm:$0xff]
        %v2589 = vld [vmem:[%s2526 + $0x1f0] sm:$0xff]
        %v2590 = vld [vmem:[%s2526 + $0x1f8] sm:$0xff]
        %v2592 = vunpack.c.l.b16 %v2525
        %v2593 = vpack.c.b16 %v1402, %v2592
        %vm2594 = vcmask 1046528
        %v2595 = vrot.slane %v2593, 1
        %v2596 = vrot.slane %v1405, 1
        %v2597 = vsel %vm2594, %v2595, %v2596
        %v2663 = vunpack.c.l.b16 %v2527
        %v2664 = vunpack.c.h.b16 %v2527
        %v2665 = vunpack.c.l.b16 %v2528
        %v2666 = vunpack.c.h.b16 %v2528
        %v2667 = vunpack.c.l.b16 %v2529
        %v2668 = vunpack.c.h.b16 %v2529
        %v2669 = vunpack.c.l.b16 %v2530
        %v2670 = vunpack.c.h.b16 %v2530
        %v2671 = vunpack.c.l.b16 %v2531
        %v2672 = vunpack.c.h.b16 %v2531
        %v2673 = vunpack.c.l.b16 %v2532
        %v2674 = vunpack.c.h.b16 %v2532
        %v2675 = vunpack.c.l.b16 %v2533
        %v2676 = vunpack.c.h.b16 %v2533
        %v2677 = vunpack.c.l.b16 %v2534
        %v2678 = vunpack.c.h.b16 %v2534
        %v2679 = vunpack.c.l.b16 %v2535
        %v2680 = vunpack.c.h.b16 %v2535
        %v2681 = vunpack.c.l.b16 %v2536
        %v2682 = vunpack.c.h.b16 %v2536
        %v2683 = vunpack.c.l.b16 %v2537
        %v2684 = vunpack.c.h.b16 %v2537
        %v2685 = vunpack.c.l.b16 %v2538
        %v2686 = vunpack.c.h.b16 %v2538
        %v2687 = vunpack.c.l.b16 %v2539
        %v2688 = vunpack.c.h.b16 %v2539
        %v2689 = vunpack.c.l.b16 %v2540
        %v2690 = vunpack.c.h.b16 %v2540
        %v2691 = vunpack.c.l.b16 %v2541
        %v2692 = vunpack.c.h.b16 %v2541
        %v2693 = vunpack.c.l.b16 %v2542
        %v2694 = vunpack.c.h.b16 %v2542
        %v2695 = vunpack.c.l.b16 %v2543
        %v2696 = vunpack.c.h.b16 %v2543
        %v2697 = vunpack.c.l.b16 %v2544
        %v2698 = vunpack.c.h.b16 %v2544
        %v2699 = vunpack.c.l.b16 %v2545
        %v2700 = vunpack.c.h.b16 %v2545
        %v2701 = vunpack.c.l.b16 %v2546
        %v2702 = vunpack.c.h.b16 %v2546
        %v2703 = vunpack.c.l.b16 %v2547
        %v2704 = vunpack.c.h.b16 %v2547
        %v2705 = vunpack.c.l.b16 %v2548
        %v2706 = vunpack.c.h.b16 %v2548
        %v2707 = vunpack.c.l.b16 %v2549
        %v2708 = vunpack.c.h.b16 %v2549
        %v2709 = vunpack.c.l.b16 %v2550
        %v2710 = vunpack.c.h.b16 %v2550
        %v2711 = vunpack.c.l.b16 %v2551
        %v2712 = vunpack.c.h.b16 %v2551
        %v2713 = vunpack.c.l.b16 %v2552
        %v2714 = vunpack.c.h.b16 %v2552
        %v2715 = vunpack.c.l.b16 %v2553
        %v2716 = vunpack.c.h.b16 %v2553
        %v2717 = vunpack.c.l.b16 %v2554
        %v2718 = vunpack.c.h.b16 %v2554
        %v2719 = vunpack.c.l.b16 %v2555
        %v2720 = vunpack.c.h.b16 %v2555
        %v2721 = vunpack.c.l.b16 %v2556
        %v2722 = vunpack.c.h.b16 %v2556
        %v2723 = vunpack.c.l.b16 %v2557
        %v2724 = vunpack.c.h.b16 %v2557
        %v2725 = vunpack.c.l.b16 %v2558
        %v2726 = vunpack.c.h.b16 %v2558
        %v2727 = vunpack.c.l.b16 %v2559
        %v2728 = vunpack.c.h.b16 %v2559
        %v2729 = vunpack.c.l.b16 %v2560
        %v2730 = vunpack.c.h.b16 %v2560
        %v2731 = vunpack.c.l.b16 %v2561
        %v2732 = vunpack.c.h.b16 %v2561
        %v2733 = vunpack.c.l.b16 %v2562
        %v2734 = vunpack.c.h.b16 %v2562
        %v2735 = vunpack.c.l.b16 %v2563
        %v2736 = vunpack.c.h.b16 %v2563
        %v2737 = vunpack.c.l.b16 %v2564
        %v2738 = vunpack.c.h.b16 %v2564
        %v2739 = vunpack.c.l.b16 %v2565
        %v2740 = vunpack.c.h.b16 %v2565
        %v2741 = vunpack.c.l.b16 %v2566
        %v2742 = vunpack.c.h.b16 %v2566
        %v2743 = vunpack.c.l.b16 %v2567
        %v2744 = vunpack.c.h.b16 %v2567
        %v2745 = vunpack.c.l.b16 %v2568
        %v2746 = vunpack.c.h.b16 %v2568
        %v2747 = vunpack.c.l.b16 %v2569
        %v2748 = vunpack.c.h.b16 %v2569
        %v2749 = vunpack.c.l.b16 %v2570
        %v2750 = vunpack.c.h.b16 %v2570
        %v2751 = vunpack.c.l.b16 %v2571
        %v2752 = vunpack.c.h.b16 %v2571
        %v2753 = vunpack.c.l.b16 %v2572
        %v2754 = vunpack.c.h.b16 %v2572
        %v2755 = vunpack.c.l.b16 %v2573
        %v2756 = vunpack.c.h.b16 %v2573
        %v2757 = vunpack.c.l.b16 %v2574
        %v2758 = vunpack.c.h.b16 %v2574
        %v2759 = vunpack.c.l.b16 %v2575
        %v2760 = vunpack.c.h.b16 %v2575
        %v2761 = vunpack.c.l.b16 %v2576
        %v2762 = vunpack.c.h.b16 %v2576
        %v2763 = vunpack.c.l.b16 %v2577
        %v2764 = vunpack.c.h.b16 %v2577
        %v2765 = vunpack.c.l.b16 %v2578
        %v2766 = vunpack.c.h.b16 %v2578
        %v2767 = vunpack.c.l.b16 %v2579
        %v2768 = vunpack.c.h.b16 %v2579
        %v2769 = vunpack.c.l.b16 %v2580
        %v2770 = vunpack.c.h.b16 %v2580
        %v2771 = vunpack.c.l.b16 %v2581
        %v2772 = vunpack.c.h.b16 %v2581
        %v2773 = vunpack.c.l.b16 %v2582
        %v2774 = vunpack.c.h.b16 %v2582
        %v2775 = vunpack.c.l.b16 %v2583
        %v2776 = vunpack.c.h.b16 %v2583
        %v2777 = vunpack.c.l.b16 %v2584
        %v2778 = vunpack.c.h.b16 %v2584
        %v2779 = vunpack.c.l.b16 %v2585
        %v2780 = vunpack.c.h.b16 %v2585
        %v2781 = vunpack.c.l.b16 %v2586
        %v2782 = vunpack.c.h.b16 %v2586
        %v2783 = vunpack.c.l.b16 %v2587
        %v2784 = vunpack.c.h.b16 %v2587
        %v2785 = vunpack.c.l.b16 %v2588
        %v2786 = vunpack.c.h.b16 %v2588
        %v2787 = vunpack.c.l.b16 %v2589
        %v2788 = vunpack.c.h.b16 %v2589
        %v2789 = vunpack.c.l.b16 %v2590
        %v2790 = vunpack.c.h.b16 %v2590
        %v2791 = vpack.c.b16 %v2671, %v2663
        %v2792 = vpack.c.b16 %v2672, %v2664
        %v2793 = vpack.c.b16 %v2673, %v2665
        %v2794 = vpack.c.b16 %v2674, %v2666
        %v2795 = vpack.c.b16 %v2675, %v2667
        %v2796 = vpack.c.b16 %v2676, %v2668
        %v2797 = vpack.c.b16 %v2677, %v2669
        %v2798 = vpack.c.b16 %v2678, %v2670
        %v2799 = vpack.c.b16 %v2687, %v2679
        %v2800 = vpack.c.b16 %v2688, %v2680
        %v2801 = vpack.c.b16 %v2689, %v2681
        %v2802 = vpack.c.b16 %v2690, %v2682
        %v2803 = vpack.c.b16 %v2691, %v2683
        %v2804 = vpack.c.b16 %v2692, %v2684
        %v2805 = vpack.c.b16 %v2693, %v2685
        %v2806 = vpack.c.b16 %v2694, %v2686
        %v2807 = vpack.c.b16 %v2703, %v2695
        %v2808 = vpack.c.b16 %v2704, %v2696
        %v2809 = vpack.c.b16 %v2705, %v2697
        %v2810 = vpack.c.b16 %v2706, %v2698
        %v2811 = vpack.c.b16 %v2707, %v2699
        %v2812 = vpack.c.b16 %v2708, %v2700
        %v2813 = vpack.c.b16 %v2709, %v2701
        %v2814 = vpack.c.b16 %v2710, %v2702
        %v2815 = vpack.c.b16 %v2719, %v2711
        %v2816 = vpack.c.b16 %v2720, %v2712
        %v2817 = vpack.c.b16 %v2721, %v2713
        %v2818 = vpack.c.b16 %v2722, %v2714
        %v2819 = vpack.c.b16 %v2723, %v2715
        %v2820 = vpack.c.b16 %v2724, %v2716
        %v2821 = vpack.c.b16 %v2725, %v2717
        %v2822 = vpack.c.b16 %v2726, %v2718
        %v2823 = vpack.c.b16 %v2735, %v2727
        %v2824 = vpack.c.b16 %v2736, %v2728
        %v2825 = vpack.c.b16 %v2737, %v2729
        %v2826 = vpack.c.b16 %v2738, %v2730
        %v2827 = vpack.c.b16 %v2739, %v2731
        %v2828 = vpack.c.b16 %v2740, %v2732
        %v2829 = vpack.c.b16 %v2741, %v2733
        %v2830 = vpack.c.b16 %v2742, %v2734
        %v2831 = vpack.c.b16 %v2751, %v2743
        %v2832 = vpack.c.b16 %v2752, %v2744
        %v2833 = vpack.c.b16 %v2753, %v2745
        %v2834 = vpack.c.b16 %v2754, %v2746
        %v2835 = vpack.c.b16 %v2755, %v2747
        %v2836 = vpack.c.b16 %v2756, %v2748
        %v2837 = vpack.c.b16 %v2757, %v2749
        %v2838 = vpack.c.b16 %v2758, %v2750
        %v2839 = vpack.c.b16 %v2767, %v2759
        %v2840 = vpack.c.b16 %v2768, %v2760
        %v2841 = vpack.c.b16 %v2769, %v2761
        %v2842 = vpack.c.b16 %v2770, %v2762
        %v2843 = vpack.c.b16 %v2771, %v2763
        %v2844 = vpack.c.b16 %v2772, %v2764
        %v2845 = vpack.c.b16 %v2773, %v2765
        %v2846 = vpack.c.b16 %v2774, %v2766
        %v2847 = vpack.c.b16 %v2783, %v2775
        %v2848 = vpack.c.b16 %v2784, %v2776
        %v2849 = vpack.c.b16 %v2785, %v2777
        %v2850 = vpack.c.b16 %v2786, %v2778
        %v2851 = vpack.c.b16 %v2787, %v2779
        %v2852 = vpack.c.b16 %v2788, %v2780
        %v2853 = vpack.c.b16 %v2789, %v2781
        %v2854 = vpack.c.b16 %v2790, %v2782
        %2919 = vmatprep.subr.bf16.mxu0 %v2792
        %2920 = vmatpush1.bf16.msra.mxu0 %v2791
        %2921 = vmatprep.subr.bf16.mxu0 %v2800
        %2922 = vmatpush1.bf16.msra.mxu0 %v2799
        %2923 = vmatprep.subr.bf16.mxu0 %v2808
        %2924 = vmatpush1.bf16.msra.mxu0 %v2807
        %2925 = vmatprep.subr.bf16.mxu0 %v2816
        %2926 = vmatpush1.bf16.msra.mxu0 %v2815
        %2927 = vmatprep.subr.bf16.mxu0 %v2824
        %2928 = vmatpush1.bf16.msra.mxu0 %v2823
        %2929 = vmatprep.subr.bf16.mxu0 %v2832
        %2930 = vmatpush1.bf16.msra.mxu0 %v2831
        %2931 = vmatprep.subr.bf16.mxu0 %v2840
        %2932 = vmatpush1.bf16.msra.mxu0 %v2839
        %2933 = vmatprep.subr.bf16.mxu0 %v2848
        %2934 = vmatpush1.bf16.msra.mxu0 %v2847
        %2935 = vmatprep.subr.bf16.mxu0 0
        %2936 = vmatpush1.bf16.msra.mxu0 0
        %2937 = vmatprep.subr.bf16.mxu0 0
        %2938 = vmatpush1.bf16.msra.mxu0 0
        %2939 = vmatprep.subr.bf16.mxu0 0
        %2940 = vmatpush1.bf16.msra.mxu0 0
        %2941 = vmatprep.subr.bf16.mxu0 0
        %2942 = vmatpush1.bf16.msra.mxu0 0
        %2943 = vmatprep.subr.bf16.mxu0 0
        %2944 = vmatpush1.bf16.msra.mxu0 0
        %2945 = vmatprep.subr.bf16.mxu0 0
        %2946 = vmatpush1.bf16.msra.mxu0 0
        %2947 = vmatprep.subr.bf16.mxu0 0
        %2948 = vmatpush1.bf16.msra.mxu0 0
        %2949 = vmatprep.subr.bf16.mxu0 0
        %2950 = vmatpush1.bf16.msra.mxu0 0
        %2951 = vmatprep.mubr.bf16.mxu0 0
        %2952 = vmatmul.mubr.bf16.gmra.mrb[0].mxu0 %v2597
        %v2953 = vpop.f32.mrb[0].mxu0
        %v2954 = vadd.f32 0.0, %v2953
        %v2955 = vpop.f32.mrb[0].mxu0
        %v2956 = vadd.f32 0.0, %v2955
        %v2957 = vpop.f32.mrb[0].mxu0
        %v2958 = vadd.f32 0.0, %v2957
        %v2959 = vpop.f32.mrb[0].mxu0
        %v2960 = vadd.f32 0.0, %v2959
        %2961 = vdwg.mxu0
        %2962 = vmatprep.subr.bf16.mxu0 %v2794
        %2963 = vmatpush1.bf16.msra.mxu0 %v2793
        %2964 = vmatprep.subr.bf16.mxu0 %v2802
        %2965 = vmatpush1.bf16.msra.mxu0 %v2801
        %2966 = vmatprep.subr.bf16.mxu0 %v2810
        %2967 = vmatpush1.bf16.msra.mxu0 %v2809
        %2968 = vmatprep.subr.bf16.mxu0 %v2818
        %2969 = vmatpush1.bf16.msra.mxu0 %v2817
        %2970 = vmatprep.subr.bf16.mxu0 %v2826
        %2971 = vmatpush1.bf16.msra.mxu0 %v2825
        %2972 = vmatprep.subr.bf16.mxu0 %v2834
        %2973 = vmatpush1.bf16.msra.mxu0 %v2833
        %2974 = vmatprep.subr.bf16.mxu0 %v2842
        %2975 = vmatpush1.bf16.msra.mxu0 %v2841
        %2976 = vmatprep.subr.bf16.mxu0 %v2850
        %2977 = vmatpush1.bf16.msra.mxu0 %v2849
        %2978 = vmatprep.subr.bf16.mxu0 0
        %2979 = vmatpush1.bf16.msra.mxu0 0
        %2980 = vmatprep.subr.bf16.mxu0 0
        %2981 = vmatpush1.bf16.msra.mxu0 0
        %2982 = vmatprep.subr.bf16.mxu0 0
        %2983 = vmatpush1.bf16.msra.mxu0 0
        %2984 = vmatprep.subr.bf16.mxu0 0
        %2985 = vmatpush1.bf16.msra.mxu0 0
        %2986 = vmatprep.subr.bf16.mxu0 0
        %2987 = vmatpush1.bf16.msra.mxu0 0
        %2988 = vmatprep.subr.bf16.mxu0 0
        %2989 = vmatpush1.bf16.msra.mxu0 0
        %2990 = vmatprep.subr.bf16.mxu0 0
        %2991 = vmatpush1.bf16.msra.mxu0 0
        %2992 = vmatprep.subr.bf16.mxu0 0
        %2993 = vmatpush1.bf16.msra.mxu0 0
        %2994 = vmatprep.mubr.bf16.mxu0 0
        %2995 = vmatmul.mubr.bf16.gmra.mrb[0].mxu0 %v2597
        %v2996 = vpop.f32.mrb[0].mxu0
        %v2997 = vadd.f32 0.0, %v2996
        %v2998 = vpop.f32.mrb[0].mxu0
        %v2999 = vadd.f32 0.0, %v2998
        %v3000 = vpop.f32.mrb[0].mxu0
        %v3001 = vadd.f32 0.0, %v3000
        %v3002 = vpop.f32.mrb[0].mxu0
        %v3003 = vadd.f32 0.0, %v3002
        %3004 = vdwg.mxu0
        %3005 = vmatprep.subr.bf16.mxu0 %v2796
        %3006 = vmatpush1.bf16.msra.mxu0 %v2795
        %3007 = vmatprep.subr.bf16.mxu0 %v2804
        %3008 = vmatpush1.bf16.msra.mxu0 %v2803
        %3009 = vmatprep.subr.bf16.mxu0 %v2812
        %3010 = vmatpush1.bf16.msra.mxu0 %v2811
        %3011 = vmatprep.subr.bf16.mxu0 %v2820
        %3012 = vmatpush1.bf16.msra.mxu0 %v2819
        %3013 = vmatprep.subr.bf16.mxu0 %v2828
        %3014 = vmatpush1.bf16.msra.mxu0 %v2827
        %3015 = vmatprep.subr.bf16.mxu0 %v2836
        %3016 = vmatpush1.bf16.msra.mxu0 %v2835
        %3017 = vmatprep.subr.bf16.mxu0 %v2844
        %3018 = vmatpush1.bf16.msra.mxu0 %v2843
        %3019 = vmatprep.subr.bf16.mxu0 %v2852
        %3020 = vmatpush1.bf16.msra.mxu0 %v2851
        %3021 = vmatprep.subr.bf16.mxu0 0
        %3022 = vmatpush1.bf16.msra.mxu0 0
        %3023 = vmatprep.subr.bf16.mxu0 0
        %3024 = vmatpush1.bf16.msra.mxu0 0
        %3025 = vmatprep.subr.bf16.mxu0 0
        %3026 = vmatpush1.bf16.msra.mxu0 0
        %3027 = vmatprep.subr.bf16.mxu0 0
        %3028 = vmatpush1.bf16.msra.mxu0 0
        %3029 = vmatprep.subr.bf16.mxu0 0
        %3030 = vmatpush1.bf16.msra.mxu0 0
        %3031 = vmatprep.subr.bf16.mxu0 0
        %3032 = vmatpush1.bf16.msra.mxu0 0
        %3033 = vmatprep.subr.bf16.mxu0 0
        %3034 = vmatpush1.bf16.msra.mxu0 0
        %3035 = vmatprep.subr.bf16.mxu0 0
        %3036 = vmatpush1.bf16.msra.mxu0 0
        %3037 = vmatprep.mubr.bf16.mxu0 0
        %3038 = vmatmul.mubr.bf16.gmra.mrb[0].mxu0 %v2597
        %v3039 = vpop.f32.mrb[0].mxu0
        %v3040 = vadd.f32 0.0, %v3039
        %v3041 = vpop.f32.mrb[0].mxu0
        %v3042 = vadd.f32 0.0, %v3041
        %v3043 = vpop.f32.mrb[0].mxu0
        %v3044 = vadd.f32 0.0, %v3043
        %v3045 = vpop.f32.mrb[0].mxu0
        %v3046 = vadd.f32 0.0, %v3045
        %3047 = vdwg.mxu0
        %3048 = vmatprep.subr.bf16.mxu0 %v2798
        %3049 = vmatpush1.bf16.msra.mxu0 %v2797
        %3050 = vmatprep.subr.bf16.mxu0 %v2806
        %3051 = vmatpush1.bf16.msra.mxu0 %v2805
        %3052 = vmatprep.subr.bf16.mxu0 %v2814
        %3053 = vmatpush1.bf16.msra.mxu0 %v2813
        %3054 = vmatprep.subr.bf16.mxu0 %v2822
        %3055 = vmatpush1.bf16.msra.mxu0 %v2821
        %3056 = vmatprep.subr.bf16.mxu0 %v2830
        %3057 = vmatpush1.bf16.msra.mxu0 %v2829
        %3058 = vmatprep.subr.bf16.mxu0 %v2838
        %3059 = vmatpush1.bf16.msra.mxu0 %v2837
        %3060 = vmatprep.subr.bf16.mxu0 %v2846
        %3061 = vmatpush1.bf16.msra.mxu0 %v2845
        %3062 = vmatprep.subr.bf16.mxu0 %v2854
        %3063 = vmatpush1.bf16.msra.mxu0 %v2853
        %3064 = vmatprep.subr.bf16.mxu0 0
        %3065 = vmatpush1.bf16.msra.mxu0 0
        %3066 = vmatprep.subr.bf16.mxu0 0
        %3067 = vmatpush1.bf16.msra.mxu0 0
        %3068 = vmatprep.subr.bf16.mxu0 0
        %3069 = vmatpush1.bf16.msra.mxu0 0
        %3070 = vmatprep.subr.bf16.mxu0 0
        %3071 = vmatpush1.bf16.msra.mxu0 0
        %3072 = vmatprep.subr.bf16.mxu0 0
        %3073 = vmatpush1.bf16.msra.mxu0 0
        %3074 = vmatprep.subr.bf16.mxu0 0
        %3075 = vmatpush1.bf16.msra.mxu0 0
        %3076 = vmatprep.subr.bf16.mxu0 0
        %3077 = vmatpush1.bf16.msra.mxu0 0
        %3078 = vmatprep.subr.bf16.mxu0 0
        %3079 = vmatpush1.bf16.msra.mxu0 0
        %3080 = vmatprep.mubr.bf16.mxu0 0
        %3081 = vmatmul.mubr.bf16.gmra.mrb[0].mxu0 %v2597
        %v3082 = vpop.f32.mrb[0].mxu0
        %v3083 = vadd.f32 0.0, %v3082
        %v3084 = vpop.f32.mrb[0].mxu0
        %v3085 = vadd.f32 0.0, %v3084
        %v3086 = vpop.f32.mrb[0].mxu0
        %v3087 = vadd.f32 0.0, %v3086
        %v3088 = vpop.f32.mrb[0].mxu0
        %v3089 = vadd.f32 0.0, %v3088
        %3090 = vdwg.mxu0
        %v3091 = vadd.f32 %v2509, %v2954
        %v3092 = vadd.f32 %v2510, %v2956
        %v3093 = vadd.f32 %v2511, %v2997
        %v3094 = vadd.f32 %v2512, %v2999
        %v3095 = vadd.f32 %v2513, %v3040
        %v3096 = vadd.f32 %v2514, %v3042
        %v3097 = vadd.f32 %v2515, %v3083
        %v3098 = vadd.f32 %v2516, %v3085
        %v3099 = vadd.f32 %v2517, %v2958
        %v3100 = vadd.f32 %v2518, %v2960
        %v3101 = vadd.f32 %v2519, %v3001
        %v3102 = vadd.f32 %v2520, %v3003
        %v3103 = vadd.f32 %v2521, %v3044
        %v3104 = vadd.f32 %v2522, %v3046
        %v3105 = vadd.f32 %v2523, %v3087
        %v3106 = vadd.f32 %v2524, %v3089
        %v3107 = vld [vmem:[%s266] sm:$0xe]
        %s3108 = scalar_lea.vmem [#allocation2], 2560
        %v3109 = vld [vmem:[%s3108] sm:$0xff]
        %v3110 = vld [vmem:[%s3108 + $0x8] sm:$0xff]
        %v3111 = vld [vmem:[%s3108 + $0x10] sm:$0xff]
        %v3112 = vld [vmem:[%s3108 + $0x18] sm:$0xff]
        %v3113 = vld [vmem:[%s3108 + $0x20] sm:$0xff]
        %v3114 = vld [vmem:[%s3108 + $0x28] sm:$0xff]
        %v3115 = vld [vmem:[%s3108 + $0x30] sm:$0xff]
        %v3116 = vld [vmem:[%s3108 + $0x38] sm:$0xff]
        %v3117 = vld [vmem:[%s3108 + $0x40] sm:$0xff]
        %v3118 = vld [vmem:[%s3108 + $0x48] sm:$0xff]
        %v3119 = vld [vmem:[%s3108 + $0x50] sm:$0xff]
        %v3120 = vld [vmem:[%s3108 + $0x58] sm:$0xff]
        %v3121 = vld [vmem:[%s3108 + $0x60] sm:$0xff]
        %v3122 = vld [vmem:[%s3108 + $0x68] sm:$0xff]
        %v3123 = vld [vmem:[%s3108 + $0x70] sm:$0xff]
        %v3124 = vld [vmem:[%s3108 + $0x78] sm:$0xff]
        %v3125 = vld [vmem:[%s3108 + $0x80] sm:$0xff]
        %v3126 = vld [vmem:[%s3108 + $0x88] sm:$0xff]
        %v3127 = vld [vmem:[%s3108 + $0x90] sm:$0xff]
        %v3128 = vld [vmem:[%s3108 + $0x98] sm:$0xff]
        %v3129 = vld [vmem:[%s3108 + $0xa0] sm:$0xff]
        %v3130 = vld [vmem:[%s3108 + $0xa8] sm:$0xff]
        %v3131 = vld [vmem:[%s3108 + $0xb0] sm:$0xff]
        %v3132 = vld [vmem:[%s3108 + $0xb8] sm:$0xff]
        %v3133 = vld [vmem:[%s3108 + $0xc0] sm:$0xff]
        %v3134 = vld [vmem:[%s3108 + $0xc8] sm:$0xff]
        %v3135 = vld [vmem:[%s3108 + $0xd0] sm:$0xff]
        %v3136 = vld [vmem:[%s3108 + $0xd8] sm:$0xff]
        %v3137 = vld [vmem:[%s3108 + $0xe0] sm:$0xff]
        %v3138 = vld [vmem:[%s3108 + $0xe8] sm:$0xff]
        %v3139 = vld [vmem:[%s3108 + $0xf0] sm:$0xff]
        %v3140 = vld [vmem:[%s3108 + $0xf8] sm:$0xff]
        %v3141 = vld [vmem:[%s3108 + $0x100] sm:$0xff]
        %v3142 = vld [vmem:[%s3108 + $0x108] sm:$0xff]
        %v3143 = vld [vmem:[%s3108 + $0x110] sm:$0xff]
        %v3144 = vld [vmem:[%s3108 + $0x118] sm:$0xff]
        %v3145 = vld [vmem:[%s3108 + $0x120] sm:$0xff]
        %v3146 = vld [vmem:[%s3108 + $0x128] sm:$0xff]
        %v3147 = vld [vmem:[%s3108 + $0x130] sm:$0xff]
        %v3148 = vld [vmem:[%s3108 + $0x138] sm:$0xff]
        %v3149 = vld [vmem:[%s3108 + $0x140] sm:$0xff]
        %v3150 = vld [vmem:[%s3108 + $0x148] sm:$0xff]
        %v3151 = vld [vmem:[%s3108 + $0x150] sm:$0xff]
        %v3152 = vld [vmem:[%s3108 + $0x158] sm:$0xff]
        %v3153 = vld [vmem:[%s3108 + $0x160] sm:$0xff]
        %v3154 = vld [vmem:[%s3108 + $0x168] sm:$0xff]
        %v3155 = vld [vmem:[%s3108 + $0x170] sm:$0xff]
        %v3156 = vld [vmem:[%s3108 + $0x178] sm:$0xff]
        %v3157 = vld [vmem:[%s3108 + $0x180] sm:$0xff]
        %v3158 = vld [vmem:[%s3108 + $0x188] sm:$0xff]
        %v3159 = vld [vmem:[%s3108 + $0x190] sm:$0xff]
        %v3160 = vld [vmem:[%s3108 + $0x198] sm:$0xff]
        %v3161 = vld [vmem:[%s3108 + $0x1a0] sm:$0xff]
        %v3162 = vld [vmem:[%s3108 + $0x1a8] sm:$0xff]
        %v3163 = vld [vmem:[%s3108 + $0x1b0] sm:$0xff]
        %v3164 = vld [vmem:[%s3108 + $0x1b8] sm:$0xff]
        %v3165 = vld [vmem:[%s3108 + $0x1c0] sm:$0xff]
        %v3166 = vld [vmem:[%s3108 + $0x1c8] sm:$0xff]
        %v3167 = vld [vmem:[%s3108 + $0x1d0] sm:$0xff]
        %v3168 = vld [vmem:[%s3108 + $0x1d8] sm:$0xff]
        %v3169 = vld [vmem:[%s3108 + $0x1e0] sm:$0xff]
        %v3170 = vld [vmem:[%s3108 + $0x1e8] sm:$0xff]
        %v3171 = vld [vmem:[%s3108 + $0x1f0] sm:$0xff]
        %v3172 = vld [vmem:[%s3108 + $0x1f8] sm:$0xff]
        %v3174 = vunpack.c.l.b16 %v3107
        %v3175 = vpack.c.b16 %v2000, %v3174
        %v3176 = vrot.slane %v3175, 1
        %v3177 = vrot.slane %v2003, 1
        %v3178 = vsel %vm2594, %v3176, %v3177
        %v3244 = vunpack.c.l.b16 %v3109
        %v3245 = vunpack.c.h.b16 %v3109
        %v3246 = vunpack.c.l.b16 %v3110
        %v3247 = vunpack.c.h.b16 %v3110
        %v3248 = vunpack.c.l.b16 %v3111
        %v3249 = vunpack.c.h.b16 %v3111
        %v3250 = vunpack.c.l.b16 %v3112
        %v3251 = vunpack.c.h.b16 %v3112
        %v3252 = vunpack.c.l.b16 %v3113
        %v3253 = vunpack.c.h.b16 %v3113
        %v3254 = vunpack.c.l.b16 %v3114
        %v3255 = vunpack.c.h.b16 %v3114
        %v3256 = vunpack.c.l.b16 %v3115
        %v3257 = vunpack.c.h.b16 %v3115
        %v3258 = vunpack.c.l.b16 %v3116
        %v3259 = vunpack.c.h.b16 %v3116
        %v3260 = vunpack.c.l.b16 %v3117
        %v3261 = vunpack.c.h.b16 %v3117
        %v3262 = vunpack.c.l.b16 %v3118
        %v3263 = vunpack.c.h.b16 %v3118
        %v3264 = vunpack.c.l.b16 %v3119
        %v3265 = vunpack.c.h.b16 %v3119
        %v3266 = vunpack.c.l.b16 %v3120
        %v3267 = vunpack.c.h.b16 %v3120
        %v3268 = vunpack.c.l.b16 %v3121
        %v3269 = vunpack.c.h.b16 %v3121
        %v3270 = vunpack.c.l.b16 %v3122
        %v3271 = vunpack.c.h.b16 %v3122
        %v3272 = vunpack.c.l.b16 %v3123
        %v3273 = vunpack.c.h.b16 %v3123
        %v3274 = vunpack.c.l.b16 %v3124
        %v3275 = vunpack.c.h.b16 %v3124
        %v3276 = vunpack.c.l.b16 %v3125
        %v3277 = vunpack.c.h.b16 %v3125
        %v3278 = vunpack.c.l.b16 %v3126
        %v3279 = vunpack.c.h.b16 %v3126
        %v3280 = vunpack.c.l.b16 %v3127
        %v3281 = vunpack.c.h.b16 %v3127
        %v3282 = vunpack.c.l.b16 %v3128
        %v3283 = vunpack.c.h.b16 %v3128
        %v3284 = vunpack.c.l.b16 %v3129
        %v3285 = vunpack.c.h.b16 %v3129
        %v3286 = vunpack.c.l.b16 %v3130
        %v3287 = vunpack.c.h.b16 %v3130
        %v3288 = vunpack.c.l.b16 %v3131
        %v3289 = vunpack.c.h.b16 %v3131
        %v3290 = vunpack.c.l.b16 %v3132
        %v3291 = vunpack.c.h.b16 %v3132
        %v3292 = vunpack.c.l.b16 %v3133
        %v3293 = vunpack.c.h.b16 %v3133
        %v3294 = vunpack.c.l.b16 %v3134
        %v3295 = vunpack.c.h.b16 %v3134
        %v3296 = vunpack.c.l.b16 %v3135
        %v3297 = vunpack.c.h.b16 %v3135
        %v3298 = vunpack.c.l.b16 %v3136
        %v3299 = vunpack.c.h.b16 %v3136
        %v3300 = vunpack.c.l.b16 %v3137
        %v3301 = vunpack.c.h.b16 %v3137
        %v3302 = vunpack.c.l.b16 %v3138
        %v3303 = vunpack.c.h.b16 %v3138
        %v3304 = vunpack.c.l.b16 %v3139
        %v3305 = vunpack.c.h.b16 %v3139
        %v3306 = vunpack.c.l.b16 %v3140
        %v3307 = vunpack.c.h.b16 %v3140
        %v3308 = vunpack.c.l.b16 %v3141
        %v3309 = vunpack.c.h.b16 %v3141
        %v3310 = vunpack.c.l.b16 %v3142
        %v3311 = vunpack.c.h.b16 %v3142
        %v3312 = vunpack.c.l.b16 %v3143
        %v3313 = vunpack.c.h.b16 %v3143
        %v3314 = vunpack.c.l.b16 %v3144
        %v3315 = vunpack.c.h.b16 %v3144
        %v3316 = vunpack.c.l.b16 %v3145
        %v3317 = vunpack.c.h.b16 %v3145
        %v3318 = vunpack.c.l.b16 %v3146
        %v3319 = vunpack.c.h.b16 %v3146
        %v3320 = vunpack.c.l.b16 %v3147
        %v3321 = vunpack.c.h.b16 %v3147
        %v3322 = vunpack.c.l.b16 %v3148
        %v3323 = vunpack.c.h.b16 %v3148
        %v3324 = vunpack.c.l.b16 %v3149
        %v3325 = vunpack.c.h.b16 %v3149
        %v3326 = vunpack.c.l.b16 %v3150
        %v3327 = vunpack.c.h.b16 %v3150
        %v3328 = vunpack.c.l.b16 %v3151
        %v3329 = vunpack.c.h.b16 %v3151
        %v3330 = vunpack.c.l.b16 %v3152
        %v3331 = vunpack.c.h.b16 %v3152
        %v3332 = vunpack.c.l.b16 %v3153
        %v3333 = vunpack.c.h.b16 %v3153
        %v3334 = vunpack.c.l.b16 %v3154
        %v3335 = vunpack.c.h.b16 %v3154
        %v3336 = vunpack.c.l.b16 %v3155
        %v3337 = vunpack.c.h.b16 %v3155
        %v3338 = vunpack.c.l.b16 %v3156
        %v3339 = vunpack.c.h.b16 %v3156
        %v3340 = vunpack.c.l.b16 %v3157
        %v3341 = vunpack.c.h.b16 %v3157
        %v3342 = vunpack.c.l.b16 %v3158
        %v3343 = vunpack.c.h.b16 %v3158
        %v3344 = vunpack.c.l.b16 %v3159
        %v3345 = vunpack.c.h.b16 %v3159
        %v3346 = vunpack.c.l.b16 %v3160
        %v3347 = vunpack.c.h.b16 %v3160
        %v3348 = vunpack.c.l.b16 %v3161
        %v3349 = vunpack.c.h.b16 %v3161
        %v3350 = vunpack.c.l.b16 %v3162
        %v3351 = vunpack.c.h.b16 %v3162
        %v3352 = vunpack.c.l.b16 %v3163
        %v3353 = vunpack.c.h.b16 %v3163
        %v3354 = vunpack.c.l.b16 %v3164
        %v3355 = vunpack.c.h.b16 %v3164
        %v3356 = vunpack.c.l.b16 %v3165
        %v3357 = vunpack.c.h.b16 %v3165
        %v3358 = vunpack.c.l.b16 %v3166
        %v3359 = vunpack.c.h.b16 %v3166
        %v3360 = vunpack.c.l.b16 %v3167
        %v3361 = vunpack.c.h.b16 %v3167
        %v3362 = vunpack.c.l.b16 %v3168
        %v3363 = vunpack.c.h.b16 %v3168
        %v3364 = vunpack.c.l.b16 %v3169
        %v3365 = vunpack.c.h.b16 %v3169
        %v3366 = vunpack.c.l.b16 %v3170
        %v3367 = vunpack.c.h.b16 %v3170
        %v3368 = vunpack.c.l.b16 %v3171
        %v3369 = vunpack.c.h.b16 %v3171
        %v3370 = vunpack.c.l.b16 %v3172
        %v3371 = vunpack.c.h.b16 %v3172
        %v3372 = vpack.c.b16 %v3252, %v3244
        %v3373 = vpack.c.b16 %v3253, %v3245
        %v3374 = vpack.c.b16 %v3254, %v3246
        %v3375 = vpack.c.b16 %v3255, %v3247
        %v3376 = vpack.c.b16 %v3256, %v3248
        %v3377 = vpack.c.b16 %v3257, %v3249
        %v3378 = vpack.c.b16 %v3258, %v3250
        %v3379 = vpack.c.b16 %v3259, %v3251
        %v3380 = vpack.c.b16 %v3268, %v3260
        %v3381 = vpack.c.b16 %v3269, %v3261
        %v3382 = vpack.c.b16 %v3270, %v3262
        %v3383 = vpack.c.b16 %v3271, %v3263
        %v3384 = vpack.c.b16 %v3272, %v3264
        %v3385 = vpack.c.b16 %v3273, %v3265
        %v3386 = vpack.c.b16 %v3274, %v3266
        %v3387 = vpack.c.b16 %v3275, %v3267
        %v3388 = vpack.c.b16 %v3284, %v3276
        %v3389 = vpack.c.b16 %v3285, %v3277
        %v3390 = vpack.c.b16 %v3286, %v3278
        %v3391 = vpack.c.b16 %v3287, %v3279
        %v3392 = vpack.c.b16 %v3288, %v3280
        %v3393 = vpack.c.b16 %v3289, %v3281
        %v3394 = vpack.c.b16 %v3290, %v3282
        %v3395 = vpack.c.b16 %v3291, %v3283
        %v3396 = vpack.c.b16 %v3300, %v3292
        %v3397 = vpack.c.b16 %v3301, %v3293
        %v3398 = vpack.c.b16 %v3302, %v3294
        %v3399 = vpack.c.b16 %v3303, %v3295
        %v3400 = vpack.c.b16 %v3304, %v3296
        %v3401 = vpack.c.b16 %v3305, %v3297
        %v3402 = vpack.c.b16 %v3306, %v3298
        %v3403 = vpack.c.b16 %v3307, %v3299
        %v3404 = vpack.c.b16 %v3316, %v3308
        %v3405 = vpack.c.b16 %v3317, %v3309
        %v3406 = vpack.c.b16 %v3318, %v3310
        %v3407 = vpack.c.b16 %v3319, %v3311
        %v3408 = vpack.c.b16 %v3320, %v3312
        %v3409 = vpack.c.b16 %v3321, %v3313
        %v3410 = vpack.c.b16 %v3322, %v3314
        %v3411 = vpack.c.b16 %v3323, %v3315
        %v3412 = vpack.c.b16 %v3332, %v3324
        %v3413 = vpack.c.b16 %v3333, %v3325
        %v3414 = vpack.c.b16 %v3334, %v3326
        %v3415 = vpack.c.b16 %v3335, %v3327
        %v3416 = vpack.c.b16 %v3336, %v3328
        %v3417 = vpack.c.b16 %v3337, %v3329
        %v3418 = vpack.c.b16 %v3338, %v3330
        %v3419 = vpack.c.b16 %v3339, %v3331
        %v3420 = vpack.c.b16 %v3348, %v3340
        %v3421 = vpack.c.b16 %v3349, %v3341
        %v3422 = vpack.c.b16 %v3350, %v3342
        %v3423 = vpack.c.b16 %v3351, %v3343
        %v3424 = vpack.c.b16 %v3352, %v3344
        %v3425 = vpack.c.b16 %v3353, %v3345
        %v3426 = vpack.c.b16 %v3354, %v3346
        %v3427 = vpack.c.b16 %v3355, %v3347
        %v3428 = vpack.c.b16 %v3364, %v3356
        %v3429 = vpack.c.b16 %v3365, %v3357
        %v3430 = vpack.c.b16 %v3366, %v3358
        %v3431 = vpack.c.b16 %v3367, %v3359
        %v3432 = vpack.c.b16 %v3368, %v3360
        %v3433 = vpack.c.b16 %v3369, %v3361
        %v3434 = vpack.c.b16 %v3370, %v3362
        %v3435 = vpack.c.b16 %v3371, %v3363
        %3500 = vmatprep.subr.bf16.mxu0 %v3373
        %3501 = vmatpush1.bf16.msra.mxu0 %v3372
        %3502 = vmatprep.subr.bf16.mxu0 %v3381
        %3503 = vmatpush1.bf16.msra.mxu0 %v3380
        %3504 = vmatprep.subr.bf16.mxu0 %v3389
        %3505 = vmatpush1.bf16.msra.mxu0 %v3388
        %3506 = vmatprep.subr.bf16.mxu0 %v3397
        %3507 = vmatpush1.bf16.msra.mxu0 %v3396
        %3508 = vmatprep.subr.bf16.mxu0 %v3405
        %3509 = vmatpush1.bf16.msra.mxu0 %v3404
        %3510 = vmatprep.subr.bf16.mxu0 %v3413
        %3511 = vmatpush1.bf16.msra.mxu0 %v3412
        %3512 = vmatprep.subr.bf16.mxu0 %v3421
        %3513 = vmatpush1.bf16.msra.mxu0 %v3420
        %3514 = vmatprep.subr.bf16.mxu0 %v3429
        %3515 = vmatpush1.bf16.msra.mxu0 %v3428
        %3516 = vmatprep.subr.bf16.mxu0 0
        %3517 = vmatpush1.bf16.msra.mxu0 0
        %3518 = vmatprep.subr.bf16.mxu0 0
        %3519 = vmatpush1.bf16.msra.mxu0 0
        %3520 = vmatprep.subr.bf16.mxu0 0
        %3521 = vmatpush1.bf16.msra.mxu0 0
        %3522 = vmatprep.subr.bf16.mxu0 0
        %3523 = vmatpush1.bf16.msra.mxu0 0
        %3524 = vmatprep.subr.bf16.mxu0 0
        %3525 = vmatpush1.bf16.msra.mxu0 0
        %3526 = vmatprep.subr.bf16.mxu0 0
        %3527 = vmatpush1.bf16.msra.mxu0 0
        %3528 = vmatprep.subr.bf16.mxu0 0
        %3529 = vmatpush1.bf16.msra.mxu0 0
        %3530 = vmatprep.subr.bf16.mxu0 0
        %3531 = vmatpush1.bf16.msra.mxu0 0
        %3532 = vmatprep.mubr.bf16.mxu0 0
        %3533 = vmatmul.mubr.bf16.gmra.mrb[0].mxu0 %v3178
        %v3534 = vpop.f32.mrb[0].mxu0
        %v3535 = vadd.f32 0.0, %v3534
        %v3536 = vpop.f32.mrb[0].mxu0
        %v3537 = vadd.f32 0.0, %v3536
        %v3538 = vpop.f32.mrb[0].mxu0
        %v3539 = vadd.f32 0.0, %v3538
        %v3540 = vpop.f32.mrb[0].mxu0
        %v3541 = vadd.f32 0.0, %v3540
        %3542 = vdwg.mxu0
        %3543 = vmatprep.subr.bf16.mxu0 %v3375
        %3544 = vmatpush1.bf16.msra.mxu0 %v3374
        %3545 = vmatprep.subr.bf16.mxu0 %v3383
        %3546 = vmatpush1.bf16.msra.mxu0 %v3382
        %3547 = vmatprep.subr.bf16.mxu0 %v3391
        %3548 = vmatpush1.bf16.msra.mxu0 %v3390
        %3549 = vmatprep.subr.bf16.mxu0 %v3399
        %3550 = vmatpush1.bf16.msra.mxu0 %v3398
        %3551 = vmatprep.subr.bf16.mxu0 %v3407
        %3552 = vmatpush1.bf16.msra.mxu0 %v3406
        %3553 = vmatprep.subr.bf16.mxu0 %v3415
        %3554 = vmatpush1.bf16.msra.mxu0 %v3414
        %3555 = vmatprep.subr.bf16.mxu0 %v3423
        %3556 = vmatpush1.bf16.msra.mxu0 %v3422
        %3557 = vmatprep.subr.bf16.mxu0 %v3431
        %3558 = vmatpush1.bf16.msra.mxu0 %v3430
        %3559 = vmatprep.subr.bf16.mxu0 0
        %3560 = vmatpush1.bf16.msra.mxu0 0
        %3561 = vmatprep.subr.bf16.mxu0 0
        %3562 = vmatpush1.bf16.msra.mxu0 0
        %3563 = vmatprep.subr.bf16.mxu0 0
        %3564 = vmatpush1.bf16.msra.mxu0 0
        %3565 = vmatprep.subr.bf16.mxu0 0
        %3566 = vmatpush1.bf16.msra.mxu0 0
        %3567 = vmatprep.subr.bf16.mxu0 0
        %3568 = vmatpush1.bf16.msra.mxu0 0
        %3569 = vmatprep.subr.bf16.mxu0 0
        %3570 = vmatpush1.bf16.msra.mxu0 0
        %3571 = vmatprep.subr.bf16.mxu0 0
        %3572 = vmatpush1.bf16.msra.mxu0 0
        %3573 = vmatprep.subr.bf16.mxu0 0
        %3574 = vmatpush1.bf16.msra.mxu0 0
        %3575 = vmatprep.mubr.bf16.mxu0 0
        %3576 = vmatmul.mubr.bf16.gmra.mrb[0].mxu0 %v3178
        %v3577 = vpop.f32.mrb[0].mxu0
        %v3578 = vadd.f32 0.0, %v3577
        %v3579 = vpop.f32.mrb[0].mxu0
        %v3580 = vadd.f32 0.0, %v3579
        %v3581 = vpop.f32.mrb[0].mxu0
        %v3582 = vadd.f32 0.0, %v3581
        %v3583 = vpop.f32.mrb[0].mxu0
        %v3584 = vadd.f32 0.0, %v3583
        %3585 = vdwg.mxu0
        %3586 = vmatprep.subr.bf16.mxu0 %v3377
        %3587 = vmatpush1.bf16.msra.mxu0 %v3376
        %3588 = vmatprep.subr.bf16.mxu0 %v3385
        %3589 = vmatpush1.bf16.msra.mxu0 %v3384
        %3590 = vmatprep.subr.bf16.mxu0 %v3393
        %3591 = vmatpush1.bf16.msra.mxu0 %v3392
        %3592 = vmatprep.subr.bf16.mxu0 %v3401
        %3593 = vmatpush1.bf16.msra.mxu0 %v3400
        %3594 = vmatprep.subr.bf16.mxu0 %v3409
        %3595 = vmatpush1.bf16.msra.mxu0 %v3408
        %3596 = vmatprep.subr.bf16.mxu0 %v3417
        %3597 = vmatpush1.bf16.msra.mxu0 %v3416
        %3598 = vmatprep.subr.bf16.mxu0 %v3425
        %3599 = vmatpush1.bf16.msra.mxu0 %v3424
        %3600 = vmatprep.subr.bf16.mxu0 %v3433
        %3601 = vmatpush1.bf16.msra.mxu0 %v3432
        %3602 = vmatprep.subr.bf16.mxu0 0
        %3603 = vmatpush1.bf16.msra.mxu0 0
        %3604 = vmatprep.subr.bf16.mxu0 0
        %3605 = vmatpush1.bf16.msra.mxu0 0
        %3606 = vmatprep.subr.bf16.mxu0 0
        %3607 = vmatpush1.bf16.msra.mxu0 0
        %3608 = vmatprep.subr.bf16.mxu0 0
        %3609 = vmatpush1.bf16.msra.mxu0 0
        %3610 = vmatprep.subr.bf16.mxu0 0
        %3611 = vmatpush1.bf16.msra.mxu0 0
        %3612 = vmatprep.subr.bf16.mxu0 0
        %3613 = vmatpush1.bf16.msra.mxu0 0
        %3614 = vmatprep.subr.bf16.mxu0 0
        %3615 = vmatpush1.bf16.msra.mxu0 0
        %3616 = vmatprep.subr.bf16.mxu0 0
        %3617 = vmatpush1.bf16.msra.mxu0 0
        %3618 = vmatprep.mubr.bf16.mxu0 0
        %3619 = vmatmul.mubr.bf16.gmra.mrb[0].mxu0 %v3178
        %v3620 = vpop.f32.mrb[0].mxu0
        %v3621 = vadd.f32 0.0, %v3620
        %v3622 = vpop.f32.mrb[0].mxu0
        %v3623 = vadd.f32 0.0, %v3622
        %v3624 = vpop.f32.mrb[0].mxu0
        %v3625 = vadd.f32 0.0, %v3624
        %v3626 = vpop.f32.mrb[0].mxu0
        %v3627 = vadd.f32 0.0, %v3626
        %3628 = vdwg.mxu0
        %3629 = vmatprep.subr.bf16.mxu0 %v3379
        %3630 = vmatpush1.bf16.msra.mxu0 %v3378
        %3631 = vmatprep.subr.bf16.mxu0 %v3387
        %3632 = vmatpush1.bf16.msra.mxu0 %v3386
        %3633 = vmatprep.subr.bf16.mxu0 %v3395
        %3634 = vmatpush1.bf16.msra.mxu0 %v3394
        %3635 = vmatprep.subr.bf16.mxu0 %v3403
        %3636 = vmatpush1.bf16.msra.mxu0 %v3402
        %3637 = vmatprep.subr.bf16.mxu0 %v3411
        %3638 = vmatpush1.bf16.msra.mxu0 %v3410
        %3639 = vmatprep.subr.bf16.mxu0 %v3419
        %3640 = vmatpush1.bf16.msra.mxu0 %v3418
        %3641 = vmatprep.subr.bf16.mxu0 %v3427
        %3642 = vmatpush1.bf16.msra.mxu0 %v3426
        %3643 = vmatprep.subr.bf16.mxu0 %v3435
        %3644 = vmatpush1.bf16.msra.mxu0 %v3434
        %3645 = vmatprep.subr.bf16.mxu0 0
        %3646 = vmatpush1.bf16.msra.mxu0 0
        %3647 = vmatprep.subr.bf16.mxu0 0
        %3648 = vmatpush1.bf16.msra.mxu0 0
        %3649 = vmatprep.subr.bf16.mxu0 0
        %3650 = vmatpush1.bf16.msra.mxu0 0
        %3651 = vmatprep.subr.bf16.mxu0 0
        %3652 = vmatpush1.bf16.msra.mxu0 0
        %3653 = vmatprep.subr.bf16.mxu0 0
        %3654 = vmatpush1.bf16.msra.mxu0 0
        %3655 = vmatprep.subr.bf16.mxu0 0
        %3656 = vmatpush1.bf16.msra.mxu0 0
        %3657 = vmatprep.subr.bf16.mxu0 0
        %3658 = vmatpush1.bf16.msra.mxu0 0
        %3659 = vmatprep.subr.bf16.mxu0 0
        %3660 = vmatpush1.bf16.msra.mxu0 0
        %3661 = vmatprep.mubr.bf16.mxu0 0
        %3662 = vmatmul.mubr.bf16.gmra.mrb[0].mxu0 %v3178
        %v3663 = vpop.f32.mrb[0].mxu0
        %v3664 = vadd.f32 0.0, %v3663
        %v3665 = vpop.f32.mrb[0].mxu0
        %v3666 = vadd.f32 0.0, %v3665
        %v3667 = vpop.f32.mrb[0].mxu0
        %v3668 = vadd.f32 0.0, %v3667
        %v3669 = vpop.f32.mrb[0].mxu0
        %v3670 = vadd.f32 0.0, %v3669
        %3671 = vdwg.mxu0
        %v3672 = vadd.f32 %v3091, %v3535
        %v3673 = vadd.f32 %v3092, %v3537
        %v3674 = vadd.f32 %v3093, %v3578
        %v3675 = vadd.f32 %v3094, %v3580
        %v3676 = vadd.f32 %v3095, %v3621
        %v3677 = vadd.f32 %v3096, %v3623
        %v3678 = vadd.f32 %v3097, %v3664
        %v3679 = vadd.f32 %v3098, %v3666
        %v3680 = vadd.f32 %v3099, %v3539
        %v3681 = vadd.f32 %v3100, %v3541
        %v3682 = vadd.f32 %v3101, %v3582
        %v3683 = vadd.f32 %v3102, %v3584
        %v3684 = vadd.f32 %v3103, %v3625
        %v3685 = vadd.f32 %v3104, %v3627
        %v3686 = vadd.f32 %v3105, %v3668
        %v3687 = vadd.f32 %v3106, %v3670
        %v3688 = vld [vmem:[%s193 + $0x8] sm:$0x3]
        %s3689 = scalar_lea.vmem [#allocation2], 3072
        %v3690 = vld [vmem:[%s3689] sm:$0xff]
        %v3691 = vld [vmem:[%s3689 + $0x8] sm:$0xff]
        %v3692 = vld [vmem:[%s3689 + $0x10] sm:$0xff]
        %v3693 = vld [vmem:[%s3689 + $0x18] sm:$0xff]
        %v3694 = vld [vmem:[%s3689 + $0x20] sm:$0xff]
        %v3695 = vld [vmem:[%s3689 + $0x28] sm:$0xff]
        %v3696 = vld [vmem:[%s3689 + $0x30] sm:$0xff]
        %v3697 = vld [vmem:[%s3689 + $0x38] sm:$0xff]
        %v3698 = vld [vmem:[%s3689 + $0x40] sm:$0xff]
        %v3699 = vld [vmem:[%s3689 + $0x48] sm:$0xff]
        %v3700 = vld [vmem:[%s3689 + $0x50] sm:$0xff]
        %v3701 = vld [vmem:[%s3689 + $0x58] sm:$0xff]
        %v3702 = vld [vmem:[%s3689 + $0x60] sm:$0xff]
        %v3703 = vld [vmem:[%s3689 + $0x68] sm:$0xff]
        %v3704 = vld [vmem:[%s3689 + $0x70] sm:$0xff]
        %v3705 = vld [vmem:[%s3689 + $0x78] sm:$0xff]
        %v3706 = vld [vmem:[%s3689 + $0x80] sm:$0xff]
        %v3707 = vld [vmem:[%s3689 + $0x88] sm:$0xff]
        %v3708 = vld [vmem:[%s3689 + $0x90] sm:$0xff]
        %v3709 = vld [vmem:[%s3689 + $0x98] sm:$0xff]
        %v3710 = vld [vmem:[%s3689 + $0xa0] sm:$0xff]
        %v3711 = vld [vmem:[%s3689 + $0xa8] sm:$0xff]
        %v3712 = vld [vmem:[%s3689 + $0xb0] sm:$0xff]
        %v3713 = vld [vmem:[%s3689 + $0xb8] sm:$0xff]
        %v3714 = vld [vmem:[%s3689 + $0xc0] sm:$0xff]
        %v3715 = vld [vmem:[%s3689 + $0xc8] sm:$0xff]
        %v3716 = vld [vmem:[%s3689 + $0xd0] sm:$0xff]
        %v3717 = vld [vmem:[%s3689 + $0xd8] sm:$0xff]
        %v3718 = vld [vmem:[%s3689 + $0xe0] sm:$0xff]
        %v3719 = vld [vmem:[%s3689 + $0xe8] sm:$0xff]
        %v3720 = vld [vmem:[%s3689 + $0xf0] sm:$0xff]
        %v3721 = vld [vmem:[%s3689 + $0xf8] sm:$0xff]
        %v3722 = vld [vmem:[%s3689 + $0x100] sm:$0xff]
        %v3723 = vld [vmem:[%s3689 + $0x108] sm:$0xff]
        %v3724 = vld [vmem:[%s3689 + $0x110] sm:$0xff]
        %v3725 = vld [vmem:[%s3689 + $0x118] sm:$0xff]
        %v3726 = vld [vmem:[%s3689 + $0x120] sm:$0xff]
        %v3727 = vld [vmem:[%s3689 + $0x128] sm:$0xff]
        %v3728 = vld [vmem:[%s3689 + $0x130] sm:$0xff]
        %v3729 = vld [vmem:[%s3689 + $0x138] sm:$0xff]
        %v3730 = vld [vmem:[%s3689 + $0x140] sm:$0xff]
        %v3731 = vld [vmem:[%s3689 + $0x148] sm:$0xff]
        %v3732 = vld [vmem:[%s3689 + $0x150] sm:$0xff]
        %v3733 = vld [vmem:[%s3689 + $0x158] sm:$0xff]
        %v3734 = vld [vmem:[%s3689 + $0x160] sm:$0xff]
        %v3735 = vld [vmem:[%s3689 + $0x168] sm:$0xff]
        %v3736 = vld [vmem:[%s3689 + $0x170] sm:$0xff]
        %v3737 = vld [vmem:[%s3689 + $0x178] sm:$0xff]
        %v3738 = vld [vmem:[%s3689 + $0x180] sm:$0xff]
        %v3739 = vld [vmem:[%s3689 + $0x188] sm:$0xff]
        %v3740 = vld [vmem:[%s3689 + $0x190] sm:$0xff]
        %v3741 = vld [vmem:[%s3689 + $0x198] sm:$0xff]
        %v3742 = vld [vmem:[%s3689 + $0x1a0] sm:$0xff]
        %v3743 = vld [vmem:[%s3689 + $0x1a8] sm:$0xff]
        %v3744 = vld [vmem:[%s3689 + $0x1b0] sm:$0xff]
        %v3745 = vld [vmem:[%s3689 + $0x1b8] sm:$0xff]
        %v3746 = vld [vmem:[%s3689 + $0x1c0] sm:$0xff]
        %v3747 = vld [vmem:[%s3689 + $0x1c8] sm:$0xff]
        %v3748 = vld [vmem:[%s3689 + $0x1d0] sm:$0xff]
        %v3749 = vld [vmem:[%s3689 + $0x1d8] sm:$0xff]
        %v3750 = vld [vmem:[%s3689 + $0x1e0] sm:$0xff]
        %v3751 = vld [vmem:[%s3689 + $0x1e8] sm:$0xff]
        %v3752 = vld [vmem:[%s3689 + $0x1f0] sm:$0xff]
        %v3753 = vld [vmem:[%s3689 + $0x1f8] sm:$0xff]
        %v3755 = vunpack.c.l.b16 %v3688
        %v3756 = vpack.c.b16 %v3755, %v3755
        %vm3757 = vsmask.f32 6400
        %v3759 = vshrl.u32 %v2593, 16
        %v3761 = vrot.slane %v3759, 1
        %v3762 = vshll.u32 %v2593, 16
        %v3764 = vrot.slane %v3762, 2
        %v3765 = vor.u32 %v3761, %v3764
        %v3767 = vshrl.u32 %v3756, 16
        %v3769 = vrot.slane %v3767, 1
        %v3770 = vshll.u32 %v3756, 16
        %v3772 = vrot.slane %v3770, 2
        %v3773 = vor.u32 %v3769, %v3772
        %v3774 = vsel %vm3757, %v3765, %v3773
        %v3840 = vunpack.c.l.b16 %v3690
        %v3841 = vunpack.c.h.b16 %v3690
        %v3842 = vunpack.c.l.b16 %v3691
        %v3843 = vunpack.c.h.b16 %v3691
        %v3844 = vunpack.c.l.b16 %v3692
        %v3845 = vunpack.c.h.b16 %v3692
        %v3846 = vunpack.c.l.b16 %v3693
        %v3847 = vunpack.c.h.b16 %v3693
        %v3848 = vunpack.c.l.b16 %v3694
        %v3849 = vunpack.c.h.b16 %v3694
        %v3850 = vunpack.c.l.b16 %v3695
        %v3851 = vunpack.c.h.b16 %v3695
        %v3852 = vunpack.c.l.b16 %v3696
        %v3853 = vunpack.c.h.b16 %v3696
        %v3854 = vunpack.c.l.b16 %v3697
        %v3855 = vunpack.c.h.b16 %v3697
        %v3856 = vunpack.c.l.b16 %v3698
        %v3857 = vunpack.c.h.b16 %v3698
        %v3858 = vunpack.c.l.b16 %v3699
        %v3859 = vunpack.c.h.b16 %v3699
        %v3860 = vunpack.c.l.b16 %v3700
        %v3861 = vunpack.c.h.b16 %v3700
        %v3862 = vunpack.c.l.b16 %v3701
        %v3863 = vunpack.c.h.b16 %v3701
        %v3864 = vunpack.c.l.b16 %v3702
        %v3865 = vunpack.c.h.b16 %v3702
        %v3866 = vunpack.c.l.b16 %v3703
        %v3867 = vunpack.c.h.b16 %v3703
        %v3868 = vunpack.c.l.b16 %v3704
        %v3869 = vunpack.c.h.b16 %v3704
        %v3870 = vunpack.c.l.b16 %v3705
        %v3871 = vunpack.c.h.b16 %v3705
        %v3872 = vunpack.c.l.b16 %v3706
        %v3873 = vunpack.c.h.b16 %v3706
        %v3874 = vunpack.c.l.b16 %v3707
        %v3875 = vunpack.c.h.b16 %v3707
        %v3876 = vunpack.c.l.b16 %v3708
        %v3877 = vunpack.c.h.b16 %v3708
        %v3878 = vunpack.c.l.b16 %v3709
        %v3879 = vunpack.c.h.b16 %v3709
        %v3880 = vunpack.c.l.b16 %v3710
        %v3881 = vunpack.c.h.b16 %v3710
        %v3882 = vunpack.c.l.b16 %v3711
        %v3883 = vunpack.c.h.b16 %v3711
        %v3884 = vunpack.c.l.b16 %v3712
        %v3885 = vunpack.c.h.b16 %v3712
        %v3886 = vunpack.c.l.b16 %v3713
        %v3887 = vunpack.c.h.b16 %v3713
        %v3888 = vunpack.c.l.b16 %v3714
        %v3889 = vunpack.c.h.b16 %v3714
        %v3890 = vunpack.c.l.b16 %v3715
        %v3891 = vunpack.c.h.b16 %v3715
        %v3892 = vunpack.c.l.b16 %v3716
        %v3893 = vunpack.c.h.b16 %v3716
        %v3894 = vunpack.c.l.b16 %v3717
        %v3895 = vunpack.c.h.b16 %v3717
        %v3896 = vunpack.c.l.b16 %v3718
        %v3897 = vunpack.c.h.b16 %v3718
        %v3898 = vunpack.c.l.b16 %v3719
        %v3899 = vunpack.c.h.b16 %v3719
        %v3900 = vunpack.c.l.b16 %v3720
        %v3901 = vunpack.c.h.b16 %v3720
        %v3902 = vunpack.c.l.b16 %v3721
        %v3903 = vunpack.c.h.b16 %v3721
        %v3904 = vunpack.c.l.b16 %v3722
        %v3905 = vunpack.c.h.b16 %v3722
        %v3906 = vunpack.c.l.b16 %v3723
        %v3907 = vunpack.c.h.b16 %v3723
        %v3908 = vunpack.c.l.b16 %v3724
        %v3909 = vunpack.c.h.b16 %v3724
        %v3910 = vunpack.c.l.b16 %v3725
        %v3911 = vunpack.c.h.b16 %v3725
        %v3912 = vunpack.c.l.b16 %v3726
        %v3913 = vunpack.c.h.b16 %v3726
        %v3914 = vunpack.c.l.b16 %v3727
        %v3915 = vunpack.c.h.b16 %v3727
        %v3916 = vunpack.c.l.b16 %v3728
        %v3917 = vunpack.c.h.b16 %v3728
        %v3918 = vunpack.c.l.b16 %v3729
        %v3919 = vunpack.c.h.b16 %v3729
        %v3920 = vunpack.c.l.b16 %v3730
        %v3921 = vunpack.c.h.b16 %v3730
        %v3922 = vunpack.c.l.b16 %v3731
        %v3923 = vunpack.c.h.b16 %v3731
        %v3924 = vunpack.c.l.b16 %v3732
        %v3925 = vunpack.c.h.b16 %v3732
        %v3926 = vunpack.c.l.b16 %v3733
        %v3927 = vunpack.c.h.b16 %v3733
        %v3928 = vunpack.c.l.b16 %v3734
        %v3929 = vunpack.c.h.b16 %v3734
        %v3930 = vunpack.c.l.b16 %v3735
        %v3931 = vunpack.c.h.b16 %v3735
        %v3932 = vunpack.c.l.b16 %v3736
        %v3933 = vunpack.c.h.b16 %v3736
        %v3934 = vunpack.c.l.b16 %v3737
        %v3935 = vunpack.c.h.b16 %v3737
        %v3936 = vunpack.c.l.b16 %v3738
        %v3937 = vunpack.c.h.b16 %v3738
        %v3938 = vunpack.c.l.b16 %v3739
        %v3939 = vunpack.c.h.b16 %v3739
        %v3940 = vunpack.c.l.b16 %v3740
        %v3941 = vunpack.c.h.b16 %v3740
        %v3942 = vunpack.c.l.b16 %v3741
        %v3943 = vunpack.c.h.b16 %v3741
        %v3944 = vunpack.c.l.b16 %v3742
        %v3945 = vunpack.c.h.b16 %v3742
        %v3946 = vunpack.c.l.b16 %v3743
        %v3947 = vunpack.c.h.b16 %v3743
        %v3948 = vunpack.c.l.b16 %v3744
        %v3949 = vunpack.c.h.b16 %v3744
        %v3950 = vunpack.c.l.b16 %v3745
        %v3951 = vunpack.c.h.b16 %v3745
        %v3952 = vunpack.c.l.b16 %v3746
        %v3953 = vunpack.c.h.b16 %v3746
        %v3954 = vunpack.c.l.b16 %v3747
        %v3955 = vunpack.c.h.b16 %v3747
        %v3956 = vunpack.c.l.b16 %v3748
        %v3957 = vunpack.c.h.b16 %v3748
        %v3958 = vunpack.c.l.b16 %v3749
        %v3959 = vunpack.c.h.b16 %v3749
        %v3960 = vunpack.c.l.b16 %v3750
        %v3961 = vunpack.c.h.b16 %v3750
        %v3962 = vunpack.c.l.b16 %v3751
        %v3963 = vunpack.c.h.b16 %v3751
        %v3964 = vunpack.c.l.b16 %v3752
        %v3965 = vunpack.c.h.b16 %v3752
        %v3966 = vunpack.c.l.b16 %v3753
        %v3967 = vunpack.c.h.b16 %v3753
        %v3968 = vpack.c.b16 %v3848, %v3840
        %v3969 = vpack.c.b16 %v3849, %v3841
        %v3970 = vpack.c.b16 %v3850, %v3842
        %v3971 = vpack.c.b16 %v3851, %v3843
        %v3972 = vpack.c.b16 %v3852, %v3844
        %v3973 = vpack.c.b16 %v3853, %v3845
        %v3974 = vpack.c.b16 %v3854, %v3846
        %v3975 = vpack.c.b16 %v3855, %v3847
        %v3976 = vpack.c.b16 %v3864, %v3856
        %v3977 = vpack.c.b16 %v3865, %v3857
        %v3978 = vpack.c.b16 %v3866, %v3858
        %v3979 = vpack.c.b16 %v3867, %v3859
        %v3980 = vpack.c.b16 %v3868, %v3860
        %v3981 = vpack.c.b16 %v3869, %v3861
        %v3982 = vpack.c.b16 %v3870, %v3862
        %v3983 = vpack.c.b16 %v3871, %v3863
        %v3984 = vpack.c.b16 %v3880, %v3872
        %v3985 = vpack.c.b16 %v3881, %v3873
        %v3986 = vpack.c.b16 %v3882, %v3874
        %v3987 = vpack.c.b16 %v3883, %v3875
        %v3988 = vpack.c.b16 %v3884, %v3876
        %v3989 = vpack.c.b16 %v3885, %v3877
        %v3990 = vpack.c.b16 %v3886, %v3878
        %v3991 = vpack.c.b16 %v3887, %v3879
        %v3992 = vpack.c.b16 %v3896, %v3888
        %v3993 = vpack.c.b16 %v3897, %v3889
        %v3994 = vpack.c.b16 %v3898, %v3890
        %v3995 = vpack.c.b16 %v3899, %v3891
        %v3996 = vpack.c.b16 %v3900, %v3892
        %v3997 = vpack.c.b16 %v3901, %v3893
        %v3998 = vpack.c.b16 %v3902, %v3894
        %v3999 = vpack.c.b16 %v3903, %v3895
        %v4000 = vpack.c.b16 %v3912, %v3904
        %v4001 = vpack.c.b16 %v3913, %v3905
        %v4002 = vpack.c.b16 %v3914, %v3906
        %v4003 = vpack.c.b16 %v3915, %v3907
        %v4004 = vpack.c.b16 %v3916, %v3908
        %v4005 = vpack.c.b16 %v3917, %v3909
        %v4006 = vpack.c.b16 %v3918, %v3910
        %v4007 = vpack.c.b16 %v3919, %v3911
        %v4008 = vpack.c.b16 %v3928, %v3920
        %v4009 = vpack.c.b16 %v3929, %v3921
        %v4010 = vpack.c.b16 %v3930, %v3922
        %v4011 = vpack.c.b16 %v3931, %v3923
        %v4012 = vpack.c.b16 %v3932, %v3924
        %v4013 = vpack.c.b16 %v3933, %v3925
        %v4014 = vpack.c.b16 %v3934, %v3926
        %v4015 = vpack.c.b16 %v3935, %v3927
        %v4016 = vpack.c.b16 %v3944, %v3936
        %v4017 = vpack.c.b16 %v3945, %v3937
        %v4018 = vpack.c.b16 %v3946, %v3938
        %v4019 = vpack.c.b16 %v3947, %v3939
        %v4020 = vpack.c.b16 %v3948, %v3940
        %v4021 = vpack.c.b16 %v3949, %v3941
        %v4022 = vpack.c.b16 %v3950, %v3942
        %v4023 = vpack.c.b16 %v3951, %v3943
        %v4024 = vpack.c.b16 %v3960, %v3952
        %v4025 = vpack.c.b16 %v3961, %v3953
        %v4026 = vpack.c.b16 %v3962, %v3954
        %v4027 = vpack.c.b16 %v3963, %v3955
        %v4028 = vpack.c.b16 %v3964, %v3956
        %v4029 = vpack.c.b16 %v3965, %v3957
        %v4030 = vpack.c.b16 %v3966, %v3958
        %v4031 = vpack.c.b16 %v3967, %v3959
        %4096 = vmatprep.subr.bf16.mxu0 %v3969
        %4097 = vmatpush1.bf16.msra.mxu0 %v3968
        %4098 = vmatprep.subr.bf16.mxu0 %v3977
        %4099 = vmatpush1.bf16.msra.mxu0 %v3976
        %4100 = vmatprep.subr.bf16.mxu0 %v3985
        %4101 = vmatpush1.bf16.msra.mxu0 %v3984
        %4102 = vmatprep.subr.bf16.mxu0 %v3993
        %4103 = vmatpush1.bf16.msra.mxu0 %v3992
        %4104 = vmatprep.subr.bf16.mxu0 %v4001
        %4105 = vmatpush1.bf16.msra.mxu0 %v4000
        %4106 = vmatprep.subr.bf16.mxu0 %v4009
        %4107 = vmatpush1.bf16.msra.mxu0 %v4008
        %4108 = vmatprep.subr.bf16.mxu0 %v4017
        %4109 = vmatpush1.bf16.msra.mxu0 %v4016
        %4110 = vmatprep.subr.bf16.mxu0 %v4025
        %4111 = vmatpush1.bf16.msra.mxu0 %v4024
        %4112 = vmatprep.subr.bf16.mxu0 0
        %4113 = vmatpush1.bf16.msra.mxu0 0
        %4114 = vmatprep.subr.bf16.mxu0 0
        %4115 = vmatpush1.bf16.msra.mxu0 0
        %4116 = vmatprep.subr.bf16.mxu0 0
        %4117 = vmatpush1.bf16.msra.mxu0 0
        %4118 = vmatprep.subr.bf16.mxu0 0
        %4119 = vmatpush1.bf16.msra.mxu0 0
        %4120 = vmatprep.subr.bf16.mxu0 0
        %4121 = vmatpush1.bf16.msra.mxu0 0
        %4122 = vmatprep.subr.bf16.mxu0 0
        %4123 = vmatpush1.bf16.msra.mxu0 0
        %4124 = vmatprep.subr.bf16.mxu0 0
        %4125 = vmatpush1.bf16.msra.mxu0 0
        %4126 = vmatprep.subr.bf16.mxu0 0
        %4127 = vmatpush1.bf16.msra.mxu0 0
        %4128 = vmatprep.mubr.bf16.mxu0 0
        %4129 = vmatmul.mubr.bf16.gmra.mrb[0].mxu0 %v3774
        %v4130 = vpop.f32.mrb[0].mxu0
        %v4131 = vadd.f32 0.0, %v4130
        %v4132 = vpop.f32.mrb[0].mxu0
        %v4133 = vadd.f32 0.0, %v4132
        %v4134 = vpop.f32.mrb[0].mxu0
        %v4135 = vadd.f32 0.0, %v4134
        %v4136 = vpop.f32.mrb[0].mxu0
        %v4137 = vadd.f32 0.0, %v4136
        %4138 = vdwg.mxu0
        %4139 = vmatprep.subr.bf16.mxu0 %v3971
        %4140 = vmatpush1.bf16.msra.mxu0 %v3970
        %4141 = vmatprep.subr.bf16.mxu0 %v3979
        %4142 = vmatpush1.bf16.msra.mxu0 %v3978
        %4143 = vmatprep.subr.bf16.mxu0 %v3987
        %4144 = vmatpush1.bf16.msra.mxu0 %v3986
        %4145 = vmatprep.subr.bf16.mxu0 %v3995
        %4146 = vmatpush1.bf16.msra.mxu0 %v3994
        %4147 = vmatprep.subr.bf16.mxu0 %v4003
        %4148 = vmatpush1.bf16.msra.mxu0 %v4002
        %4149 = vmatprep.subr.bf16.mxu0 %v4011
        %4150 = vmatpush1.bf16.msra.mxu0 %v4010
        %4151 = vmatprep.subr.bf16.mxu0 %v4019
        %4152 = vmatpush1.bf16.msra.mxu0 %v4018
        %4153 = vmatprep.subr.bf16.mxu0 %v4027
        %4154 = vmatpush1.bf16.msra.mxu0 %v4026
        %4155 = vmatprep.subr.bf16.mxu0 0
        %4156 = vmatpush1.bf16.msra.mxu0 0
        %4157 = vmatprep.subr.bf16.mxu0 0
        %4158 = vmatpush1.bf16.msra.mxu0 0
        %4159 = vmatprep.subr.bf16.mxu0 0
        %4160 = vmatpush1.bf16.msra.mxu0 0
        %4161 = vmatprep.subr.bf16.mxu0 0
        %4162 = vmatpush1.bf16.msra.mxu0 0
        %4163 = vmatprep.subr.bf16.mxu0 0
        %4164 = vmatpush1.bf16.msra.mxu0 0
        %4165 = vmatprep.subr.bf16.mxu0 0
        %4166 = vmatpush1.bf16.msra.mxu0 0
        %4167 = vmatprep.subr.bf16.mxu0 0
        %4168 = vmatpush1.bf16.msra.mxu0 0
        %4169 = vmatprep.subr.bf16.mxu0 0
        %4170 = vmatpush1.bf16.msra.mxu0 0
        %4171 = vmatprep.mubr.bf16.mxu0 0
        %4172 = vmatmul.mubr.bf16.gmra.mrb[0].mxu0 %v3774
        %v4173 = vpop.f32.mrb[0].mxu0
        %v4174 = vadd.f32 0.0, %v4173
        %v4175 = vpop.f32.mrb[0].mxu0
        %v4176 = vadd.f32 0.0, %v4175
        %v4177 = vpop.f32.mrb[0].mxu0
        %v4178 = vadd.f32 0.0, %v4177
        %v4179 = vpop.f32.mrb[0].mxu0
        %v4180 = vadd.f32 0.0, %v4179
        %4181 = vdwg.mxu0
        %4182 = vmatprep.subr.bf16.mxu0 %v3973
        %4183 = vmatpush1.bf16.msra.mxu0 %v3972
        %4184 = vmatprep.subr.bf16.mxu0 %v3981
        %4185 = vmatpush1.bf16.msra.mxu0 %v3980
        %4186 = vmatprep.subr.bf16.mxu0 %v3989
        %4187 = vmatpush1.bf16.msra.mxu0 %v3988
        %4188 = vmatprep.subr.bf16.mxu0 %v3997
        %4189 = vmatpush1.bf16.msra.mxu0 %v3996
        %4190 = vmatprep.subr.bf16.mxu0 %v4005
        %4191 = vmatpush1.bf16.msra.mxu0 %v4004
        %4192 = vmatprep.subr.bf16.mxu0 %v4013
        %4193 = vmatpush1.bf16.msra.mxu0 %v4012
        %4194 = vmatprep.subr.bf16.mxu0 %v4021
        %4195 = vmatpush1.bf16.msra.mxu0 %v4020
        %4196 = vmatprep.subr.bf16.mxu0 %v4029
        %4197 = vmatpush1.bf16.msra.mxu0 %v4028
        %4198 = vmatprep.subr.bf16.mxu0 0
        %4199 = vmatpush1.bf16.msra.mxu0 0
        %4200 = vmatprep.subr.bf16.mxu0 0
        %4201 = vmatpush1.bf16.msra.mxu0 0
        %4202 = vmatprep.subr.bf16.mxu0 0
        %4203 = vmatpush1.bf16.msra.mxu0 0
        %4204 = vmatprep.subr.bf16.mxu0 0
        %4205 = vmatpush1.bf16.msra.mxu0 0
        %4206 = vmatprep.subr.bf16.mxu0 0
        %4207 = vmatpush1.bf16.msra.mxu0 0
        %4208 = vmatprep.subr.bf16.mxu0 0
        %4209 = vmatpush1.bf16.msra.mxu0 0
        %4210 = vmatprep.subr.bf16.mxu0 0
        %4211 = vmatpush1.bf16.msra.mxu0 0
        %4212 = vmatprep.subr.bf16.mxu0 0
        %4213 = vmatpush1.bf16.msra.mxu0 0
        %4214 = vmatprep.mubr.bf16.mxu0 0
        %4215 = vmatmul.mubr.bf16.gmra.mrb[0].mxu0 %v3774
        %v4216 = vpop.f32.mrb[0].mxu0
        %v4217 = vadd.f32 0.0, %v4216
        %v4218 = vpop.f32.mrb[0].mxu0
        %v4219 = vadd.f32 0.0, %v4218
        %v4220 = vpop.f32.mrb[0].mxu0
        %v4221 = vadd.f32 0.0, %v4220
        %v4222 = vpop.f32.mrb[0].mxu0
        %v4223 = vadd.f32 0.0, %v4222
        %4224 = vdwg.mxu0
        %4225 = vmatprep.subr.bf16.mxu0 %v3975
        %4226 = vmatpush1.bf16.msra.mxu0 %v3974
        %4227 = vmatprep.subr.bf16.mxu0 %v3983
        %4228 = vmatpush1.bf16.msra.mxu0 %v3982
        %4229 = vmatprep.subr.bf16.mxu0 %v3991
        %4230 = vmatpush1.bf16.msra.mxu0 %v3990
        %4231 = vmatprep.subr.bf16.mxu0 %v3999
        %4232 = vmatpush1.bf16.msra.mxu0 %v3998
        %4233 = vmatprep.subr.bf16.mxu0 %v4007
        %4234 = vmatpush1.bf16.msra.mxu0 %v4006
        %4235 = vmatprep.subr.bf16.mxu0 %v4015
        %4236 = vmatpush1.bf16.msra.mxu0 %v4014
        %4237 = vmatprep.subr.bf16.mxu0 %v4023
        %4238 = vmatpush1.bf16.msra.mxu0 %v4022
        %4239 = vmatprep.subr.bf16.mxu0 %v4031
        %4240 = vmatpush1.bf16.msra.mxu0 %v4030
        %4241 = vmatprep.subr.bf16.mxu0 0
        %4242 = vmatpush1.bf16.msra.mxu0 0
        %4243 = vmatprep.subr.bf16.mxu0 0
        %4244 = vmatpush1.bf16.msra.mxu0 0
        %4245 = vmatprep.subr.bf16.mxu0 0
        %4246 = vmatpush1.bf16.msra.mxu0 0
        %4247 = vmatprep.subr.bf16.mxu0 0
        %4248 = vmatpush1.bf16.msra.mxu0 0
        %4249 = vmatprep.subr.bf16.mxu0 0
        %4250 = vmatpush1.bf16.msra.mxu0 0
        %4251 = vmatprep.subr.bf16.mxu0 0
        %4252 = vmatpush1.bf16.msra.mxu0 0
        %4253 = vmatprep.subr.bf16.mxu0 0
        %4254 = vmatpush1.bf16.msra.mxu0 0
        %4255 = vmatprep.subr.bf16.mxu0 0
        %4256 = vmatpush1.bf16.msra.mxu0 0
        %4257 = vmatprep.mubr.bf16.mxu0 0
        %4258 = vmatmul.mubr.bf16.gmra.mrb[0].mxu0 %v3774
        %v4259 = vpop.f32.mrb[0].mxu0
        %v4260 = vadd.f32 0.0, %v4259
        %v4261 = vpop.f32.mrb[0].mxu0
        %v4262 = vadd.f32 0.0, %v4261
        %v4263 = vpop.f32.mrb[0].mxu0
        %v4264 = vadd.f32 0.0, %v4263
        %v4265 = vpop.f32.mrb[0].mxu0
        %v4266 = vadd.f32 0.0, %v4265
        %4267 = vdwg.mxu0
        %v4268 = vadd.f32 %v3672, %v4131
        %v4269 = vadd.f32 %v3673, %v4133
        %v4270 = vadd.f32 %v3674, %v4174
        %v4271 = vadd.f32 %v3675, %v4176
        %v4272 = vadd.f32 %v3676, %v4217
        %v4273 = vadd.f32 %v3677, %v4219
        %v4274 = vadd.f32 %v3678, %v4260
        %v4275 = vadd.f32 %v3679, %v4262
        %v4276 = vadd.f32 %v3680, %v4135
        %v4277 = vadd.f32 %v3681, %v4137
        %v4278 = vadd.f32 %v3682, %v4178
        %v4279 = vadd.f32 %v3683, %v4180
        %v4280 = vadd.f32 %v3684, %v4221
        %v4281 = vadd.f32 %v3685, %v4223
        %v4282 = vadd.f32 %v3686, %v4264
        %v4283 = vadd.f32 %v3687, %v4266
        %v4284 = vld [vmem:[#allocation4] sm:$0xff]
        %v4286 = vlaneseq
        %v4287 = vshrl.u32 %v4286, 7
        %v4288 = vsub.s32 0, %v4287
        %v4289 = vrot.slane %v4284, %v4288
        %v4290 = vlaneseq
        %v4291 = vshrl.u32 %v4290, 7
        %v4292 = vsub.s32 1, %v4291
        %v4293 = vrot.slane %v4284, %v4292
        %v4294 = vlaneseq
        %v4295 = vshrl.u32 %v4294, 7
        %v4296 = vsub.s32 2, %v4295
        %v4297 = vrot.slane %v4284, %v4296
        %v4298 = vlaneseq
        %v4299 = vshrl.u32 %v4298, 7
        %v4300 = vsub.s32 3, %v4299
        %v4301 = vrot.slane %v4284, %v4300
        %v4302 = vlaneseq
        %v4303 = vshrl.u32 %v4302, 7
        %v4304 = vsub.s32 4, %v4303
        %v4305 = vrot.slane %v4284, %v4304
        %v4306 = vlaneseq
        %v4307 = vshrl.u32 %v4306, 7
        %v4308 = vsub.s32 5, %v4307
        %v4309 = vrot.slane %v4284, %v4308
        %v4310 = vlaneseq
        %v4311 = vshrl.u32 %v4310, 7
        %v4312 = vsub.s32 6, %v4311
        %v4313 = vrot.slane %v4284, %v4312
        %v4314 = vlaneseq
        %v4315 = vshrl.u32 %v4314, 7
        %v4316 = vsub.s32 7, %v4315
        %v4317 = vrot.slane %v4284, %v4316
        %v4326 = vadd.f32 %v4268, %v4289
        %v4327 = vadd.f32 %v4269, %v4293
        %v4328 = vadd.f32 %v4270, %v4297
        %v4329 = vadd.f32 %v4271, %v4301
        %v4330 = vadd.f32 %v4272, %v4305
        %v4331 = vadd.f32 %v4273, %v4309
        %v4332 = vadd.f32 %v4274, %v4313
        %v4333 = vadd.f32 %v4275, %v4317
        %v4334 = vadd.f32 %v4276, %v4289
        %v4335 = vadd.f32 %v4277, %v4293
        %v4336 = vadd.f32 %v4278, %v4297
        %v4337 = vadd.f32 %v4279, %v4301
        %v4338 = vadd.f32 %v4280, %v4305
        %v4339 = vadd.f32 %v4281, %v4309
        %v4340 = vadd.f32 %v4282, %v4313
        %v4341 = vadd.f32 %v4283, %v4317
        %v4342 = vmax.f32 %v4326, 0.0
        %v4343 = vmax.f32 %v4327, 0.0
        %v4344 = vmax.f32 %v4328, 0.0
        %v4345 = vmax.f32 %v4329, 0.0
        %v4346 = vmax.f32 %v4330, 0.0
        %v4347 = vmax.f32 %v4331, 0.0
        %v4348 = vmax.f32 %v4332, 0.0
        %v4349 = vmax.f32 %v4333, 0.0
        %v4350 = vmax.f32 %v4334, 0.0
        %v4351 = vmax.f32 %v4335, 0.0
        %v4352 = vmax.f32 %v4336, 0.0
        %v4353 = vmax.f32 %v4337, 0.0
        %v4354 = vmax.f32 %v4338, 0.0
        %v4355 = vmax.f32 %v4339, 0.0
        %v4356 = vmax.f32 %v4340, 0.0
        %v4357 = vmax.f32 %v4341, 0.0
        %vm4358 = vcmask 1045504
        %v4359 = vsel %vm4358, %v4342, -inf
        %v4360 = vrot.slane %v4359, 4
        %v4361 = vmax.f32 %v4359, %v4360
        %v4362 = vrot.slane %v4361, 2
        %v4363 = vmax.f32 %v4361, %v4362
        %v4364 = vrot.slane %v4363, 1
        %v4365 = vmax.f32 %v4363, %v4364
        %v4366 = vsel %vm4358, %v4343, -inf
        %v4367 = vrot.slane %v4366, 4
        %v4368 = vmax.f32 %v4366, %v4367
        %v4369 = vrot.slane %v4368, 2
        %v4370 = vmax.f32 %v4368, %v4369
        %v4371 = vrot.slane %v4370, 1
        %v4372 = vmax.f32 %v4370, %v4371
        %v4373 = vsel %vm4358, %v4344, -inf
        %v4374 = vrot.slane %v4373, 4
        %v4375 = vmax.f32 %v4373, %v4374
        %v4376 = vrot.slane %v4375, 2
        %v4377 = vmax.f32 %v4375, %v4376
        %v4378 = vrot.slane %v4377, 1
        %v4379 = vmax.f32 %v4377, %v4378
        %v4380 = vsel %vm4358, %v4345, -inf
        %v4381 = vrot.slane %v4380, 4
        %v4382 = vmax.f32 %v4380, %v4381
        %v4383 = vrot.slane %v4382, 2
        %v4384 = vmax.f32 %v4382, %v4383
        %v4385 = vrot.slane %v4384, 1
        %v4386 = vmax.f32 %v4384, %v4385
        %v4387 = vsel %vm4358, %v4346, -inf
        %v4388 = vrot.slane %v4387, 4
        %v4389 = vmax.f32 %v4387, %v4388
        %v4390 = vrot.slane %v4389, 2
        %v4391 = vmax.f32 %v4389, %v4390
        %v4392 = vrot.slane %v4391, 1
        %v4393 = vmax.f32 %v4391, %v4392
        %v4394 = vsel %vm4358, %v4347, -inf
        %v4395 = vrot.slane %v4394, 4
        %v4396 = vmax.f32 %v4394, %v4395
        %v4397 = vrot.slane %v4396, 2
        %v4398 = vmax.f32 %v4396, %v4397
        %v4399 = vrot.slane %v4398, 1
        %v4400 = vmax.f32 %v4398, %v4399
        %v4401 = vsel %vm4358, %v4348, -inf
        %v4402 = vrot.slane %v4401, 4
        %v4403 = vmax.f32 %v4401, %v4402
        %v4404 = vrot.slane %v4403, 2
        %v4405 = vmax.f32 %v4403, %v4404
        %v4406 = vrot.slane %v4405, 1
        %v4407 = vmax.f32 %v4405, %v4406
        %v4408 = vsel %vm4358, %v4349, -inf
        %v4409 = vrot.slane %v4408, 4
        %v4410 = vmax.f32 %v4408, %v4409
        %v4411 = vrot.slane %v4410, 2
        %v4412 = vmax.f32 %v4410, %v4411
        %v4413 = vrot.slane %v4412, 1
        %v4414 = vmax.f32 %v4412, %v4413
        %4416 = vrot.lane.b32.xlu0 %v4365, 64
        %v4417 = vpop.permute.xlu0 %4416
        %v4419 = vmax.f32 %v4365, %v4417
        %v4420 = vmax.f32 %v4419, %v4372
        %4422 = vrot.lane.b32.xlu0 %v4372, 64
        %v4423 = vpop.permute.xlu0 %4422
        %v4425 = vmax.f32 %v4420, %v4423
        %v4426 = vmax.f32 %v4425, %v4379
        %4428 = vrot.lane.b32.xlu0 %v4379, 64
        %v4429 = vpop.permute.xlu0 %4428
        %v4431 = vmax.f32 %v4426, %v4429
        %v4432 = vmax.f32 %v4431, %v4386
        %4434 = vrot.lane.b32.xlu0 %v4386, 64
        %v4435 = vpop.permute.xlu0 %4434
        %v4437 = vmax.f32 %v4432, %v4435
        %v4438 = vmax.f32 %v4437, %v4393
        %4440 = vrot.lane.b32.xlu0 %v4393, 64
        %v4441 = vpop.permute.xlu0 %4440
        %v4443 = vmax.f32 %v4438, %v4441
        %v4444 = vmax.f32 %v4372, %v4429
        %v4445 = vmax.f32 %v4444, %v4379
        %v4446 = vmax.f32 %v4445, %v4435
        %v4447 = vmax.f32 %v4446, %v4386
        %v4448 = vmax.f32 %v4447, %v4441
        %v4449 = vmax.f32 %v4448, %v4393
        %4451 = vrot.lane.b32.xlu0 %v4400, 64
        %v4452 = vpop.permute.xlu0 %4451
        %v4454 = vmax.f32 %v4449, %v4452
        %v4455 = vmax.f32 %v4454, %v4400
        %4457 = vrot.lane.b32.xlu0 %v4407, 64
        %v4458 = vpop.permute.xlu0 %4457
        %v4460 = vmax.f32 %v4455, %v4458
        %v4461 = vmax.f32 %v4460, %v4407
        %v4462 = vmax.f32 %v4386, %v4441
        %v4463 = vmax.f32 %v4462, %v4393
        %v4464 = vmax.f32 %v4463, %v4452
        %v4465 = vmax.f32 %v4464, %v4400
        %v4466 = vmax.f32 %v4465, %v4458
        %v4467 = vmax.f32 %v4466, %v4407
        %4469 = vrot.lane.b32.xlu0 %v4414, 64
        %v4470 = vpop.permute.xlu0 %4469
        %v4472 = vmax.f32 %v4467, %v4470
        %v4473 = vmax.f32 %v4472, %v4414
        %4475 = vrot.lane.b32.xlu0 %v4443, 64
        %v4476 = vpop.permute.xlu0 %4475
        %4479 = vrot.lane.b32.xlu0 %v4461, 64
        %v4480 = vpop.permute.xlu0 %4479
        %vm4482 = vcmask 523264
        %v4483 = vsel %vm4482, %v4431, %v4476
        %v4484 = vsel %vm4482, %v4480, %v4473
        %v4487 = vcombine.low %v4483, %v4484
        %v4489 = vunpack.c.l.s4 1966171168
        %v4490 = vunpack.c.0.s8 %v4489
        %v4491 = vlaneseq
        %v4492 = vshrl.u32 %v4491, 7
        %v4493 = vsub.s32 %v4490, %v4492
        %v4494 = vrot.slane %v4487, %v4493
        %v4496 = vunpack.c.l.s4 1966171168
        %v4497 = vunpack.c.0.s8 %v4496
        %v4498 = vlaneseq
        %v4499 = vshrl.u32 %v4498, 7
        %v4500 = vsub.s32 %v4497, %v4499
        %v4501 = vrot.slane %v4494, %v4500
        %v4503 = vlaneseq
        %vm4504 = vcmp.ge.s32.totalorder %v4503, 0
        %vm4505 = vcmp.lt.s32.totalorder %v4503, 256
        %vm4506 = vmand %vm4504, %vm4505
        %4507 = vst.msk [vmem:[%s198] ss:$4 sm:$0x3] %vm4506, %v4501
        %vm4508 = vcmask 1041408
        %v4509 = vsel %vm4508, %v4350, -inf
        %v4510 = vmax.f32 %v4342, %v4509
        %v4511 = vrot.slane %v4510, 4
        %v4512 = vmax.f32 %v4510, %v4511
        %v4513 = vrot.slane %v4512, 2
        %v4514 = vmax.f32 %v4512, %v4513
        %v4515 = vrot.slane %v4514, 1
        %v4516 = vmax.f32 %v4514, %v4515
        %v4517 = vsel %vm4508, %v4351, -inf
        %v4518 = vmax.f32 %v4343, %v4517
        %v4519 = vrot.slane %v4518, 4
        %v4520 = vmax.f32 %v4518, %v4519
        %v4521 = vrot.slane %v4520, 2
        %v4522 = vmax.f32 %v4520, %v4521
        %v4523 = vrot.slane %v4522, 1
        %v4524 = vmax.f32 %v4522, %v4523
        %v4525 = vsel %vm4508, %v4352, -inf
        %v4526 = vmax.f32 %v4344, %v4525
        %v4527 = vrot.slane %v4526, 4
        %v4528 = vmax.f32 %v4526, %v4527
        %v4529 = vrot.slane %v4528, 2
        %v4530 = vmax.f32 %v4528, %v4529
        %v4531 = vrot.slane %v4530, 1
        %v4532 = vmax.f32 %v4530, %v4531
        %v4533 = vsel %vm4508, %v4353, -inf
        %v4534 = vmax.f32 %v4345, %v4533
        %v4535 = vrot.slane %v4534, 4
        %v4536 = vmax.f32 %v4534, %v4535
        %v4537 = vrot.slane %v4536, 2
        %v4538 = vmax.f32 %v4536, %v4537
        %v4539 = vrot.slane %v4538, 1
        %v4540 = vmax.f32 %v4538, %v4539
        %v4541 = vsel %vm4508, %v4354, -inf
        %v4542 = vmax.f32 %v4346, %v4541
        %v4543 = vrot.slane %v4542, 4
        %v4544 = vmax.f32 %v4542, %v4543
        %v4545 = vrot.slane %v4544, 2
        %v4546 = vmax.f32 %v4544, %v4545
        %v4547 = vrot.slane %v4546, 1
        %v4548 = vmax.f32 %v4546, %v4547
        %v4549 = vsel %vm4508, %v4355, -inf
        %v4550 = vmax.f32 %v4347, %v4549
        %v4551 = vrot.slane %v4550, 4
        %v4552 = vmax.f32 %v4550, %v4551
        %v4553 = vrot.slane %v4552, 2
        %v4554 = vmax.f32 %v4552, %v4553
        %v4555 = vrot.slane %v4554, 1
        %v4556 = vmax.f32 %v4554, %v4555
        %v4557 = vsel %vm4508, %v4356, -inf
        %v4558 = vmax.f32 %v4348, %v4557
        %v4559 = vrot.slane %v4558, 4
        %v4560 = vmax.f32 %v4558, %v4559
        %v4561 = vrot.slane %v4560, 2
        %v4562 = vmax.f32 %v4560, %v4561
        %v4563 = vrot.slane %v4562, 1
        %v4564 = vmax.f32 %v4562, %v4563
        %v4565 = vsel %vm4508, %v4357, -inf
        %v4566 = vmax.f32 %v4349, %v4565
        %v4567 = vrot.slane %v4566, 4
        %v4568 = vmax.f32 %v4566, %v4567
        %v4569 = vrot.slane %v4568, 2
        %v4570 = vmax.f32 %v4568, %v4569
        %v4571 = vrot.slane %v4570, 1
        %v4572 = vmax.f32 %v4570, %v4571
        %4574 = vrot.lane.b32.xlu0 %v4516, 64
        %v4575 = vpop.permute.xlu0 %4574
        %v4577 = vmax.f32 %v4516, %v4575
        %v4578 = vmax.f32 %v4577, %v4524
        %4580 = vrot.lane.b32.xlu0 %v4524, 64
        %v4581 = vpop.permute.xlu0 %4580
        %v4583 = vmax.f32 %v4578, %v4581
        %v4584 = vmax.f32 %v4583, %v4532
        %4586 = vrot.lane.b32.xlu0 %v4532, 64
        %v4587 = vpop.permute.xlu0 %4586
        %v4589 = vmax.f32 %v4584, %v4587
        %v4590 = vmax.f32 %v4589, %v4540
        %4592 = vrot.lane.b32.xlu0 %v4540, 64
        %v4593 = vpop.permute.xlu0 %4592
        %v4595 = vmax.f32 %v4590, %v4593
        %v4596 = vmax.f32 %v4595, %v4548
        %4598 = vrot.lane.b32.xlu0 %v4548, 64
        %v4599 = vpop.permute.xlu0 %4598
        %v4601 = vmax.f32 %v4596, %v4599
        %v4602 = vmax.f32 %v4524, %v4587
        %v4603 = vmax.f32 %v4602, %v4532
        %v4604 = vmax.f32 %v4603, %v4593
        %v4605 = vmax.f32 %v4604, %v4540
        %v4606 = vmax.f32 %v4605, %v4599
        %v4607 = vmax.f32 %v4606, %v4548
        %4609 = vrot.lane.b32.xlu0 %v4556, 64
        %v4610 = vpop.permute.xlu0 %4609
        %v4612 = vmax.f32 %v4607, %v4610
        %v4613 = vmax.f32 %v4612, %v4556
        %4615 = vrot.lane.b32.xlu0 %v4564, 64
        %v4616 = vpop.permute.xlu0 %4615
        %v4618 = vmax.f32 %v4613, %v4616
        %v4619 = vmax.f32 %v4618, %v4564
        %v4620 = vmax.f32 %v4540, %v4599
        %v4621 = vmax.f32 %v4620, %v4548
        %v4622 = vmax.f32 %v4621, %v4610
        %v4623 = vmax.f32 %v4622, %v4556
        %v4624 = vmax.f32 %v4623, %v4616
        %v4625 = vmax.f32 %v4624, %v4564
        %4627 = vrot.lane.b32.xlu0 %v4572, 64
        %v4628 = vpop.permute.xlu0 %4627
        %v4630 = vmax.f32 %v4625, %v4628
        %v4631 = vmax.f32 %v4630, %v4572
        %4633 = vrot.lane.b32.xlu0 %v4601, 64
        %v4634 = vpop.permute.xlu0 %4633
        %4637 = vrot.lane.b32.xlu0 %v4619, 64
        %v4638 = vpop.permute.xlu0 %4637
        %v4640 = vsel %vm4482, %v4589, %v4634
        %v4641 = vsel %vm4482, %v4638, %v4631
        %v4644 = vcombine.low %v4640, %v4641
        %v4646 = vunpack.c.l.s4 1966171168
        %v4647 = vunpack.c.0.s8 %v4646
        %v4648 = vlaneseq
        %v4649 = vshrl.u32 %v4648, 7
        %v4650 = vsub.s32 %v4647, %v4649
        %v4651 = vrot.slane %v4644, %v4650
        %v4653 = vunpack.c.l.s4 1966171168
        %v4654 = vunpack.c.0.s8 %v4653
        %v4655 = vlaneseq
        %v4656 = vshrl.u32 %v4655, 7
        %v4657 = vsub.s32 %v4654, %v4656
        %v4658 = vrot.slane %v4651, %v4657
        %s4660 = scalar_lea.vmem %s198, 1
        %4661 = vst.msk [vmem:[%s4660] ss:$4 sm:$0x3] %vm4506, %v4658
        %vm4662 = vcmask 1047555
        %v4663 = vsel %vm4662, %v4342, -inf
        %v4664 = vsel %vm4358, %v4350, -inf
        %v4665 = vmax.f32 %v4663, %v4664
        %v4666 = vrot.slane %v4665, 4
        %v4667 = vmax.f32 %v4665, %v4666
        %v4668 = vrot.slane %v4667, 2
        %v4669 = vmax.f32 %v4667, %v4668
        %v4670 = vrot.slane %v4669, 1
        %v4671 = vmax.f32 %v4669, %v4670
        %v4672 = vsel %vm4662, %v4343, -inf
        %v4673 = vsel %vm4358, %v4351, -inf
        %v4674 = vmax.f32 %v4672, %v4673
        %v4675 = vrot.slane %v4674, 4
        %v4676 = vmax.f32 %v4674, %v4675
        %v4677 = vrot.slane %v4676, 2
        %v4678 = vmax.f32 %v4676, %v4677
        %v4679 = vrot.slane %v4678, 1
        %v4680 = vmax.f32 %v4678, %v4679
        %v4681 = vsel %vm4662, %v4344, -inf
        %v4682 = vsel %vm4358, %v4352, -inf
        %v4683 = vmax.f32 %v4681, %v4682
        %v4684 = vrot.slane %v4683, 4
        %v4685 = vmax.f32 %v4683, %v4684
        %v4686 = vrot.slane %v4685, 2
        %v4687 = vmax.f32 %v4685, %v4686
        %v4688 = vrot.slane %v4687, 1
        %v4689 = vmax.f32 %v4687, %v4688
        %v4690 = vsel %vm4662, %v4345, -inf
        %v4691 = vsel %vm4358, %v4353, -inf
        %v4692 = vmax.f32 %v4690, %v4691
        %v4693 = vrot.slane %v4692, 4
        %v4694 = vmax.f32 %v4692, %v4693
        %v4695 = vrot.slane %v4694, 2
        %v4696 = vmax.f32 %v4694, %v4695
        %v4697 = vrot.slane %v4696, 1
        %v4698 = vmax.f32 %v4696, %v4697
        %v4699 = vsel %vm4662, %v4346, -inf
        %v4700 = vsel %vm4358, %v4354, -inf
        %v4701 = vmax.f32 %v4699, %v4700
        %v4702 = vrot.slane %v4701, 4
        %v4703 = vmax.f32 %v4701, %v4702
        %v4704 = vrot.slane %v4703, 2
        %v4705 = vmax.f32 %v4703, %v4704
        %v4706 = vrot.slane %v4705, 1
        %v4707 = vmax.f32 %v4705, %v4706
        %v4708 = vsel %vm4662, %v4347, -inf
        %v4709 = vsel %vm4358, %v4355, -inf
        %v4710 = vmax.f32 %v4708, %v4709
        %v4711 = vrot.slane %v4710, 4
        %v4712 = vmax.f32 %v4710, %v4711
        %v4713 = vrot.slane %v4712, 2
        %v4714 = vmax.f32 %v4712, %v4713
        %v4715 = vrot.slane %v4714, 1
        %v4716 = vmax.f32 %v4714, %v4715
        %v4717 = vsel %vm4662, %v4348, -inf
        %v4718 = vsel %vm4358, %v4356, -inf
        %v4719 = vmax.f32 %v4717, %v4718
        %v4720 = vrot.slane %v4719, 4
        %v4721 = vmax.f32 %v4719, %v4720
        %v4722 = vrot.slane %v4721, 2
        %v4723 = vmax.f32 %v4721, %v4722
        %v4724 = vrot.slane %v4723, 1
        %v4725 = vmax.f32 %v4723, %v4724
        %v4726 = vsel %vm4662, %v4349, -inf
        %v4727 = vsel %vm4358, %v4357, -inf
        %v4728 = vmax.f32 %v4726, %v4727
        %v4729 = vrot.slane %v4728, 4
        %v4730 = vmax.f32 %v4728, %v4729
        %v4731 = vrot.slane %v4730, 2
        %v4732 = vmax.f32 %v4730, %v4731
        %v4733 = vrot.slane %v4732, 1
        %v4734 = vmax.f32 %v4732, %v4733
        %4736 = vrot.lane.b32.xlu0 %v4671, 64
        %v4737 = vpop.permute.xlu0 %4736
        %v4739 = vmax.f32 %v4671, %v4737
        %v4740 = vmax.f32 %v4739, %v4680
        %4742 = vrot.lane.b32.xlu0 %v4680, 64
        %v4743 = vpop.permute.xlu0 %4742
        %v4745 = vmax.f32 %v4740, %v4743
        %v4746 = vmax.f32 %v4745, %v4689
        %4748 = vrot.lane.b32.xlu0 %v4689, 64
        %v4749 = vpop.permute.xlu0 %4748
        %v4751 = vmax.f32 %v4746, %v4749
        %v4752 = vmax.f32 %v4751, %v4698
        %4754 = vrot.lane.b32.xlu0 %v4698, 64
        %v4755 = vpop.permute.xlu0 %4754
        %v4757 = vmax.f32 %v4752, %v4755
        %v4758 = vmax.f32 %v4757, %v4707
        %4760 = vrot.lane.b32.xlu0 %v4707, 64
        %v4761 = vpop.permute.xlu0 %4760
        %v4763 = vmax.f32 %v4758, %v4761
        %v4764 = vmax.f32 %v4680, %v4749
        %v4765 = vmax.f32 %v4764, %v4689
        %v4766 = vmax.f32 %v4765, %v4755
        %v4767 = vmax.f32 %v4766, %v4698
        %v4768 = vmax.f32 %v4767, %v4761
        %v4769 = vmax.f32 %v4768, %v4707
        %4771 = vrot.lane.b32.xlu0 %v4716, 64
        %v4772 = vpop.permute.xlu0 %4771
        %v4774 = vmax.f32 %v4769, %v4772
        %v4775 = vmax.f32 %v4774, %v4716
        %4777 = vrot.lane.b32.xlu0 %v4725, 64
        %v4778 = vpop.permute.xlu0 %4777
        %v4780 = vmax.f32 %v4775, %v4778
        %v4781 = vmax.f32 %v4780, %v4725
        %v4782 = vmax.f32 %v4698, %v4761
        %v4783 = vmax.f32 %v4782, %v4707
        %v4784 = vmax.f32 %v4783, %v4772
        %v4785 = vmax.f32 %v4784, %v4716
        %v4786 = vmax.f32 %v4785, %v4778
        %v4787 = vmax.f32 %v4786, %v4725
        %4789 = vrot.lane.b32.xlu0 %v4734, 64
        %v4790 = vpop.permute.xlu0 %4789
        %v4792 = vmax.f32 %v4787, %v4790
        %v4793 = vmax.f32 %v4792, %v4734
        %4795 = vrot.lane.b32.xlu0 %v4763, 64
        %v4796 = vpop.permute.xlu0 %4795
        %4799 = vrot.lane.b32.xlu0 %v4781, 64
        %v4800 = vpop.permute.xlu0 %4799
        %v4802 = vsel %vm4482, %v4751, %v4796
        %v4803 = vsel %vm4482, %v4800, %v4793
        %v4806 = vcombine.low %v4802, %v4803
        %v4808 = vunpack.c.l.s4 1966171168
        %v4809 = vunpack.c.0.s8 %v4808
        %v4810 = vlaneseq
        %v4811 = vshrl.u32 %v4810, 7
        %v4812 = vsub.s32 %v4809, %v4811
        %v4813 = vrot.slane %v4806, %v4812
        %v4815 = vunpack.c.l.s4 1966171168
        %v4816 = vunpack.c.0.s8 %v4815
        %v4817 = vlaneseq
        %v4818 = vshrl.u32 %v4817, 7
        %v4819 = vsub.s32 %v4816, %v4818
        %v4820 = vrot.slane %v4813, %v4819
        %s4822 = scalar_lea.vmem %s198, 2
        %4823 = vst.msk [vmem:[%s4822] ss:$4 sm:$0x3] %vm4506, %v4820
        %vm4824 = vcmask 1047559
        %v4825 = vsel %vm4824, %v4342, -inf
        %v4826 = vmax.f32 %v4825, %v4350
        %v4827 = vrot.slane %v4826, 4
        %v4828 = vmax.f32 %v4826, %v4827
        %v4829 = vrot.slane %v4828, 2
        %v4830 = vmax.f32 %v4828, %v4829
        %v4831 = vrot.slane %v4830, 1
        %v4832 = vmax.f32 %v4830, %v4831
        %v4833 = vsel %vm4824, %v4343, -inf
        %v4834 = vmax.f32 %v4833, %v4351
        %v4835 = vrot.slane %v4834, 4
        %v4836 = vmax.f32 %v4834, %v4835
        %v4837 = vrot.slane %v4836, 2
        %v4838 = vmax.f32 %v4836, %v4837
        %v4839 = vrot.slane %v4838, 1
        %v4840 = vmax.f32 %v4838, %v4839
        %v4841 = vsel %vm4824, %v4344, -inf
        %v4842 = vmax.f32 %v4841, %v4352
        %v4843 = vrot.slane %v4842, 4
        %v4844 = vmax.f32 %v4842, %v4843
        %v4845 = vrot.slane %v4844, 2
        %v4846 = vmax.f32 %v4844, %v4845
        %v4847 = vrot.slane %v4846, 1
        %v4848 = vmax.f32 %v4846, %v4847
        %v4849 = vsel %vm4824, %v4345, -inf
        %v4850 = vmax.f32 %v4849, %v4353
        %v4851 = vrot.slane %v4850, 4
        %v4852 = vmax.f32 %v4850, %v4851
        %v4853 = vrot.slane %v4852, 2
        %v4854 = vmax.f32 %v4852, %v4853
        %v4855 = vrot.slane %v4854, 1
        %v4856 = vmax.f32 %v4854, %v4855
        %v4857 = vsel %vm4824, %v4346, -inf
        %v4858 = vmax.f32 %v4857, %v4354
        %v4859 = vrot.slane %v4858, 4
        %v4860 = vmax.f32 %v4858, %v4859
        %v4861 = vrot.slane %v4860, 2
        %v4862 = vmax.f32 %v4860, %v4861
        %v4863 = vrot.slane %v4862, 1
        %v4864 = vmax.f32 %v4862, %v4863
        %v4865 = vsel %vm4824, %v4347, -inf
        %v4866 = vmax.f32 %v4865, %v4355
        %v4867 = vrot.slane %v4866, 4
        %v4868 = vmax.f32 %v4866, %v4867
        %v4869 = vrot.slane %v4868, 2
        %v4870 = vmax.f32 %v4868, %v4869
        %v4871 = vrot.slane %v4870, 1
        %v4872 = vmax.f32 %v4870, %v4871
        %v4873 = vsel %vm4824, %v4348, -inf
        %v4874 = vmax.f32 %v4873, %v4356
        %v4875 = vrot.slane %v4874, 4
        %v4876 = vmax.f32 %v4874, %v4875
        %v4877 = vrot.slane %v4876, 2
        %v4878 = vmax.f32 %v4876, %v4877
        %v4879 = vrot.slane %v4878, 1
        %v4880 = vmax.f32 %v4878, %v4879
        %v4881 = vsel %vm4824, %v4349, -inf
        %v4882 = vmax.f32 %v4881, %v4357
        %v4883 = vrot.slane %v4882, 4
        %v4884 = vmax.f32 %v4882, %v4883
        %v4885 = vrot.slane %v4884, 2
        %v4886 = vmax.f32 %v4884, %v4885
        %v4887 = vrot.slane %v4886, 1
        %v4888 = vmax.f32 %v4886, %v4887
        %4890 = vrot.lane.b32.xlu0 %v4832, 64
        %v4891 = vpop.permute.xlu0 %4890
        %v4893 = vmax.f32 %v4832, %v4891
        %v4894 = vmax.f32 %v4893, %v4840
        %4896 = vrot.lane.b32.xlu0 %v4840, 64
        %v4897 = vpop.permute.xlu0 %4896
        %v4899 = vmax.f32 %v4894, %v4897
        %v4900 = vmax.f32 %v4899, %v4848
        %4902 = vrot.lane.b32.xlu0 %v4848, 64
        %v4903 = vpop.permute.xlu0 %4902
        %v4905 = vmax.f32 %v4900, %v4903
        %v4906 = vmax.f32 %v4905, %v4856
        %4908 = vrot.lane.b32.xlu0 %v4856, 64
        %v4909 = vpop.permute.xlu0 %4908
        %v4911 = vmax.f32 %v4906, %v4909
        %v4912 = vmax.f32 %v4911, %v4864
        %4914 = vrot.lane.b32.xlu0 %v4864, 64
        %v4915 = vpop.permute.xlu0 %4914
        %v4917 = vmax.f32 %v4912, %v4915
        %v4918 = vmax.f32 %v4840, %v4903
        %v4919 = vmax.f32 %v4918, %v4848
        %v4920 = vmax.f32 %v4919, %v4909
        %v4921 = vmax.f32 %v4920, %v4856
        %v4922 = vmax.f32 %v4921, %v4915
        %v4923 = vmax.f32 %v4922, %v4864
        %4925 = vrot.lane.b32.xlu0 %v4872, 64
        %v4926 = vpop.permute.xlu0 %4925
        %v4928 = vmax.f32 %v4923, %v4926
        %v4929 = vmax.f32 %v4928, %v4872
        %4931 = vrot.lane.b32.xlu0 %v4880, 64
        %v4932 = vpop.permute.xlu0 %4931
        %v4934 = vmax.f32 %v4929, %v4932
        %v4935 = vmax.f32 %v4934, %v4880
        %v4936 = vmax.f32 %v4856, %v4915
        %v4937 = vmax.f32 %v4936, %v4864
        %v4938 = vmax.f32 %v4937, %v4926
        %v4939 = vmax.f32 %v4938, %v4872
        %v4940 = vmax.f32 %v4939, %v4932
        %v4941 = vmax.f32 %v4940, %v4880
        %4943 = vrot.lane.b32.xlu0 %v4888, 64
        %v4944 = vpop.permute.xlu0 %4943
        %v4946 = vmax.f32 %v4941, %v4944
        %v4947 = vmax.f32 %v4946, %v4888
        %4949 = vrot.lane.b32.xlu0 %v4917, 64
        %v4950 = vpop.permute.xlu0 %4949
        %4953 = vrot.lane.b32.xlu0 %v4935, 64
        %v4954 = vpop.permute.xlu0 %4953
        %v4956 = vsel %vm4482, %v4905, %v4950
        %v4957 = vsel %vm4482, %v4954, %v4947
        %v4960 = vcombine.low %v4956, %v4957
        %v4962 = vunpack.c.l.s4 1966171168
        %v4963 = vunpack.c.0.s8 %v4962
        %v4964 = vlaneseq
        %v4965 = vshrl.u32 %v4964, 7
        %v4966 = vsub.s32 %v4963, %v4965
        %v4967 = vrot.slane %v4960, %v4966
        %v4969 = vunpack.c.l.s4 1966171168
        %v4970 = vunpack.c.0.s8 %v4969
        %v4971 = vlaneseq
        %v4972 = vshrl.u32 %v4971, 7
        %v4973 = vsub.s32 %v4970, %v4972
        %v4974 = vrot.slane %v4967, %v4973
        %s4976 = scalar_lea.vmem %s198, 3
        %4977 = vst.msk [vmem:[%s4976] ss:$4 sm:$0x3] %vm4506, %v4974
        %p4978 = scmp.lt.s32.totalorder %s16, 1
        %s4979 = scalar_select %p4978, %s16, 1
        %s4980 = smul.addr %s4979, 2
        %s4981 = smul.addr %s4980, 4
        %s4982 = scalar_lea.vmem %s3, %s4981
        // Predicated region
        $region41: #{_forward.1} parent=31 // pred_check
          %p4983 = pneg %p102
        $region42: #{_forward.1} parent=31 // pred_check_branch
          %4985 = sbr.rel (%p4983) target = $region44
        $region43: #{_forward.1} parent=31 // pred_region
          _
        $region44: #{_forward.1} parent=31 // pred_fallthru
          _
      $region32: #{_forward.1} parent=5 // pred_fallthru
        _
      %p4986 = scmp.le.s32.totalorder 2, %s11
      // Predicated region
      $region45: #{_forward.1} parent=5 // pred_check
        %p4987 = pneg %p4986
      $region46: #{_forward.1} parent=5 // pred_check_branch
        %4989 = sbr.rel (%p4987) target = $region48
      $region47: #{_forward.1} parent=5 // pred_region
        %s4990 = ssub.s32 %s11, 2
        // Predicated region
        $region49: #{_forward.1} parent=47 // pred_check
          %p4991 = pneg %p108
        $region50: #{_forward.1} parent=47 // pred_check_branch
          %4993 = sbr.rel (%p4991) target = $region52
        $region51: #{_forward.1} parent=47 // pred_region
          %p4994 = scmp.lt.s32.totalorder %s17, 1
          %s4995 = scalar_select %p4994, %s17, 1
          %s4996 = smul.addr %s4995, 2
          %s4997 = smul.addr %s4996, 4
          %s4998 = scalar_lea.vmem %s3, %s4997
        $region52: #{_forward.1} parent=47 // pred_fallthru
          _
      $region48: #{_forward.1} parent=5 // pred_fallthru
        _
    $region6: #{_forward.1} parent=1 // loop_footer
      %s15 = sadd.s32 1, %s11
    $region7: #{_forward.1} parent=1 // loop_footer_branch
      %10 = sbr.rel target = $region3
    $region8: #{_forward.1} parent=1 // loop_exit
      _
    %4999 = vsyncpa [#allocation3], 1
    %s5000 = scalar_lea.sflag [#allocation3], 1
    %5001 = vsyncpa %s5000, 1
    %5002 = vsyncpa [#allocation5], 1

</llo_original>
